<compile_context>
chip_gen: v7x
topology: tpu7x:2x2x1
jax: 0.10.0
libtpu: 0.0.40
codegen_flags: <defaults>
</compile_context>

<pallas_src>
import numpy as np
import jax
import jax.numpy as jnp
from jax.experimental import pallas as pl
from jax.experimental.pallas import tpu as pltpu

# VGG16 "features" configuration (torchvision.models.vgg16)
VGG16_CFG = [64, 64, 'M', 128, 128, 'M', 256, 256, 256, 'M',
             512, 512, 512, 'M', 512, 512, 512, 'M']

_VMEM_LIMIT = 48 * 1024 * 1024   # fits v7x's 64 MiB/TC with headroom


def _pick_row_tile(H, pool):
    """Largest row tile <= 8 that divides H (and is even when pooling)."""
    for t in range(min(8, H), 0, -1):
        if H % t == 0 and (not pool or t % 2 == 0):
            return t
    return H


# ----------------------------- Pallas kernels ------------------------------

def conv3x3_relu(x, w9, b, pool):
    """3x3 conv (stride 1, pad 1) + bias + ReLU, optionally fused 2x2 maxpool.

    x:  (N, H, W, Cin) f32 NHWC activations.
    w9: (9*Cin, Cout) bf16 weights in im2col (tap-major) layout.
    b:  (1, Cout) f32 bias.

    Grid = (batch ["parallel"], row tiles ["arbitrary"]).  Each step builds an
    im2col matrix (TH*W, 9*Cin) in VMEM and runs a single bf16 matmul with
    K = 9*Cin (good MXU depth fill), accumulating in f32.  The halo comes from
    a per-image zero-padded VMEM scratch filled once per batch element.
    """
    N, H, W, Cin = x.shape
    Cout = w9.shape[-1]
    if pool:
        assert H % 2 == 0 and W % 2 == 0
    TH = _pick_row_tile(H, pool)
    nh = H // TH
    THo, Ho, Wo = (TH // 2, H // 2, W // 2) if pool else (TH, H, W)

    def kernel(x_ref, w_ref, b_ref, o_ref, xpad_ref, col_ref):
        h = pl.program_id(1)

        # Fill the zero-padded image scratch once per batch element.
        @pl.when(h == 0)
        def _():
            xpad_ref[...] = jnp.zeros_like(xpad_ref)
            xpad_ref[1:H + 1, 1:W + 1, :] = x_ref[0].astype(xpad_ref.dtype)

        # im2col for this row tile: 9 shifted windows -> (TH*W, 9*Cin) bf16.
        r0 = h * TH
        for tap in range(9):
            ky, kx = tap // 3, tap % 3
            patch = xpad_ref[pl.ds(r0 + ky, TH), pl.ds(kx, W), :]
            col_ref[:, tap * Cin:(tap + 1) * Cin] = patch.reshape(TH * W, Cin)

        # Single MXU matmul per row tile (K = 9*Cin), f32 result.
        y = jnp.dot(col_ref[...], w_ref[...],
                    preferred_element_type=jnp.float32)
        y = jnp.maximum(y + b_ref[...], 0.0)              # bias + ReLU
        y = y.reshape(TH, W, Cout)

        if pool:                                          # fused 2x2 stride-2 max pool
            y = y.reshape(TH // 2, 2, W, Cout)
            y = jnp.maximum(y[:, 0], y[:, 1])             # pool row pairs
            cols = [jnp.maximum(y[:, 2 * j:2 * j + 1, :],
                                y[:, 2 * j + 1:2 * j + 2, :])
                    for j in range(Wo)]                   # pool column pairs
            y = jnp.concatenate(cols, axis=1)

        o_ref[0] = y.astype(o_ref.dtype)

    return pl.pallas_call(
        kernel,
        out_shape=jax.ShapeDtypeStruct((N, Ho, Wo, Cout), x.dtype),
        grid=(N, nh),
        in_specs=[
            pl.BlockSpec((1, H, W, Cin), lambda n, h: (n, 0, 0, 0)),
            pl.BlockSpec((9 * Cin, Cout), lambda n, h: (0, 0)),
            pl.BlockSpec((1, Cout), lambda n, h: (0, 0)),
        ],
        out_specs=pl.BlockSpec((1, THo, Wo, Cout), lambda n, h: (n, h, 0, 0)),
        scratch_shapes=[
            pltpu.VMEM((H + 2, W + 2, Cin), jnp.bfloat16),   # padded image (halo)
            pltpu.VMEM((TH * W, 9 * Cin), jnp.bfloat16),     # im2col row tile
        ],
        compiler_params=pltpu.CompilerParams(
            dimension_semantics=("parallel", "arbitrary"),
            vmem_limit_bytes=_VMEM_LIMIT),
    )(x, w9, b)


def _pick_tk(K, cap=2048):
    """Largest multiple of 128 dividing K, capped (K-tile for weight streaming)."""
    t = min(cap, K)
    t -= t % 128
    while t >= 128:
        if K % t == 0:
            return t
        t -= 128
    return K


def linear(x, w, b, apply_relu, tm=1024):
    """x @ w + b (+ ReLU).  bf16 weight streaming, f32 VMEM accumulator.

    Grid = (M tiles ["parallel" -> v7x megacore], K tiles [reduction, last]).
    """
    N, K = x.shape
    _, M = w.shape
    tk = _pick_tk(K)
    if M % tm != 0:
        tm = M
    nm, nk = M // tm, K // tk

    def kernel(x_ref, w_ref, b_ref, o_ref, acc_ref):
        k = pl.program_id(1)

        @pl.when(k == 0)
        def _():
            acc_ref[...] = jnp.zeros_like(acc_ref)

        acc_ref[...] += jnp.dot(x_ref[...].astype(jnp.bfloat16), w_ref[...],
                                preferred_element_type=jnp.float32)

        @pl.when(k == nk - 1)
        def _():
            r = acc_ref[...] + b_ref[...]
            if apply_relu:
                r = jnp.maximum(r, 0.0)
            o_ref[...] = r.astype(o_ref.dtype)

    return pl.pallas_call(
        kernel,
        out_shape=jax.ShapeDtypeStruct((N, M), x.dtype),
        grid=(nm, nk),
        in_specs=[
            pl.BlockSpec((N, tk), lambda m, k: (0, k)),
            pl.BlockSpec((tk, tm), lambda m, k: (k, m)),
            pl.BlockSpec((1, tm), lambda m, k: (0, m)),
        ],
        out_specs=pl.BlockSpec((N, tm), lambda m, k: (0, m)),
        scratch_shapes=[pltpu.VMEM((N, tm), jnp.float32)],
        compiler_params=pltpu.CompilerParams(
            dimension_semantics=("parallel", "arbitrary"),
            vmem_limit_bytes=_VMEM_LIMIT),
    )(x, w, b)


# ------------------------------ JAX glue ops --------------------------------

def adaptive_avg_pool2d(x, out_hw=7):
    """Exact nn.AdaptiveAvgPool2d((7,7)) via per-axis pooling matrices
    (torch start/end index formula).  Tiny op -> plain-JAX glue."""
    N, H, W, C = x.shape

    def pool_mat(insz, outsz):
        m = np.zeros((outsz, insz), np.float32)
        for i in range(outsz):
            s = (i * insz) // outsz
            e = -(-((i + 1) * insz) // outsz)  # ceil
            m[i, s:e] = 1.0 / (e - s)
        return jnp.asarray(m)

    Mh = pool_mat(H, out_hw)
    Mw = pool_mat(W, out_hw)
    return jnp.einsum('nhwc,ph,qw->npqc', x, Mh, Mw)


def init_params(key):
    """Deterministic synthetic parameters with VGG16 shapes (He init).
    Conv weights are stored in (9*Cin, Cout) im2col layout; all weights are
    bf16 (f32 accumulation in the kernels), biases stay f32."""
    params = {'convs': [], 'fcs': []}
    cin = 3
    for v in VGG16_CFG:
        if v == 'M':
            continue
        key, wk = jax.random.split(key)
        std = (2.0 / (cin * 9)) ** 0.5
        w = jax.random.normal(wk, (3, 3, cin, v), jnp.float32) * std
        w9 = w.reshape(9 * cin, v).astype(jnp.bfloat16)
        b = jnp.zeros((1, v), jnp.float32)
        params['convs'].append((w9, b))
        cin = v
    for fin, fout in [(512 * 7 * 7, 4096), (4096, 4096)]:
        key, wk = jax.random.split(key)
        std = (2.0 / fin) ** 0.5
        w = (jax.random.normal(wk, (fin, fout), jnp.float32) * std
             ).astype(jnp.bfloat16)
        b = jnp.zeros((1, fout), jnp.float32)
        params['fcs'].append((w, b))
    return params


def feature_extractor_vgg(x_nchw, params):
    """Forward pass of FeatureExtractorVGG (features -> avgpool -> flatten ->
    classifier[:-1]).  Input is PyTorch NCHW; output is (N, 4096)."""
    x = jnp.transpose(x_nchw, (0, 2, 3, 1))  # NCHW -> NHWC
    ci, i = 0, 0
    while i < len(VGG16_CFG):
        pool = i + 1 < len(VGG16_CFG) and VGG16_CFG[i + 1] == 'M'
        w9, b = params['convs'][ci]
        x = conv3x3_relu(x, w9, b, pool=pool)   # maxpool fused when next is 'M'
        ci += 1
        i += 2 if pool else 1
    x = adaptive_avg_pool2d(x, 7)                       # (N, 7, 7, 512)
    x = jnp.transpose(x, (0, 3, 1, 2))                  # back to NCHW
    x = x.reshape(x.shape[0], -1)                       # torch.flatten(x, 1)
    # classifier[:-1] = Linear(25088,4096), ReLU, Dropout, Linear(4096,4096),
    #                   ReLU, Dropout
    # TODO(synk): Dropout is identity in eval mode; training-mode dropout RNG
    # is not implemented.
    x = linear(x, *params['fcs'][0], apply_relu=True)
    x = linear(x, *params['fcs'][1], apply_relu=True)
    return x


# --------------------------------- main -------------------------------------

if __name__ == "__main__":
    key = jax.random.PRNGKey(0)
    pkey, xkey = jax.random.split(key)
    params = init_params(pkey)
    # Small input consistent with the module (3-channel image); 32x32 spatial
    # keeps the conv/pool stack tiny while the classifier still sees
    # 512*7*7 = 25088 features after the adaptive average pool.
    x = jax.random.normal(xkey, (2, 3, 32, 32), jnp.float32)
    out = feature_extractor_vgg(x, params)
    out = jax.block_until_ready(out)
    assert out.shape == (2, 4096), out.shape
    assert bool(jnp.all(jnp.isfinite(out)))
    print("KERNEL_OK")
</pallas_src>

<mosaic_0001>
module attributes {stable_mosaic.version = 11 : i64} {
  func.func @kernel(%arg0: i32, %arg1: i32, %arg2: memref<1x32x32x3xf32, #tpu.memory_space<vmem>>, %arg3: memref<27x64xbf16, #tpu.memory_space<vmem>>, %arg4: memref<1x64xf32, #tpu.memory_space<vmem>>, %arg5: memref<1x8x32x64xf32, #tpu.memory_space<vmem>>, %arg6: memref<34x34x3xbf16, #tpu.memory_space<vmem>>, %arg7: memref<256x27xbf16, #tpu.memory_space<vmem>>) attributes {dimension_semantics = [#tpu.dimension_semantics<parallel>, #tpu.dimension_semantics<arbitrary>], iteration_bounds = array<i64: 2, 4>, scalar_prefetch = 0 : i64, scratch_operands = 2 : i64, tpu.core_type = #tpu.core_type<tc>, window_params = [{transform_indices = @transform_0, window_bounds = array<i64: 1, 32, 32, 3>}, {pipeline_mode = #tpu.pipeline_mode<synchronous>, transform_indices = @transform_1, window_bounds = array<i64: 27, 64>}, {pipeline_mode = #tpu.pipeline_mode<synchronous>, transform_indices = @transform_2, window_bounds = array<i64: 1, 64>}, {transform_indices = @transform_3, window_bounds = array<i64: 1, 8, 32, 64>}]} {
    %c0_i32 = arith.constant 0 : i32
    %0 = arith.cmpi eq, %arg1, %c0_i32 : i32
    %1 = arith.extui %0 : i1 to i32
    %c0_i32_0 = arith.constant 0 : i32
    %2 = arith.cmpi ne, %1, %c0_i32_0 : i32
    scf.if %2 {
      %cst_44 = arith.constant 0.000000e+00 : bf16
      %61 = vector.broadcast %cst_44 : bf16 to vector<34x34x3xbf16>
      %c0_45 = arith.constant 0 : index
      %c0_46 = arith.constant 0 : index
      %c0_47 = arith.constant 0 : index
      %62 = vector.load %arg6[%c0_45, %c0_46, %c0_47] : memref<34x34x3xbf16, #tpu.memory_space<vmem>>, vector<34x34x3xbf16>
      tpu.vector_store %arg6[%c0_45, %c0_46, %c0_47], %61 {strides = array<i32>} : memref<34x34x3xbf16, #tpu.memory_space<vmem>>, vector<34x34x3xbf16>,
      %c0_48 = arith.constant 0 : index
      %c0_49 = arith.constant 0 : index
      %c0_50 = arith.constant 0 : index
      %c0_51 = arith.constant 0 : index
      %63 = vector.load %arg2[%c0_48, %c0_49, %c0_50, %c0_51] : memref<1x32x32x3xf32, #tpu.memory_space<vmem>>, vector<1x32x32x3xf32>
      %64 = vector.shape_cast %63 : vector<1x32x32x3xf32> to vector<32x32x3xf32>
      %65 = arith.truncf %64 : vector<32x32x3xf32> to vector<32x32x3xbf16>
      %c1_52 = arith.constant 1 : index
      %c1_53 = arith.constant 1 : index
      %c0_54 = arith.constant 0 : index
      %66 = vector.load %arg6[%c1_52, %c1_53, %c0_54] : memref<34x34x3xbf16, #tpu.memory_space<vmem>>, vector<32x32x3xbf16>
      tpu.vector_store %arg6[%c1_52, %c1_53, %c0_54], %65 {strides = array<i32>} : memref<34x34x3xbf16, #tpu.memory_space<vmem>>, vector<32x32x3xbf16>,
    } else {
    }
    %c8_i32 = arith.constant 8 : i32
    %3 = arith.muli %arg1, %c8_i32 : i32
    %c0_i32_1 = arith.constant 0 : i32
    %4 = arith.addi %3, %c0_i32_1 : i32
    %5 = arith.index_cast %4 : i32 to index
    %c0 = arith.constant 0 : index
    %c0_2 = arith.constant 0 : index
    %6 = vector.load %arg6[%5, %c0, %c0_2] : memref<34x34x3xbf16, #tpu.memory_space<vmem>>, vector<8x32x3xbf16>
    %7 = vector.shape_cast %6 : vector<8x32x3xbf16> to vector<256x3xbf16>
    %c0_3 = arith.constant 0 : index
    %c0_4 = arith.constant 0 : index
    %8 = vector.load %arg7[%c0_3, %c0_4] : memref<256x27xbf16, #tpu.memory_space<vmem>>, vector<256x3xbf16>
    tpu.vector_store %arg7[%c0_3, %c0_4], %7 {strides = array<i32>} : memref<256x27xbf16, #tpu.memory_space<vmem>>, vector<256x3xbf16>,
    %c0_i32_5 = arith.constant 0 : i32
    %9 = arith.addi %3, %c0_i32_5 : i32
    %10 = arith.index_cast %9 : i32 to index
    %c1 = arith.constant 1 : index
    %c0_6 = arith.constant 0 : index
    %11 = vector.load %arg6[%10, %c1, %c0_6] : memref<34x34x3xbf16, #tpu.memory_space<vmem>>, vector<8x32x3xbf16>
    %12 = vector.shape_cast %11 : vector<8x32x3xbf16> to vector<256x3xbf16>
    %c0_7 = arith.constant 0 : index
    %c3 = arith.constant 3 : index
    %13 = vector.load %arg7[%c0_7, %c3] : memref<256x27xbf16, #tpu.memory_space<vmem>>, vector<256x3xbf16>
    tpu.vector_store %arg7[%c0_7, %c3], %12 {strides = array<i32>} : memref<256x27xbf16, #tpu.memory_space<vmem>>, vector<256x3xbf16>,
    %c0_i32_8 = arith.constant 0 : i32
    %14 = arith.addi %3, %c0_i32_8 : i32
    %15 = arith.index_cast %14 : i32 to index
    %c2 = arith.constant 2 : index
    %c0_9 = arith.constant 0 : index
    %16 = vector.load %arg6[%15, %c2, %c0_9] : memref<34x34x3xbf16, #tpu.memory_space<vmem>>, vector<8x32x3xbf16>
    %17 = vector.shape_cast %16 : vector<8x32x3xbf16> to vector<256x3xbf16>
    %c0_10 = arith.constant 0 : index
    %c6 = arith.constant 6 : index
    %18 = vector.load %arg7[%c0_10, %c6] : memref<256x27xbf16, #tpu.memory_space<vmem>>, vector<256x3xbf16>
    tpu.vector_store %arg7[%c0_10, %c6], %17 {strides = array<i32>} : memref<256x27xbf16, #tpu.memory_space<vmem>>, vector<256x3xbf16>,
    %c1_i32 = arith.constant 1 : i32
    %19 = arith.addi %3, %c1_i32 : i32
    %20 = arith.index_cast %19 : i32 to index
    %c0_11 = arith.constant 0 : index
    %c0_12 = arith.constant 0 : index
    %21 = vector.load %arg6[%20, %c0_11, %c0_12] : memref<34x34x3xbf16, #tpu.memory_space<vmem>>, vector<8x32x3xbf16>
    %22 = vector.shape_cast %21 : vector<8x32x3xbf16> to vector<256x3xbf16>
    %c0_13 = arith.constant 0 : index
    %c9 = arith.constant 9 : index
    %23 = vector.load %arg7[%c0_13, %c9] : memref<256x27xbf16, #tpu.memory_space<vmem>>, vector<256x3xbf16>
    tpu.vector_store %arg7[%c0_13, %c9], %22 {strides = array<i32>} : memref<256x27xbf16, #tpu.memory_space<vmem>>, vector<256x3xbf16>,
    %c1_i32_14 = arith.constant 1 : i32
    %24 = arith.addi %3, %c1_i32_14 : i32
    %25 = arith.index_cast %24 : i32 to index
    %c1_15 = arith.constant 1 : index
    %c0_16 = arith.constant 0 : index
    %26 = vector.load %arg6[%25, %c1_15, %c0_16] : memref<34x34x3xbf16, #tpu.memory_space<vmem>>, vector<8x32x3xbf16>
    %27 = vector.shape_cast %26 : vector<8x32x3xbf16> to vector<256x3xbf16>
    %c0_17 = arith.constant 0 : index
    %c12 = arith.constant 12 : index
    %28 = vector.load %arg7[%c0_17, %c12] : memref<256x27xbf16, #tpu.memory_space<vmem>>, vector<256x3xbf16>
    tpu.vector_store %arg7[%c0_17, %c12], %27 {strides = array<i32>} : memref<256x27xbf16, #tpu.memory_space<vmem>>, vector<256x3xbf16>,
    %c1_i32_18 = arith.constant 1 : i32
    %29 = arith.addi %3, %c1_i32_18 : i32
    %30 = arith.index_cast %29 : i32 to index
    %c2_19 = arith.constant 2 : index
    %c0_20 = arith.constant 0 : index
    %31 = vector.load %arg6[%30, %c2_19, %c0_20] : memref<34x34x3xbf16, #tpu.memory_space<vmem>>, vector<8x32x3xbf16>
    %32 = vector.shape_cast %31 : vector<8x32x3xbf16> to vector<256x3xbf16>
    %c0_21 = arith.constant 0 : index
    %c15 = arith.constant 15 : index
    %33 = vector.load %arg7[%c0_21, %c15] : memref<256x27xbf16, #tpu.memory_space<vmem>>, vector<256x3xbf16>
    tpu.vector_store %arg7[%c0_21, %c15], %32 {strides = array<i32>} : memref<256x27xbf16, #tpu.memory_space<vmem>>, vector<256x3xbf16>,
    %c2_i32 = arith.constant 2 : i32
    %34 = arith.addi %3, %c2_i32 : i32
    %35 = arith.index_cast %34 : i32 to index
    %c0_22 = arith.constant 0 : index
    %c0_23 = arith.constant 0 : index
    %36 = vector.load %arg6[%35, %c0_22, %c0_23] : memref<34x34x3xbf16, #tpu.memory_space<vmem>>, vector<8x32x3xbf16>
    %37 = vector.shape_cast %36 : vector<8x32x3xbf16> to vector<256x3xbf16>
    %c0_24 = arith.constant 0 : index
    %c18 = arith.constant 18 : index
    %38 = vector.load %arg7[%c0_24, %c18] : memref<256x27xbf16, #tpu.memory_space<vmem>>, vector<256x3xbf16>
    tpu.vector_store %arg7[%c0_24, %c18], %37 {strides = array<i32>} : memref<256x27xbf16, #tpu.memory_space<vmem>>, vector<256x3xbf16>,
    %c2_i32_25 = arith.constant 2 : i32
    %39 = arith.addi %3, %c2_i32_25 : i32
    %40 = arith.index_cast %39 : i32 to index
    %c1_26 = arith.constant 1 : index
    %c0_27 = arith.constant 0 : index
    %41 = vector.load %arg6[%40, %c1_26, %c0_27] : memref<34x34x3xbf16, #tpu.memory_space<vmem>>, vector<8x32x3xbf16>
    %42 = vector.shape_cast %41 : vector<8x32x3xbf16> to vector<256x3xbf16>
    %c0_28 = arith.constant 0 : index
    %c21 = arith.constant 21 : index
    %43 = vector.load %arg7[%c0_28, %c21] : memref<256x27xbf16, #tpu.memory_space<vmem>>, vector<256x3xbf16>
    tpu.vector_store %arg7[%c0_28, %c21], %42 {strides = array<i32>} : memref<256x27xbf16, #tpu.memory_space<vmem>>, vector<256x3xbf16>,
    %c2_i32_29 = arith.constant 2 : i32
    %44 = arith.addi %3, %c2_i32_29 : i32
    %45 = arith.index_cast %44 : i32 to index
    %c2_30 = arith.constant 2 : index
    %c0_31 = arith.constant 0 : index
    %46 = vector.load %arg6[%45, %c2_30, %c0_31] : memref<34x34x3xbf16, #tpu.memory_space<vmem>>, vector<8x32x3xbf16>
    %47 = vector.shape_cast %46 : vector<8x32x3xbf16> to vector<256x3xbf16>
    %c0_32 = arith.constant 0 : index
    %c24 = arith.constant 24 : index
    %48 = vector.load %arg7[%c0_32, %c24] : memref<256x27xbf16, #tpu.memory_space<vmem>>, vector<256x3xbf16>
    tpu.vector_store %arg7[%c0_32, %c24], %47 {strides = array<i32>} : memref<256x27xbf16, #tpu.memory_space<vmem>>, vector<256x3xbf16>,
    %c0_33 = arith.constant 0 : index
    %c0_34 = arith.constant 0 : index
    %49 = vector.load %arg7[%c0_33, %c0_34] : memref<256x27xbf16, #tpu.memory_space<vmem>>, vector<256x27xbf16>
    %c0_35 = arith.constant 0 : index
    %c0_36 = arith.constant 0 : index
    %50 = vector.load %arg3[%c0_35, %c0_36] : memref<27x64xbf16, #tpu.memory_space<vmem>>, vector<27x64xbf16>
    %cst = arith.constant dense<0.000000e+00> : vector<256x64xf32>
    %51 = tpu.matmul %49, %50, %cst {dimension_numbers = #tpu.dot_dimension_numbers<[1], [0], [0], [1], [0, 0, 1, 1], [], []>} : vector<256x27xbf16>, vector<27x64xbf16>, vector<256x64xf32> -> vector<256x64xf32>
    %c0_37 = arith.constant 0 : index
    %c0_38 = arith.constant 0 : index
    %52 = vector.load %arg4[%c0_37, %c0_38] : memref<1x64xf32, #tpu.memory_space<vmem>>, vector<1x64xf32>
    %53 = vector.broadcast %52 : vector<1x64xf32> to vector<256x64xf32>
    %54 = arith.addf %51, %53 : vector<256x64xf32>
    %cst_39 = arith.constant 0.000000e+00 : f32
    %55 = vector.broadcast %cst_39 : f32 to vector<256x64xf32>
    %56 = arith.maximumf %54, %55 : vector<256x64xf32>
    %57 = vector.shape_cast %56 : vector<256x64xf32> to vector<8x32x64xf32>
    %c0_40 = arith.constant 0 : index
    %c0_41 = arith.constant 0 : index
    %c0_42 = arith.constant 0 : index
    %c0_43 = arith.constant 0 : index
    %58 = vector.load %arg5[%c0_40, %c0_41, %c0_42, %c0_43] : memref<1x8x32x64xf32, #tpu.memory_space<vmem>>, vector<1x8x32x64xf32>
    %59 = vector.shape_cast %58 : vector<1x8x32x64xf32> to vector<8x32x64xf32>
    %60 = vector.shape_cast %57 : vector<8x32x64xf32> to vector<1x8x32x64xf32>
    tpu.vector_store %arg5[%c0_40, %c0_41, %c0_42, %c0_43], %60 {strides = array<i32>} : memref<1x8x32x64xf32, #tpu.memory_space<vmem>>, vector<1x8x32x64xf32>,
    return
  }
  func.func @transform_0(%arg0: i32, %arg1: i32) -> (i32, i32, i32, i32) {
    %c0_i32 = arith.constant 0 : i32
    %c0_i32_0 = arith.constant 0 : i32
    %c0_i32_1 = arith.constant 0 : i32
    %c0_i32_2 = arith.constant 0 : i32
    return %arg0, %c0_i32, %c0_i32_0, %c0_i32_1 : i32, i32, i32, i32
  }
  func.func @transform_1(%arg0: i32, %arg1: i32) -> (i32, i32) {
    %c0_i32 = arith.constant 0 : i32
    %c0_i32_0 = arith.constant 0 : i32
    %c0_i32_1 = arith.constant 0 : i32
    return %c0_i32, %c0_i32_0 : i32, i32
  }
  func.func @transform_2(%arg0: i32, %arg1: i32) -> (i32, i32) {
    %c0_i32 = arith.constant 0 : i32
    %c0_i32_0 = arith.constant 0 : i32
    %c0_i32_1 = arith.constant 0 : i32
    return %c0_i32, %c0_i32_0 : i32, i32
  }
  func.func @transform_3(%arg0: i32, %arg1: i32) -> (i32, i32, i32, i32) {
    %c0_i32 = arith.constant 0 : i32
    %c0_i32_0 = arith.constant 0 : i32
    %c0_i32_1 = arith.constant 0 : i32
    return %arg0, %arg1, %c0_i32, %c0_i32_0 : i32, i32, i32, i32
  }
}

</mosaic_0001>

<llo_original>
// kernel: tpu_custom_call.1
$region0: #{tpu_custom_call.1}
  #allocation0 [shape = 'u32[]', space=smem, size = 0x4, offset = 0x4, fixed_abs, tag = 'smem constant byte address 0x4 - core index']
  #allocation1 [shape = 'u32[144,128]{1,0:T(1,128)}', space=vmem, size = 0x12000, scoped, tag = 'internal scratch']
  #allocation2 [shape = 'bf16[34,34,3]{2,1,0:T(8,128)(2,1)}', space=vmem, size = 0x55000, scoped, tag = 'scratch operand']
  #allocation3 [shape = 'bf16[256,27]{1,0:T(16,128)(2,1)}', space=vmem, size = 0x10000, scoped, tag = 'scratch operand']
  %s0 = inlined_call_operand.vmem [shape: f32[2,32,32,3], index: 0, kind: input, shape index: {}]
  %s1 = inlined_call_operand.vmem [shape: bf16[27,64], index: 1, kind: input, shape index: {}]
  %s2 = inlined_call_operand.vmem [shape: f32[1,64], index: 2, kind: input, shape index: {}]
  %s3 = inlined_call_operand.hbm [shape: f32[2,32,32,64], index: 3, kind: output, shape index: {}]
  %s4 = sld [smem:[#allocation0]]
  $region49: #{tpu_custom_call.1} parent=0
    _
  %s6 = ssub.s32 1, %s4
  %s7 = scalar_select 0, %s6, %s4
  $region1: #{tpu_custom_call.1} parent=0
    #allocation4 [shape = 'u8[262144]{0}', space=vmem, size = 0x40000, scoped, tag = 'output window, operand 0']
    #allocation5 [shape = 's32[2]{0}', space=sflag, size = 0x8, scoped, tag = 'scoped memory for tpu_custom_call.1']
    %8 = vsyncpa [#allocation5], 0
    %s9 = scalar_lea.sflag [#allocation5], 1
    %10 = vsyncpa %s9, 0
    loop: start=0, step=1, limit=10
    $region2: #{tpu_custom_call.1} parent=1 // loop_pre_header
      _
    $region3: #{tpu_custom_call.1} parent=1 // loop_header
      %s12 = sphi 0, %s16
      %p13 = scmp.ge.s32.totalorder %s12, 10
      %s19 = sphi 0, %s31
      %s20 = sphi 0, %s27
      %s21 = sphi 0, %s19
      %s22 = sphi 0, %s20
      %s23 = sphi 0, %s21
      %s24 = sphi 0, %s22
      %s34 = sphi 0, %s36
      %s37 = sphi 0, %s34
      %s38 = sphi 0, %s37
      %s54 = sphi 0, %s38
      %s58 = sphi 0, %s58
      %s60 = sphi 0, %s58
      %s61 = sphi 0, %s60
      %s75 = sphi 0, %s61
      %s79 = sphi 0, %s79
      %s81 = sphi 0, %s79
      %s82 = sphi 0, %s81
      %s96 = sphi 0, %s82
      %s104 = sphi 0, %s106
      %s107 = sphi 0, %s104
      %s108 = sphi 0, %s107
      %s124 = sphi 0, %s108
    $region4: #{tpu_custom_call.1} parent=1 // loop_header_branch
      %15 = sbr.rel (%p13) target = $region8
    $region5: #{tpu_custom_call.1} parent=1 // loop_body
      %s17 = ssub.s32 %s12, 1
      %s18 = ssub.s32 %s12, 2
      %s25 = sadd.s32 1, %s20
      %p26 = scmp.ge.s32.totalorder %s25, 4
      %s27 = scalar_select %p26, 0, %s25
      %s28 = sadd.s32 1, %s19
      %s29 = scalar_select %p26, %s28, %s19
      %p30 = scmp.ge.s32.totalorder %s29, 2
      %s31 = scalar_select %p30, 0, %s29
      %s32 = ssub.s32 %s19, %s31
      %p33 = scmp.eq.s32.totalorder %s32, 0
      %s35 = sadd.s32 %s34, 1
      %s36 = scalar_select %p33, %s34, %s35
      %p39 = pneg %p33
      %p40 = scmp.eq.s32.totalorder %s12, 7
      %p41 = por %p39, %p40
      %p42 = scmp.ne.s32.totalorder %s34, %s37
      %p43 = scmp.eq.s32.totalorder %s12, 0
      %p44 = por %p42, %p43
      %p45 = scmp.ne.s32.totalorder %s34, %s37
      %p46 = scmp.eq.s32.totalorder %s17, 7
      %p47 = por %p45, %p46
      %p48 = scmp.ne.s32.totalorder %s37, %s38
      %p49 = scmp.eq.s32.totalorder %s17, 0
      %p50 = por %p48, %p49
      %p51 = scmp.ne.s32.totalorder %s37, %s38
      %p52 = scmp.eq.s32.totalorder %s18, 7
      %p53 = por %p51, %p52
      %p55 = scmp.ne.s32.totalorder %s38, %s54
      %p56 = scmp.eq.s32.totalorder %s18, 0
      %p57 = por %p55, %p56
      %s59 = sadd.s32 %s58, 1
      %p62 = scmp.eq.s32.totalorder %s12, 7
      %p63 = scmp.ne.s32.totalorder %s58, %s60
      %p64 = scmp.eq.s32.totalorder %s12, 0
      %p65 = por %p63, %p64
      %p66 = scmp.ne.s32.totalorder %s58, %s60
      %p67 = scmp.eq.s32.totalorder %s17, 7
      %p68 = por %p66, %p67
      %p69 = scmp.ne.s32.totalorder %s60, %s61
      %p70 = scmp.eq.s32.totalorder %s17, 0
      %p71 = por %p69, %p70
      %p72 = scmp.ne.s32.totalorder %s60, %s61
      %p73 = scmp.eq.s32.totalorder %s18, 7
      %p74 = por %p72, %p73
      %p76 = scmp.ne.s32.totalorder %s61, %s75
      %p77 = scmp.eq.s32.totalorder %s18, 0
      %p78 = por %p76, %p77
      %s80 = sadd.s32 %s79, 1
      %p83 = scmp.eq.s32.totalorder %s12, 7
      %p84 = scmp.ne.s32.totalorder %s79, %s81
      %p85 = scmp.eq.s32.totalorder %s12, 0
      %p86 = por %p84, %p85
      %p87 = scmp.ne.s32.totalorder %s79, %s81
      %p88 = scmp.eq.s32.totalorder %s17, 7
      %p89 = por %p87, %p88
      %p90 = scmp.ne.s32.totalorder %s81, %s82
      %p91 = scmp.eq.s32.totalorder %s17, 0
      %p92 = por %p90, %p91
      %p93 = scmp.ne.s32.totalorder %s81, %s82
      %p94 = scmp.eq.s32.totalorder %s18, 7
      %p95 = por %p93, %p94
      %p97 = scmp.ne.s32.totalorder %s82, %s96
      %p98 = scmp.eq.s32.totalorder %s18, 0
      %p99 = por %p97, %p98
      %s100 = ssub.s32 %s19, %s31
      %s101 = ssub.s32 %s20, %s27
      %s102 = sor.u32 %s100, %s101
      %p103 = scmp.eq.s32.totalorder %s102, 0
      %s105 = sadd.s32 %s104, 1
      %s106 = scalar_select %p103, %s104, %s105
      %p109 = pneg %p103
      %p110 = scmp.eq.s32.totalorder %s12, 7
      %p111 = por %p109, %p110
      %p112 = scmp.ne.s32.totalorder %s104, %s107
      %p113 = scmp.eq.s32.totalorder %s12, 0
      %p114 = por %p112, %p113
      %p115 = scmp.ne.s32.totalorder %s104, %s107
      %p116 = scmp.eq.s32.totalorder %s17, 7
      %p117 = por %p115, %p116
      %p118 = scmp.ne.s32.totalorder %s107, %s108
      %p119 = scmp.eq.s32.totalorder %s17, 0
      %p120 = por %p118, %p119
      %p121 = scmp.ne.s32.totalorder %s107, %s108
      %p122 = scmp.eq.s32.totalorder %s18, 7
      %p123 = por %p121, %p122
      %p125 = scmp.ne.s32.totalorder %s108, %s124
      %p126 = scmp.eq.s32.totalorder %s18, 0
      %p127 = por %p125, %p126
      %p128 = scmp.le.s32.totalorder 1, %s12
      %p129 = scmp.lt.s32.totalorder %s12, 9
      %p130 = pnand %p128, %p129
      %p131 = pneg %p130
      // Predicated region
      $region9: #{tpu_custom_call.1} parent=5 // pred_check
        _
      $region10: #{tpu_custom_call.1} parent=5 // pred_check_branch
        %133 = sbr.rel (%p130) target = $region12
      $region11: #{tpu_custom_call.1} parent=5 // pred_region
        %s134 = ssub.s32 %s12, 1
        // Predicated region
        $region13: #{tpu_custom_call.1} parent=11 // pred_check
          %p135 = pneg %p71
        $region14: #{tpu_custom_call.1} parent=11 // pred_check_branch
          %137 = sbr.rel (%p135) target = $region16
        $region15: #{tpu_custom_call.1} parent=11 // pred_region
          _
        $region16: #{tpu_custom_call.1} parent=11 // pred_fallthru
          _
        // Predicated region
        $region17: #{tpu_custom_call.1} parent=11 // pred_check
          %p138 = pneg %p92
        $region18: #{tpu_custom_call.1} parent=11 // pred_check_branch
          %140 = sbr.rel (%p138) target = $region20
        $region19: #{tpu_custom_call.1} parent=11 // pred_region
          _
        $region20: #{tpu_custom_call.1} parent=11 // pred_fallthru
          _
      $region12: #{tpu_custom_call.1} parent=5 // pred_fallthru
        _
      %p141 = scmp.lt.s32.totalorder %s12, 8
      // Predicated region
      $region21: #{tpu_custom_call.1} parent=5 // pred_check
        %p142 = pneg %p141
      $region22: #{tpu_custom_call.1} parent=5 // pred_check_branch
        %144 = sbr.rel (%p142) target = $region24
      $region23: #{tpu_custom_call.1} parent=5 // pred_region
        // Predicated region
        $region25: #{tpu_custom_call.1} parent=23 // pred_check
          %p145 = pneg %p44
        $region26: #{tpu_custom_call.1} parent=23 // pred_check_branch
          %147 = sbr.rel (%p145) target = $region28
        $region27: #{tpu_custom_call.1} parent=23 // pred_region
          %p148 = scmp.lt.s32.totalorder %s19, 1
          %s149 = scalar_select %p148, %s19, 1
          %s150 = smul.addr %s149, 128
          %s151 = smul.addr %s150, 8
          %s152 = scalar_lea.vmem %s0, %s151
        $region28: #{tpu_custom_call.1} parent=23 // pred_fallthru
          _
      $region24: #{tpu_custom_call.1} parent=5 // pred_fallthru
        _
      %p153 = scmp.le.s32.totalorder 1, %s12
      %p154 = scmp.lt.s32.totalorder %s12, 9
      %p155 = pnand %p153, %p154
      %p156 = pneg %p155
      // Predicated region
      $region29: #{tpu_custom_call.1} parent=5 // pred_check
        _
      $region30: #{tpu_custom_call.1} parent=5 // pred_check_branch
        %158 = sbr.rel (%p155) target = $region32
      $region31: #{tpu_custom_call.1} parent=5 // pred_region
        %s159 = ssub.s32 %s12, 1
        %p160 = scmp.lt.s32.totalorder %s21, 1
        %s161 = scalar_select %p160, %s21, 1
        %s162 = smul.addr %s161, 128
        %s163 = smul.addr %s162, 8
        %s164 = scalar_lea.vmem %s0, %s163
        %p165 = pneg %p50
        %p166 = pneg %p47
        %p167 = pneg %p71
        %p168 = pneg %p68
        %p169 = pneg %p92
        %p170 = pneg %p89
        %p171 = pneg %p120
        %p172 = pneg %p117
        %s173 = sand.u32 %s107, 1
        %s174 = scalar_lea.sflag [#allocation5], %s173
        %s175 = sand.u32 %s107, 1
        %s176 = smul.addr %s175, 256
        %s177 = scalar_lea.vmem [#allocation4], %s176
        %p178 = scmp.lt.s32.totalorder %s21, 1
        %s179 = scalar_select %p178, %s21, 1
        %s180 = smul.addr %s179, 128
        %s181 = smul.addr %s180, 8
        %s182 = scalar_lea.vmem %s0, %s181
        %s183 = smul.u32 8, %s22
        %p185 = scmp.eq.s32.totalorder %s22, 0
        // Predicated region
        $region33: #{tpu_custom_call.1} parent=31 // pred_check
          %p186 = pneg %p185
        $region34: #{tpu_custom_call.1} parent=31 // pred_check_branch
          %188 = sbr.rel (%p186) target = $region36
        $region35: #{tpu_custom_call.1} parent=31 // pred_region
          %vm189 = vcmask 19456
          %190 = vst.msk [vmem:[#allocation2] sm:$0xf] %vm189, 0
          %191 = vst.msk [vmem:[#allocation2 + $0x4] sm:$0xf] %vm189, 0
          %192 = vst.msk [vmem:[#allocation2 + $0x8] sm:$0xf] %vm189, 0
          %193 = vst.msk [vmem:[#allocation2 + $0xc] sm:$0xf] %vm189, 0
          %vm194 = vcmask 16384
          %195 = vst.msk [vmem:[#allocation2 + $0x10] sm:$0x1] %vm194, 0
          %196 = vst.msk [vmem:[#allocation2 + $0x14] sm:$0xf] %vm189, 0
          %197 = vst.msk [vmem:[#allocation2 + $0x18] sm:$0xf] %vm189, 0
          %198 = vst.msk [vmem:[#allocation2 + $0x1c] sm:$0xf] %vm189, 0
          %199 = vst.msk [vmem:[#allocation2 + $0x20] sm:$0xf] %vm189, 0
          %200 = vst.msk [vmem:[#allocation2 + $0x24] sm:$0x1] %vm194, 0
          %201 = vst.msk [vmem:[#allocation2 + $0x28] sm:$0xf] %vm189, 0
          %202 = vst.msk [vmem:[#allocation2 + $0x2c] sm:$0xf] %vm189, 0
          %203 = vst.msk [vmem:[#allocation2 + $0x30] sm:$0xf] %vm189, 0
          %204 = vst.msk [vmem:[#allocation2 + $0x34] sm:$0xf] %vm189, 0
          %205 = vst.msk [vmem:[#allocation2 + $0x38] sm:$0x1] %vm194, 0
          %206 = vst.msk [vmem:[#allocation2 + $0x3c] sm:$0xf] %vm189, 0
          %207 = vst.msk [vmem:[#allocation2 + $0x40] sm:$0xf] %vm189, 0
          %208 = vst.msk [vmem:[#allocation2 + $0x44] sm:$0xf] %vm189, 0
          %209 = vst.msk [vmem:[#allocation2 + $0x48] sm:$0xf] %vm189, 0
          %210 = vst.msk [vmem:[#allocation2 + $0x4c] sm:$0x1] %vm194, 0
          %211 = vst.msk [vmem:[#allocation2 + $0x50] sm:$0xf] %vm189, 0
          %212 = vst.msk [vmem:[#allocation2 + $0x54] sm:$0xf] %vm189, 0
          %213 = vst.msk [vmem:[#allocation2 + $0x58] sm:$0xf] %vm189, 0
          %214 = vst.msk [vmem:[#allocation2 + $0x5c] sm:$0xf] %vm189, 0
          %215 = vst.msk [vmem:[#allocation2 + $0x60] sm:$0x1] %vm194, 0
          %216 = vst.msk [vmem:[#allocation2 + $0x64] sm:$0xf] %vm189, 0
          %217 = vst.msk [vmem:[#allocation2 + $0x68] sm:$0xf] %vm189, 0
          %218 = vst.msk [vmem:[#allocation2 + $0x6c] sm:$0xf] %vm189, 0
          %219 = vst.msk [vmem:[#allocation2 + $0x70] sm:$0xf] %vm189, 0
          %220 = vst.msk [vmem:[#allocation2 + $0x74] sm:$0x1] %vm194, 0
          %221 = vst.msk [vmem:[#allocation2 + $0x78] sm:$0xf] %vm189, 0
          %222 = vst.msk [vmem:[#allocation2 + $0x7c] sm:$0xf] %vm189, 0
          %223 = vst.msk [vmem:[#allocation2 + $0x80] sm:$0xf] %vm189, 0
          %224 = vst.msk [vmem:[#allocation2 + $0x84] sm:$0xf] %vm189, 0
          %225 = vst.msk [vmem:[#allocation2 + $0x88] sm:$0x1] %vm194, 0
          %226 = vst.msk [vmem:[#allocation2 + $0x8c] sm:$0xf] %vm189, 0
          %227 = vst.msk [vmem:[#allocation2 + $0x90] sm:$0xf] %vm189, 0
          %228 = vst.msk [vmem:[#allocation2 + $0x94] sm:$0xf] %vm189, 0
          %229 = vst.msk [vmem:[#allocation2 + $0x98] sm:$0xf] %vm189, 0
          %230 = vst.msk [vmem:[#allocation2 + $0x9c] sm:$0x1] %vm194, 0
          %231 = vst.msk [vmem:[#allocation2 + $0xa0] sm:$0xf] %vm189, 0
          %232 = vst.msk [vmem:[#allocation2 + $0xa4] sm:$0xf] %vm189, 0
          %233 = vst.msk [vmem:[#allocation2 + $0xa8] sm:$0xf] %vm189, 0
          %234 = vst.msk [vmem:[#allocation2 + $0xac] sm:$0xf] %vm189, 0
          %235 = vst.msk [vmem:[#allocation2 + $0xb0] sm:$0x1] %vm194, 0
          %236 = vst.msk [vmem:[#allocation2 + $0xb4] sm:$0xf] %vm189, 0
          %237 = vst.msk [vmem:[#allocation2 + $0xb8] sm:$0xf] %vm189, 0
          %238 = vst.msk [vmem:[#allocation2 + $0xbc] sm:$0xf] %vm189, 0
          %239 = vst.msk [vmem:[#allocation2 + $0xc0] sm:$0xf] %vm189, 0
          %240 = vst.msk [vmem:[#allocation2 + $0xc4] sm:$0x1] %vm194, 0
          %241 = vst.msk [vmem:[#allocation2 + $0xc8] sm:$0xf] %vm189, 0
          %242 = vst.msk [vmem:[#allocation2 + $0xcc] sm:$0xf] %vm189, 0
          %243 = vst.msk [vmem:[#allocation2 + $0xd0] sm:$0xf] %vm189, 0
          %244 = vst.msk [vmem:[#allocation2 + $0xd4] sm:$0xf] %vm189, 0
          %245 = vst.msk [vmem:[#allocation2 + $0xd8] sm:$0x1] %vm194, 0
          %246 = vst.msk [vmem:[#allocation2 + $0xdc] sm:$0xf] %vm189, 0
          %247 = vst.msk [vmem:[#allocation2 + $0xe0] sm:$0xf] %vm189, 0
          %248 = vst.msk [vmem:[#allocation2 + $0xe4] sm:$0xf] %vm189, 0
          %249 = vst.msk [vmem:[#allocation2 + $0xe8] sm:$0xf] %vm189, 0
          %250 = vst.msk [vmem:[#allocation2 + $0xec] sm:$0x1] %vm194, 0
          %251 = vst.msk [vmem:[#allocation2 + $0xf0] sm:$0xf] %vm189, 0
          %252 = vst.msk [vmem:[#allocation2 + $0xf4] sm:$0xf] %vm189, 0
          %253 = vst.msk [vmem:[#allocation2 + $0xf8] sm:$0xf] %vm189, 0
          %254 = vst.msk [vmem:[#allocation2 + $0xfc] sm:$0xf] %vm189, 0
          %255 = vst.msk [vmem:[#allocation2 + $0x100] sm:$0x1] %vm194, 0
          %256 = vst.msk [vmem:[#allocation2 + $0x104] sm:$0xf] %vm189, 0
          %257 = vst.msk [vmem:[#allocation2 + $0x108] sm:$0xf] %vm189, 0
          %258 = vst.msk [vmem:[#allocation2 + $0x10c] sm:$0xf] %vm189, 0
          %259 = vst.msk [vmem:[#allocation2 + $0x110] sm:$0xf] %vm189, 0
          %260 = vst.msk [vmem:[#allocation2 + $0x114] sm:$0x1] %vm194, 0
          %261 = vst.msk [vmem:[#allocation2 + $0x118] sm:$0xf] %vm189, 0
          %262 = vst.msk [vmem:[#allocation2 + $0x11c] sm:$0xf] %vm189, 0
          %263 = vst.msk [vmem:[#allocation2 + $0x120] sm:$0xf] %vm189, 0
          %264 = vst.msk [vmem:[#allocation2 + $0x124] sm:$0xf] %vm189, 0
          %265 = vst.msk [vmem:[#allocation2 + $0x128] sm:$0x1] %vm194, 0
          %266 = vst.msk [vmem:[#allocation2 + $0x12c] sm:$0xf] %vm189, 0
          %267 = vst.msk [vmem:[#allocation2 + $0x130] sm:$0xf] %vm189, 0
          %268 = vst.msk [vmem:[#allocation2 + $0x134] sm:$0xf] %vm189, 0
          %269 = vst.msk [vmem:[#allocation2 + $0x138] sm:$0xf] %vm189, 0
          %270 = vst.msk [vmem:[#allocation2 + $0x13c] sm:$0x1] %vm194, 0
          %271 = vst.msk [vmem:[#allocation2 + $0x140] sm:$0xf] %vm189, 0
          %272 = vst.msk [vmem:[#allocation2 + $0x144] sm:$0xf] %vm189, 0
          %273 = vst.msk [vmem:[#allocation2 + $0x148] sm:$0xf] %vm189, 0
          %274 = vst.msk [vmem:[#allocation2 + $0x14c] sm:$0xf] %vm189, 0
          %275 = vst.msk [vmem:[#allocation2 + $0x150] sm:$0x1] %vm194, 0
          %276 = vst.msk [vmem:[#allocation2 + $0x154] sm:$0xf] %vm189, 0
          %277 = vst.msk [vmem:[#allocation2 + $0x158] sm:$0xf] %vm189, 0
          %278 = vst.msk [vmem:[#allocation2 + $0x15c] sm:$0xf] %vm189, 0
          %279 = vst.msk [vmem:[#allocation2 + $0x160] sm:$0xf] %vm189, 0
          %280 = vst.msk [vmem:[#allocation2 + $0x164] sm:$0x1] %vm194, 0
          %281 = vst.msk [vmem:[#allocation2 + $0x168] sm:$0xf] %vm189, 0
          %282 = vst.msk [vmem:[#allocation2 + $0x16c] sm:$0xf] %vm189, 0
          %283 = vst.msk [vmem:[#allocation2 + $0x170] sm:$0xf] %vm189, 0
          %284 = vst.msk [vmem:[#allocation2 + $0x174] sm:$0xf] %vm189, 0
          %285 = vst.msk [vmem:[#allocation2 + $0x178] sm:$0x1] %vm194, 0
          %286 = vst.msk [vmem:[#allocation2 + $0x17c] sm:$0xf] %vm189, 0
          %287 = vst.msk [vmem:[#allocation2 + $0x180] sm:$0xf] %vm189, 0
          %288 = vst.msk [vmem:[#allocation2 + $0x184] sm:$0xf] %vm189, 0
          %289 = vst.msk [vmem:[#allocation2 + $0x188] sm:$0xf] %vm189, 0
          %290 = vst.msk [vmem:[#allocation2 + $0x18c] sm:$0x1] %vm194, 0
          %291 = vst.msk [vmem:[#allocation2 + $0x190] sm:$0xf] %vm189, 0
          %292 = vst.msk [vmem:[#allocation2 + $0x194] sm:$0xf] %vm189, 0
          %293 = vst.msk [vmem:[#allocation2 + $0x198] sm:$0xf] %vm189, 0
          %294 = vst.msk [vmem:[#allocation2 + $0x19c] sm:$0xf] %vm189, 0
          %295 = vst.msk [vmem:[#allocation2 + $0x1a0] sm:$0x1] %vm194, 0
          %296 = vst.msk [vmem:[#allocation2 + $0x1a4] sm:$0xf] %vm189, 0
          %297 = vst.msk [vmem:[#allocation2 + $0x1a8] sm:$0xf] %vm189, 0
          %298 = vst.msk [vmem:[#allocation2 + $0x1ac] sm:$0xf] %vm189, 0
          %299 = vst.msk [vmem:[#allocation2 + $0x1b0] sm:$0xf] %vm189, 0
          %300 = vst.msk [vmem:[#allocation2 + $0x1b4] sm:$0x1] %vm194, 0
          %301 = vst.msk [vmem:[#allocation2 + $0x1b8] sm:$0xf] %vm189, 0
          %302 = vst.msk [vmem:[#allocation2 + $0x1bc] sm:$0xf] %vm189, 0
          %303 = vst.msk [vmem:[#allocation2 + $0x1c0] sm:$0xf] %vm189, 0
          %304 = vst.msk [vmem:[#allocation2 + $0x1c4] sm:$0xf] %vm189, 0
          %305 = vst.msk [vmem:[#allocation2 + $0x1c8] sm:$0x1] %vm194, 0
          %306 = vst.msk [vmem:[#allocation2 + $0x1cc] sm:$0xf] %vm189, 0
          %307 = vst.msk [vmem:[#allocation2 + $0x1d0] sm:$0xf] %vm189, 0
          %308 = vst.msk [vmem:[#allocation2 + $0x1d4] sm:$0xf] %vm189, 0
          %309 = vst.msk [vmem:[#allocation2 + $0x1d8] sm:$0xf] %vm189, 0
          %310 = vst.msk [vmem:[#allocation2 + $0x1dc] sm:$0x1] %vm194, 0
          %311 = vst.msk [vmem:[#allocation2 + $0x1e0] sm:$0xf] %vm189, 0
          %312 = vst.msk [vmem:[#allocation2 + $0x1e4] sm:$0xf] %vm189, 0
          %313 = vst.msk [vmem:[#allocation2 + $0x1e8] sm:$0xf] %vm189, 0
          %314 = vst.msk [vmem:[#allocation2 + $0x1ec] sm:$0xf] %vm189, 0
          %315 = vst.msk [vmem:[#allocation2 + $0x1f0] sm:$0x1] %vm194, 0
          %316 = vst.msk [vmem:[#allocation2 + $0x1f4] sm:$0xf] %vm189, 0
          %317 = vst.msk [vmem:[#allocation2 + $0x1f8] sm:$0xf] %vm189, 0
          %318 = vst.msk [vmem:[#allocation2 + $0x1fc] sm:$0xf] %vm189, 0
          %319 = vst.msk [vmem:[#allocation2 + $0x200] sm:$0xf] %vm189, 0
          %320 = vst.msk [vmem:[#allocation2 + $0x204] sm:$0x1] %vm194, 0
          %321 = vst.msk [vmem:[#allocation2 + $0x208] sm:$0xf] %vm189, 0
          %322 = vst.msk [vmem:[#allocation2 + $0x20c] sm:$0xf] %vm189, 0
          %323 = vst.msk [vmem:[#allocation2 + $0x210] sm:$0xf] %vm189, 0
          %324 = vst.msk [vmem:[#allocation2 + $0x214] sm:$0xf] %vm189, 0
          %325 = vst.msk [vmem:[#allocation2 + $0x218] sm:$0x1] %vm194, 0
          %326 = vst.msk [vmem:[#allocation2 + $0x21c] sm:$0xf] %vm189, 0
          %327 = vst.msk [vmem:[#allocation2 + $0x220] sm:$0xf] %vm189, 0
          %328 = vst.msk [vmem:[#allocation2 + $0x224] sm:$0xf] %vm189, 0
          %329 = vst.msk [vmem:[#allocation2 + $0x228] sm:$0xf] %vm189, 0
          %330 = vst.msk [vmem:[#allocation2 + $0x22c] sm:$0x1] %vm194, 0
          %331 = vst.msk [vmem:[#allocation2 + $0x230] sm:$0xf] %vm189, 0
          %332 = vst.msk [vmem:[#allocation2 + $0x234] sm:$0xf] %vm189, 0
          %333 = vst.msk [vmem:[#allocation2 + $0x238] sm:$0xf] %vm189, 0
          %334 = vst.msk [vmem:[#allocation2 + $0x23c] sm:$0xf] %vm189, 0
          %335 = vst.msk [vmem:[#allocation2 + $0x240] sm:$0x1] %vm194, 0
          %336 = vst.msk [vmem:[#allocation2 + $0x244] sm:$0xf] %vm189, 0
          %337 = vst.msk [vmem:[#allocation2 + $0x248] sm:$0xf] %vm189, 0
          %338 = vst.msk [vmem:[#allocation2 + $0x24c] sm:$0xf] %vm189, 0
          %339 = vst.msk [vmem:[#allocation2 + $0x250] sm:$0xf] %vm189, 0
          %340 = vst.msk [vmem:[#allocation2 + $0x254] sm:$0x1] %vm194, 0
          %341 = vst.msk [vmem:[#allocation2 + $0x258] sm:$0xf] %vm189, 0
          %342 = vst.msk [vmem:[#allocation2 + $0x25c] sm:$0xf] %vm189, 0
          %343 = vst.msk [vmem:[#allocation2 + $0x260] sm:$0xf] %vm189, 0
          %344 = vst.msk [vmem:[#allocation2 + $0x264] sm:$0xf] %vm189, 0
          %345 = vst.msk [vmem:[#allocation2 + $0x268] sm:$0x1] %vm194, 0
          %346 = vst.msk [vmem:[#allocation2 + $0x26c] sm:$0xf] %vm189, 0
          %347 = vst.msk [vmem:[#allocation2 + $0x270] sm:$0xf] %vm189, 0
          %348 = vst.msk [vmem:[#allocation2 + $0x274] sm:$0xf] %vm189, 0
          %349 = vst.msk [vmem:[#allocation2 + $0x278] sm:$0xf] %vm189, 0
          %350 = vst.msk [vmem:[#allocation2 + $0x27c] sm:$0x1] %vm194, 0
          %351 = vst.msk [vmem:[#allocation2 + $0x280] sm:$0xf] %vm189, 0
          %352 = vst.msk [vmem:[#allocation2 + $0x284] sm:$0xf] %vm189, 0
          %353 = vst.msk [vmem:[#allocation2 + $0x288] sm:$0xf] %vm189, 0
          %354 = vst.msk [vmem:[#allocation2 + $0x28c] sm:$0xf] %vm189, 0
          %355 = vst.msk [vmem:[#allocation2 + $0x290] sm:$0x1] %vm194, 0
          %356 = vst.msk [vmem:[#allocation2 + $0x294] sm:$0xf] %vm189, 0
          %357 = vst.msk [vmem:[#allocation2 + $0x298] sm:$0xf] %vm189, 0
          %358 = vst.msk [vmem:[#allocation2 + $0x29c] sm:$0xf] %vm189, 0
          %359 = vst.msk [vmem:[#allocation2 + $0x2a0] sm:$0xf] %vm189, 0
          %360 = vst.msk [vmem:[#allocation2 + $0x2a4] sm:$0x1] %vm194, 0
          %v361 = vld [vmem:[%s182] sm:$0xff]
          %v362 = vld [vmem:[%s182 + $0x8] sm:$0xff]
          %v363 = vld [vmem:[%s182 + $0x10] sm:$0xff]
          %v364 = vld [vmem:[%s182 + $0x18] sm:$0xff]
          %v365 = vld [vmem:[%s182 + $0x20] sm:$0xff]
          %v366 = vld [vmem:[%s182 + $0x28] sm:$0xff]
          %v367 = vld [vmem:[%s182 + $0x30] sm:$0xff]
          %v368 = vld [vmem:[%s182 + $0x38] sm:$0xff]
          %v369 = vld [vmem:[%s182 + $0x40] sm:$0xff]
          %v370 = vld [vmem:[%s182 + $0x48] sm:$0xff]
          %v371 = vld [vmem:[%s182 + $0x50] sm:$0xff]
          %v372 = vld [vmem:[%s182 + $0x58] sm:$0xff]
          %v373 = vld [vmem:[%s182 + $0x60] sm:$0xff]
          %v374 = vld [vmem:[%s182 + $0x68] sm:$0xff]
          %v375 = vld [vmem:[%s182 + $0x70] sm:$0xff]
          %v376 = vld [vmem:[%s182 + $0x78] sm:$0xff]
          %v377 = vld [vmem:[%s182 + $0x80] sm:$0xff]
          %v378 = vld [vmem:[%s182 + $0x88] sm:$0xff]
          %v379 = vld [vmem:[%s182 + $0x90] sm:$0xff]
          %v380 = vld [vmem:[%s182 + $0x98] sm:$0xff]
          %v381 = vld [vmem:[%s182 + $0xa0] sm:$0xff]
          %v382 = vld [vmem:[%s182 + $0xa8] sm:$0xff]
          %v383 = vld [vmem:[%s182 + $0xb0] sm:$0xff]
          %v384 = vld [vmem:[%s182 + $0xb8] sm:$0xff]
          %v385 = vld [vmem:[%s182 + $0xc0] sm:$0xff]
          %v386 = vld [vmem:[%s182 + $0xc8] sm:$0xff]
          %v387 = vld [vmem:[%s182 + $0xd0] sm:$0xff]
          %v388 = vld [vmem:[%s182 + $0xd8] sm:$0xff]
          %v389 = vld [vmem:[%s182 + $0xe0] sm:$0xff]
          %v390 = vld [vmem:[%s182 + $0xe8] sm:$0xff]
          %v391 = vld [vmem:[%s182 + $0xf0] sm:$0xff]
          %v392 = vld [vmem:[%s182 + $0xf8] sm:$0xff]
          %v393 = vld [vmem:[%s182 + $0x100] sm:$0xff]
          %v394 = vld [vmem:[%s182 + $0x108] sm:$0xff]
          %v395 = vld [vmem:[%s182 + $0x110] sm:$0xff]
          %v396 = vld [vmem:[%s182 + $0x118] sm:$0xff]
          %v397 = vld [vmem:[%s182 + $0x120] sm:$0xff]
          %v398 = vld [vmem:[%s182 + $0x128] sm:$0xff]
          %v399 = vld [vmem:[%s182 + $0x130] sm:$0xff]
          %v400 = vld [vmem:[%s182 + $0x138] sm:$0xff]
          %v401 = vld [vmem:[%s182 + $0x140] sm:$0xff]
          %v402 = vld [vmem:[%s182 + $0x148] sm:$0xff]
          %v403 = vld [vmem:[%s182 + $0x150] sm:$0xff]
          %v404 = vld [vmem:[%s182 + $0x158] sm:$0xff]
          %v405 = vld [vmem:[%s182 + $0x160] sm:$0xff]
          %v406 = vld [vmem:[%s182 + $0x168] sm:$0xff]
          %v407 = vld [vmem:[%s182 + $0x170] sm:$0xff]
          %v408 = vld [vmem:[%s182 + $0x178] sm:$0xff]
          %v409 = vld [vmem:[%s182 + $0x180] sm:$0xff]
          %v410 = vld [vmem:[%s182 + $0x188] sm:$0xff]
          %v411 = vld [vmem:[%s182 + $0x190] sm:$0xff]
          %v412 = vld [vmem:[%s182 + $0x198] sm:$0xff]
          %v413 = vld [vmem:[%s182 + $0x1a0] sm:$0xff]
          %v414 = vld [vmem:[%s182 + $0x1a8] sm:$0xff]
          %v415 = vld [vmem:[%s182 + $0x1b0] sm:$0xff]
          %v416 = vld [vmem:[%s182 + $0x1b8] sm:$0xff]
          %v417 = vld [vmem:[%s182 + $0x1c0] sm:$0xff]
          %v418 = vld [vmem:[%s182 + $0x1c8] sm:$0xff]
          %v419 = vld [vmem:[%s182 + $0x1d0] sm:$0xff]
          %v420 = vld [vmem:[%s182 + $0x1d8] sm:$0xff]
          %v421 = vld [vmem:[%s182 + $0x1e0] sm:$0xff]
          %v422 = vld [vmem:[%s182 + $0x1e8] sm:$0xff]
          %v423 = vld [vmem:[%s182 + $0x1f0] sm:$0xff]
          %v424 = vld [vmem:[%s182 + $0x1f8] sm:$0xff]
          %v425 = vld [vmem:[%s182 + $0x200] sm:$0xff]
          %v426 = vld [vmem:[%s182 + $0x208] sm:$0xff]
          %v427 = vld [vmem:[%s182 + $0x210] sm:$0xff]
          %v428 = vld [vmem:[%s182 + $0x218] sm:$0xff]
          %v429 = vld [vmem:[%s182 + $0x220] sm:$0xff]
          %v430 = vld [vmem:[%s182 + $0x228] sm:$0xff]
          %v431 = vld [vmem:[%s182 + $0x230] sm:$0xff]
          %v432 = vld [vmem:[%s182 + $0x238] sm:$0xff]
          %v433 = vld [vmem:[%s182 + $0x240] sm:$0xff]
          %v434 = vld [vmem:[%s182 + $0x248] sm:$0xff]
          %v435 = vld [vmem:[%s182 + $0x250] sm:$0xff]
          %v436 = vld [vmem:[%s182 + $0x258] sm:$0xff]
          %v437 = vld [vmem:[%s182 + $0x260] sm:$0xff]
          %v438 = vld [vmem:[%s182 + $0x268] sm:$0xff]
          %v439 = vld [vmem:[%s182 + $0x270] sm:$0xff]
          %v440 = vld [vmem:[%s182 + $0x278] sm:$0xff]
          %v441 = vld [vmem:[%s182 + $0x280] sm:$0xff]
          %v442 = vld [vmem:[%s182 + $0x288] sm:$0xff]
          %v443 = vld [vmem:[%s182 + $0x290] sm:$0xff]
          %v444 = vld [vmem:[%s182 + $0x298] sm:$0xff]
          %v445 = vld [vmem:[%s182 + $0x2a0] sm:$0xff]
          %v446 = vld [vmem:[%s182 + $0x2a8] sm:$0xff]
          %v447 = vld [vmem:[%s182 + $0x2b0] sm:$0xff]
          %v448 = vld [vmem:[%s182 + $0x2b8] sm:$0xff]
          %v449 = vld [vmem:[%s182 + $0x2c0] sm:$0xff]
          %v450 = vld [vmem:[%s182 + $0x2c8] sm:$0xff]
          %v451 = vld [vmem:[%s182 + $0x2d0] sm:$0xff]
          %v452 = vld [vmem:[%s182 + $0x2d8] sm:$0xff]
          %v453 = vld [vmem:[%s182 + $0x2e0] sm:$0xff]
          %v454 = vld [vmem:[%s182 + $0x2e8] sm:$0xff]
          %v455 = vld [vmem:[%s182 + $0x2f0] sm:$0xff]
          %v456 = vld [vmem:[%s182 + $0x2f8] sm:$0xff]
          %v457 = vld [vmem:[%s182 + $0x300] sm:$0xff]
          %v458 = vld [vmem:[%s182 + $0x308] sm:$0xff]
          %v459 = vld [vmem:[%s182 + $0x310] sm:$0xff]
          %v460 = vld [vmem:[%s182 + $0x318] sm:$0xff]
          %v461 = vld [vmem:[%s182 + $0x320] sm:$0xff]
          %v462 = vld [vmem:[%s182 + $0x328] sm:$0xff]
          %v463 = vld [vmem:[%s182 + $0x330] sm:$0xff]
          %v464 = vld [vmem:[%s182 + $0x338] sm:$0xff]
          %v465 = vld [vmem:[%s182 + $0x340] sm:$0xff]
          %v466 = vld [vmem:[%s182 + $0x348] sm:$0xff]
          %v467 = vld [vmem:[%s182 + $0x350] sm:$0xff]
          %v468 = vld [vmem:[%s182 + $0x358] sm:$0xff]
          %v469 = vld [vmem:[%s182 + $0x360] sm:$0xff]
          %v470 = vld [vmem:[%s182 + $0x368] sm:$0xff]
          %v471 = vld [vmem:[%s182 + $0x370] sm:$0xff]
          %v472 = vld [vmem:[%s182 + $0x378] sm:$0xff]
          %v473 = vld [vmem:[%s182 + $0x380] sm:$0xff]
          %v474 = vld [vmem:[%s182 + $0x388] sm:$0xff]
          %v475 = vld [vmem:[%s182 + $0x390] sm:$0xff]
          %v476 = vld [vmem:[%s182 + $0x398] sm:$0xff]
          %v477 = vld [vmem:[%s182 + $0x3a0] sm:$0xff]
          %v478 = vld [vmem:[%s182 + $0x3a8] sm:$0xff]
          %v479 = vld [vmem:[%s182 + $0x3b0] sm:$0xff]
          %v480 = vld [vmem:[%s182 + $0x3b8] sm:$0xff]
          %v481 = vld [vmem:[%s182 + $0x3c0] sm:$0xff]
          %v482 = vld [vmem:[%s182 + $0x3c8] sm:$0xff]
          %v483 = vld [vmem:[%s182 + $0x3d0] sm:$0xff]
          %v484 = vld [vmem:[%s182 + $0x3d8] sm:$0xff]
          %v485 = vld [vmem:[%s182 + $0x3e0] sm:$0xff]
          %v486 = vld [vmem:[%s182 + $0x3e8] sm:$0xff]
          %v487 = vld [vmem:[%s182 + $0x3f0] sm:$0xff]
          %v488 = vld [vmem:[%s182 + $0x3f8] sm:$0xff]
          %v489 = vpack.c.bf16 %v362, %v361
          %v490 = vpack.c.bf16 %v364, %v363
          %v491 = vpack.c.bf16 %v366, %v365
          %v492 = vpack.c.bf16 %v368, %v367
          %v493 = vpack.c.bf16 %v370, %v369
          %v494 = vpack.c.bf16 %v372, %v371
          %v495 = vpack.c.bf16 %v374, %v373
          %v496 = vpack.c.bf16 %v376, %v375
          %v497 = vpack.c.bf16 %v378, %v377
          %v498 = vpack.c.bf16 %v380, %v379
          %v499 = vpack.c.bf16 %v382, %v381
          %v500 = vpack.c.bf16 %v384, %v383
          %v501 = vpack.c.bf16 %v386, %v385
          %v502 = vpack.c.bf16 %v388, %v387
          %v503 = vpack.c.bf16 %v390, %v389
          %v504 = vpack.c.bf16 %v392, %v391
          %v505 = vpack.c.bf16 %v394, %v393
          %v506 = vpack.c.bf16 %v396, %v395
          %v507 = vpack.c.bf16 %v398, %v397
          %v508 = vpack.c.bf16 %v400, %v399
          %v509 = vpack.c.bf16 %v402, %v401
          %v510 = vpack.c.bf16 %v404, %v403
          %v511 = vpack.c.bf16 %v406, %v405
          %v512 = vpack.c.bf16 %v408, %v407
          %v513 = vpack.c.bf16 %v410, %v409
          %v514 = vpack.c.bf16 %v412, %v411
          %v515 = vpack.c.bf16 %v414, %v413
          %v516 = vpack.c.bf16 %v416, %v415
          %v517 = vpack.c.bf16 %v418, %v417
          %v518 = vpack.c.bf16 %v420, %v419
          %v519 = vpack.c.bf16 %v422, %v421
          %v520 = vpack.c.bf16 %v424, %v423
          %v521 = vpack.c.bf16 %v426, %v425
          %v522 = vpack.c.bf16 %v428, %v427
          %v523 = vpack.c.bf16 %v430, %v429
          %v524 = vpack.c.bf16 %v432, %v431
          %v525 = vpack.c.bf16 %v434, %v433
          %v526 = vpack.c.bf16 %v436, %v435
          %v527 = vpack.c.bf16 %v438, %v437
          %v528 = vpack.c.bf16 %v440, %v439
          %v529 = vpack.c.bf16 %v442, %v441
          %v530 = vpack.c.bf16 %v444, %v443
          %v531 = vpack.c.bf16 %v446, %v445
          %v532 = vpack.c.bf16 %v448, %v447
          %v533 = vpack.c.bf16 %v450, %v449
          %v534 = vpack.c.bf16 %v452, %v451
          %v535 = vpack.c.bf16 %v454, %v453
          %v536 = vpack.c.bf16 %v456, %v455
          %v537 = vpack.c.bf16 %v458, %v457
          %v538 = vpack.c.bf16 %v460, %v459
          %v539 = vpack.c.bf16 %v462, %v461
          %v540 = vpack.c.bf16 %v464, %v463
          %v541 = vpack.c.bf16 %v466, %v465
          %v542 = vpack.c.bf16 %v468, %v467
          %v543 = vpack.c.bf16 %v470, %v469
          %v544 = vpack.c.bf16 %v472, %v471
          %v545 = vpack.c.bf16 %v474, %v473
          %v546 = vpack.c.bf16 %v476, %v475
          %v547 = vpack.c.bf16 %v478, %v477
          %v548 = vpack.c.bf16 %v480, %v479
          %v549 = vpack.c.bf16 %v482, %v481
          %v550 = vpack.c.bf16 %v484, %v483
          %v551 = vpack.c.bf16 %v486, %v485
          %v552 = vpack.c.bf16 %v488, %v487
          %v617 = vunpack.c.l.b16 %v489
          %v618 = vunpack.c.h.b16 %v489
          %v619 = vunpack.c.l.b16 %v490
          %v620 = vunpack.c.h.b16 %v490
          %v621 = vunpack.c.l.b16 %v491
          %v622 = vunpack.c.h.b16 %v491
          %v623 = vunpack.c.l.b16 %v492
          %v624 = vunpack.c.h.b16 %v492
          %v625 = vunpack.c.l.b16 %v493
          %v626 = vunpack.c.h.b16 %v493
          %v627 = vunpack.c.l.b16 %v494
          %v628 = vunpack.c.h.b16 %v494
          %v629 = vunpack.c.l.b16 %v495
          %v630 = vunpack.c.h.b16 %v495
          %v631 = vunpack.c.l.b16 %v496
          %v632 = vunpack.c.h.b16 %v496
          %v633 = vunpack.c.l.b16 %v497
          %v634 = vunpack.c.h.b16 %v497
          %v635 = vunpack.c.l.b16 %v498
          %v636 = vunpack.c.h.b16 %v498
          %v637 = vunpack.c.l.b16 %v499
          %v638 = vunpack.c.h.b16 %v499
          %v639 = vunpack.c.l.b16 %v500
          %v640 = vunpack.c.h.b16 %v500
          %v641 = vunpack.c.l.b16 %v501
          %v642 = vunpack.c.h.b16 %v501
          %v643 = vunpack.c.l.b16 %v502
          %v644 = vunpack.c.h.b16 %v502
          %v645 = vunpack.c.l.b16 %v503
          %v646 = vunpack.c.h.b16 %v503
          %v647 = vunpack.c.l.b16 %v504
          %v648 = vunpack.c.h.b16 %v504
          %v649 = vunpack.c.l.b16 %v505
          %v650 = vunpack.c.h.b16 %v505
          %v651 = vunpack.c.l.b16 %v506
          %v652 = vunpack.c.h.b16 %v506
          %v653 = vunpack.c.l.b16 %v507
          %v654 = vunpack.c.h.b16 %v507
          %v655 = vunpack.c.l.b16 %v508
          %v656 = vunpack.c.h.b16 %v508
          %v657 = vunpack.c.l.b16 %v509
          %v658 = vunpack.c.h.b16 %v509
          %v659 = vunpack.c.l.b16 %v510
          %v660 = vunpack.c.h.b16 %v510
          %v661 = vunpack.c.l.b16 %v511
          %v662 = vunpack.c.h.b16 %v511
          %v663 = vunpack.c.l.b16 %v512
          %v664 = vunpack.c.h.b16 %v512
          %v665 = vunpack.c.l.b16 %v513
          %v666 = vunpack.c.h.b16 %v513
          %v667 = vunpack.c.l.b16 %v514
          %v668 = vunpack.c.h.b16 %v514
          %v669 = vunpack.c.l.b16 %v515
          %v670 = vunpack.c.h.b16 %v515
          %v671 = vunpack.c.l.b16 %v516
          %v672 = vunpack.c.h.b16 %v516
          %v673 = vunpack.c.l.b16 %v517
          %v674 = vunpack.c.h.b16 %v517
          %v675 = vunpack.c.l.b16 %v518
          %v676 = vunpack.c.h.b16 %v518
          %v677 = vunpack.c.l.b16 %v519
          %v678 = vunpack.c.h.b16 %v519
          %v679 = vunpack.c.l.b16 %v520
          %v680 = vunpack.c.h.b16 %v520
          %v681 = vunpack.c.l.b16 %v521
          %v682 = vunpack.c.h.b16 %v521
          %v683 = vunpack.c.l.b16 %v522
          %v684 = vunpack.c.h.b16 %v522
          %v685 = vunpack.c.l.b16 %v523
          %v686 = vunpack.c.h.b16 %v523
          %v687 = vunpack.c.l.b16 %v524
          %v688 = vunpack.c.h.b16 %v524
          %v689 = vunpack.c.l.b16 %v525
          %v690 = vunpack.c.h.b16 %v525
          %v691 = vunpack.c.l.b16 %v526
          %v692 = vunpack.c.h.b16 %v526
          %v693 = vunpack.c.l.b16 %v527
          %v694 = vunpack.c.h.b16 %v527
          %v695 = vunpack.c.l.b16 %v528
          %v696 = vunpack.c.h.b16 %v528
          %v697 = vunpack.c.l.b16 %v529
          %v698 = vunpack.c.h.b16 %v529
          %v699 = vunpack.c.l.b16 %v530
          %v700 = vunpack.c.h.b16 %v530
          %v701 = vunpack.c.l.b16 %v531
          %v702 = vunpack.c.h.b16 %v531
          %v703 = vunpack.c.l.b16 %v532
          %v704 = vunpack.c.h.b16 %v532
          %v705 = vunpack.c.l.b16 %v533
          %v706 = vunpack.c.h.b16 %v533
          %v707 = vunpack.c.l.b16 %v534
          %v708 = vunpack.c.h.b16 %v534
          %v709 = vunpack.c.l.b16 %v535
          %v710 = vunpack.c.h.b16 %v535
          %v711 = vunpack.c.l.b16 %v536
          %v712 = vunpack.c.h.b16 %v536
          %v713 = vunpack.c.l.b16 %v537
          %v714 = vunpack.c.h.b16 %v537
          %v715 = vunpack.c.l.b16 %v538
          %v716 = vunpack.c.h.b16 %v538
          %v717 = vunpack.c.l.b16 %v539
          %v718 = vunpack.c.h.b16 %v539
          %v719 = vunpack.c.l.b16 %v540
          %v720 = vunpack.c.h.b16 %v540
          %v721 = vunpack.c.l.b16 %v541
          %v722 = vunpack.c.h.b16 %v541
          %v723 = vunpack.c.l.b16 %v542
          %v724 = vunpack.c.h.b16 %v542
          %v725 = vunpack.c.l.b16 %v543
          %v726 = vunpack.c.h.b16 %v543
          %v727 = vunpack.c.l.b16 %v544
          %v728 = vunpack.c.h.b16 %v544
          %v729 = vunpack.c.l.b16 %v545
          %v730 = vunpack.c.h.b16 %v545
          %v731 = vunpack.c.l.b16 %v546
          %v732 = vunpack.c.h.b16 %v546
          %v733 = vunpack.c.l.b16 %v547
          %v734 = vunpack.c.h.b16 %v547
          %v735 = vunpack.c.l.b16 %v548
          %v736 = vunpack.c.h.b16 %v548
          %v737 = vunpack.c.l.b16 %v549
          %v738 = vunpack.c.h.b16 %v549
          %v739 = vunpack.c.l.b16 %v550
          %v740 = vunpack.c.h.b16 %v550
          %v741 = vunpack.c.l.b16 %v551
          %v742 = vunpack.c.h.b16 %v551
          %v743 = vunpack.c.l.b16 %v552
          %v744 = vunpack.c.h.b16 %v552
          %v745 = vpack.c.b16 %v617, %v617
          %v746 = vpack.c.b16 %v618, %v618
          %v747 = vpack.c.b16 %v619, %v619
          %v748 = vpack.c.b16 %v620, %v620
          %v749 = vpack.c.b16 %v621, %v621
          %v750 = vpack.c.b16 %v622, %v622
          %v751 = vpack.c.b16 %v623, %v623
          %v752 = vpack.c.b16 %v624, %v624
          %v753 = vpack.c.b16 %v625, %v625
          %v754 = vpack.c.b16 %v626, %v626
          %v755 = vpack.c.b16 %v627, %v627
          %v756 = vpack.c.b16 %v628, %v628
          %v757 = vpack.c.b16 %v629, %v629
          %v758 = vpack.c.b16 %v630, %v630
          %v759 = vpack.c.b16 %v631, %v631
          %v760 = vpack.c.b16 %v632, %v632
          %v761 = vpack.c.b16 %v633, %v633
          %v762 = vpack.c.b16 %v634, %v634
          %v763 = vpack.c.b16 %v635, %v635
          %v764 = vpack.c.b16 %v636, %v636
          %v765 = vpack.c.b16 %v637, %v637
          %v766 = vpack.c.b16 %v638, %v638
          %v767 = vpack.c.b16 %v639, %v639
          %v768 = vpack.c.b16 %v640, %v640
          %v769 = vpack.c.b16 %v641, %v641
          %v770 = vpack.c.b16 %v642, %v642
          %v771 = vpack.c.b16 %v643, %v643
          %v772 = vpack.c.b16 %v644, %v644
          %v773 = vpack.c.b16 %v645, %v645
          %v774 = vpack.c.b16 %v646, %v646
          %v775 = vpack.c.b16 %v647, %v647
          %v776 = vpack.c.b16 %v648, %v648
          %v777 = vpack.c.b16 %v649, %v649
          %v778 = vpack.c.b16 %v650, %v650
          %v779 = vpack.c.b16 %v651, %v651
          %v780 = vpack.c.b16 %v652, %v652
          %v781 = vpack.c.b16 %v653, %v653
          %v782 = vpack.c.b16 %v654, %v654
          %v783 = vpack.c.b16 %v655, %v655
          %v784 = vpack.c.b16 %v656, %v656
          %v785 = vpack.c.b16 %v657, %v657
          %v786 = vpack.c.b16 %v658, %v658
          %v787 = vpack.c.b16 %v659, %v659
          %v788 = vpack.c.b16 %v660, %v660
          %v789 = vpack.c.b16 %v661, %v661
          %v790 = vpack.c.b16 %v662, %v662
          %v791 = vpack.c.b16 %v663, %v663
          %v792 = vpack.c.b16 %v664, %v664
          %v793 = vpack.c.b16 %v665, %v665
          %v794 = vpack.c.b16 %v666, %v666
          %v795 = vpack.c.b16 %v667, %v667
          %v796 = vpack.c.b16 %v668, %v668
          %v797 = vpack.c.b16 %v669, %v669
          %v798 = vpack.c.b16 %v670, %v670
          %v799 = vpack.c.b16 %v671, %v671
          %v800 = vpack.c.b16 %v672, %v672
          %v801 = vpack.c.b16 %v673, %v673
          %v802 = vpack.c.b16 %v674, %v674
          %v803 = vpack.c.b16 %v675, %v675
          %v804 = vpack.c.b16 %v676, %v676
          %v805 = vpack.c.b16 %v677, %v677
          %v806 = vpack.c.b16 %v678, %v678
          %v807 = vpack.c.b16 %v679, %v679
          %v808 = vpack.c.b16 %v680, %v680
          %v809 = vpack.c.b16 %v681, %v681
          %v810 = vpack.c.b16 %v682, %v682
          %v811 = vpack.c.b16 %v683, %v683
          %v812 = vpack.c.b16 %v684, %v684
          %v813 = vpack.c.b16 %v685, %v685
          %v814 = vpack.c.b16 %v686, %v686
          %v815 = vpack.c.b16 %v687, %v687
          %v816 = vpack.c.b16 %v688, %v688
          %v817 = vpack.c.b16 %v689, %v689
          %v818 = vpack.c.b16 %v690, %v690
          %v819 = vpack.c.b16 %v691, %v691
          %v820 = vpack.c.b16 %v692, %v692
          %v821 = vpack.c.b16 %v693, %v693
          %v822 = vpack.c.b16 %v694, %v694
          %v823 = vpack.c.b16 %v695, %v695
          %v824 = vpack.c.b16 %v696, %v696
          %v825 = vpack.c.b16 %v697, %v697
          %v826 = vpack.c.b16 %v698, %v698
          %v827 = vpack.c.b16 %v699, %v699
          %v828 = vpack.c.b16 %v700, %v700
          %v829 = vpack.c.b16 %v701, %v701
          %v830 = vpack.c.b16 %v702, %v702
          %v831 = vpack.c.b16 %v703, %v703
          %v832 = vpack.c.b16 %v704, %v704
          %v833 = vpack.c.b16 %v705, %v705
          %v834 = vpack.c.b16 %v706, %v706
          %v835 = vpack.c.b16 %v707, %v707
          %v836 = vpack.c.b16 %v708, %v708
          %v837 = vpack.c.b16 %v709, %v709
          %v838 = vpack.c.b16 %v710, %v710
          %v839 = vpack.c.b16 %v711, %v711
          %v840 = vpack.c.b16 %v712, %v712
          %v841 = vpack.c.b16 %v713, %v713
          %v842 = vpack.c.b16 %v714, %v714
          %v843 = vpack.c.b16 %v715, %v715
          %v844 = vpack.c.b16 %v716, %v716
          %v845 = vpack.c.b16 %v717, %v717
          %v846 = vpack.c.b16 %v718, %v718
          %v847 = vpack.c.b16 %v719, %v719
          %v848 = vpack.c.b16 %v720, %v720
          %v849 = vpack.c.b16 %v721, %v721
          %v850 = vpack.c.b16 %v722, %v722
          %v851 = vpack.c.b16 %v723, %v723
          %v852 = vpack.c.b16 %v724, %v724
          %v853 = vpack.c.b16 %v725, %v725
          %v854 = vpack.c.b16 %v726, %v726
          %v855 = vpack.c.b16 %v727, %v727
          %v856 = vpack.c.b16 %v728, %v728
          %v857 = vpack.c.b16 %v729, %v729
          %v858 = vpack.c.b16 %v730, %v730
          %v859 = vpack.c.b16 %v731, %v731
          %v860 = vpack.c.b16 %v732, %v732
          %v861 = vpack.c.b16 %v733, %v733
          %v862 = vpack.c.b16 %v734, %v734
          %v863 = vpack.c.b16 %v735, %v735
          %v864 = vpack.c.b16 %v736, %v736
          %v865 = vpack.c.b16 %v737, %v737
          %v866 = vpack.c.b16 %v738, %v738
          %v867 = vpack.c.b16 %v739, %v739
          %v868 = vpack.c.b16 %v740, %v740
          %v869 = vpack.c.b16 %v741, %v741
          %v870 = vpack.c.b16 %v742, %v742
          %v871 = vpack.c.b16 %v743, %v743
          %v872 = vpack.c.b16 %v744, %v744
          %vm873 = vsmask.f32 256
          %vm874 = vsmask.f32 4368
          %vm875 = vmor %vm873, %vm874
          %v877 = vshrl.u32 %v745, 16
          %v879 = vrot.slane %v877, 7
          %v880 = vshll.u32 %v745, 16
          %v882 = vor.u32 %v879, %v880
          %v883 = vrot.slane %v879, 4
          %v885 = vshrl.u32 %v746, 16
          %v887 = vrot.slane %v885, 7
          %v888 = vshll.u32 %v746, 16
          %v890 = vor.u32 %v887, %v888
          %v891 = vsel %vm875, %v883, %v890
          %v892 = vrot.slane %v887, 4
          %v894 = vshrl.u32 %v747, 16
          %v896 = vrot.slane %v894, 7
          %v897 = vshll.u32 %v747, 16
          %v899 = vor.u32 %v896, %v897
          %v900 = vsel %vm875, %v892, %v899
          %v901 = vrot.slane %v896, 4
          %v903 = vshrl.u32 %v748, 16
          %v905 = vrot.slane %v903, 7
          %v906 = vshll.u32 %v748, 16
          %v908 = vor.u32 %v905, %v906
          %v909 = vsel %vm875, %v901, %v908
          %v910 = vrot.slane %v905, 4
          %v912 = vshrl.u32 %v749, 16
          %v914 = vrot.slane %v912, 7
          %v915 = vshll.u32 %v749, 16
          %v917 = vor.u32 %v914, %v915
          %v918 = vrot.slane %v914, 4
          %v920 = vshrl.u32 %v750, 16
          %v922 = vrot.slane %v920, 7
          %v923 = vshll.u32 %v750, 16
          %v925 = vor.u32 %v922, %v923
          %v926 = vsel %vm875, %v918, %v925
          %v927 = vrot.slane %v922, 4
          %v929 = vshrl.u32 %v751, 16
          %v931 = vrot.slane %v929, 7
          %v932 = vshll.u32 %v751, 16
          %v934 = vor.u32 %v931, %v932
          %v935 = vsel %vm875, %v927, %v934
          %v936 = vrot.slane %v931, 4
          %v938 = vshrl.u32 %v752, 16
          %v940 = vrot.slane %v938, 7
          %v941 = vshll.u32 %v752, 16
          %v943 = vor.u32 %v940, %v941
          %v944 = vsel %vm875, %v936, %v943
          %v945 = vrot.slane %v940, 4
          %v947 = vshrl.u32 %v753, 16
          %v949 = vrot.slane %v947, 7
          %v950 = vshll.u32 %v753, 16
          %v952 = vor.u32 %v949, %v950
          %v953 = vrot.slane %v949, 4
          %v955 = vshrl.u32 %v754, 16
          %v957 = vrot.slane %v955, 7
          %v958 = vshll.u32 %v754, 16
          %v960 = vor.u32 %v957, %v958
          %v961 = vsel %vm875, %v953, %v960
          %v962 = vrot.slane %v957, 4
          %v964 = vshrl.u32 %v755, 16
          %v966 = vrot.slane %v964, 7
          %v967 = vshll.u32 %v755, 16
          %v969 = vor.u32 %v966, %v967
          %v970 = vsel %vm875, %v962, %v969
          %v971 = vrot.slane %v966, 4
          %v973 = vshrl.u32 %v756, 16
          %v975 = vrot.slane %v973, 7
          %v976 = vshll.u32 %v756, 16
          %v978 = vor.u32 %v975, %v976
          %v979 = vsel %vm875, %v971, %v978
          %v980 = vrot.slane %v975, 4
          %v982 = vshrl.u32 %v757, 16
          %v984 = vrot.slane %v982, 7
          %v985 = vshll.u32 %v757, 16
          %v987 = vor.u32 %v984, %v985
          %v988 = vrot.slane %v984, 4
          %v990 = vshrl.u32 %v758, 16
          %v992 = vrot.slane %v990, 7
          %v993 = vshll.u32 %v758, 16
          %v995 = vor.u32 %v992, %v993
          %v996 = vsel %vm875, %v988, %v995
          %v997 = vrot.slane %v992, 4
          %v999 = vshrl.u32 %v759, 16
          %v1001 = vrot.slane %v999, 7
          %v1002 = vshll.u32 %v759, 16
          %v1004 = vor.u32 %v1001, %v1002
          %v1005 = vsel %vm875, %v997, %v1004
          %v1006 = vrot.slane %v1001, 4
          %v1008 = vshrl.u32 %v760, 16
          %v1010 = vrot.slane %v1008, 7
          %v1011 = vshll.u32 %v760, 16
          %v1013 = vor.u32 %v1010, %v1011
          %v1014 = vsel %vm875, %v1006, %v1013
          %v1015 = vrot.slane %v1010, 4
          %v1017 = vshrl.u32 %v761, 16
          %v1019 = vrot.slane %v1017, 7
          %v1020 = vshll.u32 %v761, 16
          %v1022 = vor.u32 %v1019, %v1020
          %v1023 = vrot.slane %v1019, 4
          %v1025 = vshrl.u32 %v762, 16
          %v1027 = vrot.slane %v1025, 7
          %v1028 = vshll.u32 %v762, 16
          %v1030 = vor.u32 %v1027, %v1028
          %v1031 = vsel %vm875, %v1023, %v1030
          %v1032 = vrot.slane %v1027, 4
          %v1034 = vshrl.u32 %v763, 16
          %v1036 = vrot.slane %v1034, 7
          %v1037 = vshll.u32 %v763, 16
          %v1039 = vor.u32 %v1036, %v1037
          %v1040 = vsel %vm875, %v1032, %v1039
          %v1041 = vrot.slane %v1036, 4
          %v1043 = vshrl.u32 %v764, 16
          %v1045 = vrot.slane %v1043, 7
          %v1046 = vshll.u32 %v764, 16
          %v1048 = vor.u32 %v1045, %v1046
          %v1049 = vsel %vm875, %v1041, %v1048
          %v1050 = vrot.slane %v1045, 4
          %v1052 = vshrl.u32 %v765, 16
          %v1054 = vrot.slane %v1052, 7
          %v1055 = vshll.u32 %v765, 16
          %v1057 = vor.u32 %v1054, %v1055
          %v1058 = vrot.slane %v1054, 4
          %v1060 = vshrl.u32 %v766, 16
          %v1062 = vrot.slane %v1060, 7
          %v1063 = vshll.u32 %v766, 16
          %v1065 = vor.u32 %v1062, %v1063
          %v1066 = vsel %vm875, %v1058, %v1065
          %v1067 = vrot.slane %v1062, 4
          %v1069 = vshrl.u32 %v767, 16
          %v1071 = vrot.slane %v1069, 7
          %v1072 = vshll.u32 %v767, 16
          %v1074 = vor.u32 %v1071, %v1072
          %v1075 = vsel %vm875, %v1067, %v1074
          %v1076 = vrot.slane %v1071, 4
          %v1078 = vshrl.u32 %v768, 16
          %v1080 = vrot.slane %v1078, 7
          %v1081 = vshll.u32 %v768, 16
          %v1083 = vor.u32 %v1080, %v1081
          %v1084 = vsel %vm875, %v1076, %v1083
          %v1085 = vrot.slane %v1080, 4
          %v1087 = vshrl.u32 %v769, 16
          %v1089 = vrot.slane %v1087, 7
          %v1090 = vshll.u32 %v769, 16
          %v1092 = vor.u32 %v1089, %v1090
          %v1093 = vrot.slane %v1089, 4
          %v1095 = vshrl.u32 %v770, 16
          %v1097 = vrot.slane %v1095, 7
          %v1098 = vshll.u32 %v770, 16
          %v1100 = vor.u32 %v1097, %v1098
          %v1101 = vsel %vm875, %v1093, %v1100
          %v1102 = vrot.slane %v1097, 4
          %v1104 = vshrl.u32 %v771, 16
          %v1106 = vrot.slane %v1104, 7
          %v1107 = vshll.u32 %v771, 16
          %v1109 = vor.u32 %v1106, %v1107
          %v1110 = vsel %vm875, %v1102, %v1109
          %v1111 = vrot.slane %v1106, 4
          %v1113 = vshrl.u32 %v772, 16
          %v1115 = vrot.slane %v1113, 7
          %v1116 = vshll.u32 %v772, 16
          %v1118 = vor.u32 %v1115, %v1116
          %v1119 = vsel %vm875, %v1111, %v1118
          %v1120 = vrot.slane %v1115, 4
          %v1122 = vshrl.u32 %v773, 16
          %v1124 = vrot.slane %v1122, 7
          %v1125 = vshll.u32 %v773, 16
          %v1127 = vor.u32 %v1124, %v1125
          %v1128 = vrot.slane %v1124, 4
          %v1130 = vshrl.u32 %v774, 16
          %v1132 = vrot.slane %v1130, 7
          %v1133 = vshll.u32 %v774, 16
          %v1135 = vor.u32 %v1132, %v1133
          %v1136 = vsel %vm875, %v1128, %v1135
          %v1137 = vrot.slane %v1132, 4
          %v1139 = vshrl.u32 %v775, 16
          %v1141 = vrot.slane %v1139, 7
          %v1142 = vshll.u32 %v775, 16
          %v1144 = vor.u32 %v1141, %v1142
          %v1145 = vsel %vm875, %v1137, %v1144
          %v1146 = vrot.slane %v1141, 4
          %v1148 = vshrl.u32 %v776, 16
          %v1150 = vrot.slane %v1148, 7
          %v1151 = vshll.u32 %v776, 16
          %v1153 = vor.u32 %v1150, %v1151
          %v1154 = vsel %vm875, %v1146, %v1153
          %v1155 = vrot.slane %v1150, 4
          %v1157 = vshrl.u32 %v777, 16
          %v1159 = vrot.slane %v1157, 7
          %v1160 = vshll.u32 %v777, 16
          %v1162 = vor.u32 %v1159, %v1160
          %v1163 = vrot.slane %v1159, 4
          %v1165 = vshrl.u32 %v778, 16
          %v1167 = vrot.slane %v1165, 7
          %v1168 = vshll.u32 %v778, 16
          %v1170 = vor.u32 %v1167, %v1168
          %v1171 = vsel %vm875, %v1163, %v1170
          %v1172 = vrot.slane %v1167, 4
          %v1174 = vshrl.u32 %v779, 16
          %v1176 = vrot.slane %v1174, 7
          %v1177 = vshll.u32 %v779, 16
          %v1179 = vor.u32 %v1176, %v1177
          %v1180 = vsel %vm875, %v1172, %v1179
          %v1181 = vrot.slane %v1176, 4
          %v1183 = vshrl.u32 %v780, 16
          %v1185 = vrot.slane %v1183, 7
          %v1186 = vshll.u32 %v780, 16
          %v1188 = vor.u32 %v1185, %v1186
          %v1189 = vsel %vm875, %v1181, %v1188
          %v1190 = vrot.slane %v1185, 4
          %v1192 = vshrl.u32 %v781, 16
          %v1194 = vrot.slane %v1192, 7
          %v1195 = vshll.u32 %v781, 16
          %v1197 = vor.u32 %v1194, %v1195
          %v1198 = vrot.slane %v1194, 4
          %v1200 = vshrl.u32 %v782, 16
          %v1202 = vrot.slane %v1200, 7
          %v1203 = vshll.u32 %v782, 16
          %v1205 = vor.u32 %v1202, %v1203
          %v1206 = vsel %vm875, %v1198, %v1205
          %v1207 = vrot.slane %v1202, 4
          %v1209 = vshrl.u32 %v783, 16
          %v1211 = vrot.slane %v1209, 7
          %v1212 = vshll.u32 %v783, 16
          %v1214 = vor.u32 %v1211, %v1212
          %v1215 = vsel %vm875, %v1207, %v1214
          %v1216 = vrot.slane %v1211, 4
          %v1218 = vshrl.u32 %v784, 16
          %v1220 = vrot.slane %v1218, 7
          %v1221 = vshll.u32 %v784, 16
          %v1223 = vor.u32 %v1220, %v1221
          %v1224 = vsel %vm875, %v1216, %v1223
          %v1225 = vrot.slane %v1220, 4
          %v1227 = vshrl.u32 %v785, 16
          %v1229 = vrot.slane %v1227, 7
          %v1230 = vshll.u32 %v785, 16
          %v1232 = vor.u32 %v1229, %v1230
          %v1233 = vrot.slane %v1229, 4
          %v1235 = vshrl.u32 %v786, 16
          %v1237 = vrot.slane %v1235, 7
          %v1238 = vshll.u32 %v786, 16
          %v1240 = vor.u32 %v1237, %v1238
          %v1241 = vsel %vm875, %v1233, %v1240
          %v1242 = vrot.slane %v1237, 4
          %v1244 = vshrl.u32 %v787, 16
          %v1246 = vrot.slane %v1244, 7
          %v1247 = vshll.u32 %v787, 16
          %v1249 = vor.u32 %v1246, %v1247
          %v1250 = vsel %vm875, %v1242, %v1249
          %v1251 = vrot.slane %v1246, 4
          %v1253 = vshrl.u32 %v788, 16
          %v1255 = vrot.slane %v1253, 7
          %v1256 = vshll.u32 %v788, 16
          %v1258 = vor.u32 %v1255, %v1256
          %v1259 = vsel %vm875, %v1251, %v1258
          %v1260 = vrot.slane %v1255, 4
          %v1262 = vshrl.u32 %v789, 16
          %v1264 = vrot.slane %v1262, 7
          %v1265 = vshll.u32 %v789, 16
          %v1267 = vor.u32 %v1264, %v1265
          %v1268 = vrot.slane %v1264, 4
          %v1270 = vshrl.u32 %v790, 16
          %v1272 = vrot.slane %v1270, 7
          %v1273 = vshll.u32 %v790, 16
          %v1275 = vor.u32 %v1272, %v1273
          %v1276 = vsel %vm875, %v1268, %v1275
          %v1277 = vrot.slane %v1272, 4
          %v1279 = vshrl.u32 %v791, 16
          %v1281 = vrot.slane %v1279, 7
          %v1282 = vshll.u32 %v791, 16
          %v1284 = vor.u32 %v1281, %v1282
          %v1285 = vsel %vm875, %v1277, %v1284
          %v1286 = vrot.slane %v1281, 4
          %v1288 = vshrl.u32 %v792, 16
          %v1290 = vrot.slane %v1288, 7
          %v1291 = vshll.u32 %v792, 16
          %v1293 = vor.u32 %v1290, %v1291
          %v1294 = vsel %vm875, %v1286, %v1293
          %v1295 = vrot.slane %v1290, 4
          %v1297 = vshrl.u32 %v793, 16
          %v1299 = vrot.slane %v1297, 7
          %v1300 = vshll.u32 %v793, 16
          %v1302 = vor.u32 %v1299, %v1300
          %v1303 = vrot.slane %v1299, 4
          %v1305 = vshrl.u32 %v794, 16
          %v1307 = vrot.slane %v1305, 7
          %v1308 = vshll.u32 %v794, 16
          %v1310 = vor.u32 %v1307, %v1308
          %v1311 = vsel %vm875, %v1303, %v1310
          %v1312 = vrot.slane %v1307, 4
          %v1314 = vshrl.u32 %v795, 16
          %v1316 = vrot.slane %v1314, 7
          %v1317 = vshll.u32 %v795, 16
          %v1319 = vor.u32 %v1316, %v1317
          %v1320 = vsel %vm875, %v1312, %v1319
          %v1321 = vrot.slane %v1316, 4
          %v1323 = vshrl.u32 %v796, 16
          %v1325 = vrot.slane %v1323, 7
          %v1326 = vshll.u32 %v796, 16
          %v1328 = vor.u32 %v1325, %v1326
          %v1329 = vsel %vm875, %v1321, %v1328
          %v1330 = vrot.slane %v1325, 4
          %v1332 = vshrl.u32 %v797, 16
          %v1334 = vrot.slane %v1332, 7
          %v1335 = vshll.u32 %v797, 16
          %v1337 = vor.u32 %v1334, %v1335
          %v1338 = vrot.slane %v1334, 4
          %v1340 = vshrl.u32 %v798, 16
          %v1342 = vrot.slane %v1340, 7
          %v1343 = vshll.u32 %v798, 16
          %v1345 = vor.u32 %v1342, %v1343
          %v1346 = vsel %vm875, %v1338, %v1345
          %v1347 = vrot.slane %v1342, 4
          %v1349 = vshrl.u32 %v799, 16
          %v1351 = vrot.slane %v1349, 7
          %v1352 = vshll.u32 %v799, 16
          %v1354 = vor.u32 %v1351, %v1352
          %v1355 = vsel %vm875, %v1347, %v1354
          %v1356 = vrot.slane %v1351, 4
          %v1358 = vshrl.u32 %v800, 16
          %v1360 = vrot.slane %v1358, 7
          %v1361 = vshll.u32 %v800, 16
          %v1363 = vor.u32 %v1360, %v1361
          %v1364 = vsel %vm875, %v1356, %v1363
          %v1365 = vrot.slane %v1360, 4
          %v1367 = vshrl.u32 %v801, 16
          %v1369 = vrot.slane %v1367, 7
          %v1370 = vshll.u32 %v801, 16
          %v1372 = vor.u32 %v1369, %v1370
          %v1373 = vrot.slane %v1369, 4
          %v1375 = vshrl.u32 %v802, 16
          %v1377 = vrot.slane %v1375, 7
          %v1378 = vshll.u32 %v802, 16
          %v1380 = vor.u32 %v1377, %v1378
          %v1381 = vsel %vm875, %v1373, %v1380
          %v1382 = vrot.slane %v1377, 4
          %v1384 = vshrl.u32 %v803, 16
          %v1386 = vrot.slane %v1384, 7
          %v1387 = vshll.u32 %v803, 16
          %v1389 = vor.u32 %v1386, %v1387
          %v1390 = vsel %vm875, %v1382, %v1389
          %v1391 = vrot.slane %v1386, 4
          %v1393 = vshrl.u32 %v804, 16
          %v1395 = vrot.slane %v1393, 7
          %v1396 = vshll.u32 %v804, 16
          %v1398 = vor.u32 %v1395, %v1396
          %v1399 = vsel %vm875, %v1391, %v1398
          %v1400 = vrot.slane %v1395, 4
          %v1402 = vshrl.u32 %v805, 16
          %v1404 = vrot.slane %v1402, 7
          %v1405 = vshll.u32 %v805, 16
          %v1407 = vor.u32 %v1404, %v1405
          %v1408 = vrot.slane %v1404, 4
          %v1410 = vshrl.u32 %v806, 16
          %v1412 = vrot.slane %v1410, 7
          %v1413 = vshll.u32 %v806, 16
          %v1415 = vor.u32 %v1412, %v1413
          %v1416 = vsel %vm875, %v1408, %v1415
          %v1417 = vrot.slane %v1412, 4
          %v1419 = vshrl.u32 %v807, 16
          %v1421 = vrot.slane %v1419, 7
          %v1422 = vshll.u32 %v807, 16
          %v1424 = vor.u32 %v1421, %v1422
          %v1425 = vsel %vm875, %v1417, %v1424
          %v1426 = vrot.slane %v1421, 4
          %v1428 = vshrl.u32 %v808, 16
          %v1430 = vrot.slane %v1428, 7
          %v1431 = vshll.u32 %v808, 16
          %v1433 = vor.u32 %v1430, %v1431
          %v1434 = vsel %vm875, %v1426, %v1433
          %v1435 = vrot.slane %v1430, 4
          %v1437 = vshrl.u32 %v809, 16
          %v1439 = vrot.slane %v1437, 7
          %v1440 = vshll.u32 %v809, 16
          %v1442 = vor.u32 %v1439, %v1440
          %v1443 = vrot.slane %v1439, 4
          %v1445 = vshrl.u32 %v810, 16
          %v1447 = vrot.slane %v1445, 7
          %v1448 = vshll.u32 %v810, 16
          %v1450 = vor.u32 %v1447, %v1448
          %v1451 = vsel %vm875, %v1443, %v1450
          %v1452 = vrot.slane %v1447, 4
          %v1454 = vshrl.u32 %v811, 16
          %v1456 = vrot.slane %v1454, 7
          %v1457 = vshll.u32 %v811, 16
          %v1459 = vor.u32 %v1456, %v1457
          %v1460 = vsel %vm875, %v1452, %v1459
          %v1461 = vrot.slane %v1456, 4
          %v1463 = vshrl.u32 %v812, 16
          %v1465 = vrot.slane %v1463, 7
          %v1466 = vshll.u32 %v812, 16
          %v1468 = vor.u32 %v1465, %v1466
          %v1469 = vsel %vm875, %v1461, %v1468
          %v1470 = vrot.slane %v1465, 4
          %v1472 = vshrl.u32 %v813, 16
          %v1474 = vrot.slane %v1472, 7
          %v1475 = vshll.u32 %v813, 16
          %v1477 = vor.u32 %v1474, %v1475
          %v1478 = vrot.slane %v1474, 4
          %v1480 = vshrl.u32 %v814, 16
          %v1482 = vrot.slane %v1480, 7
          %v1483 = vshll.u32 %v814, 16
          %v1485 = vor.u32 %v1482, %v1483
          %v1486 = vsel %vm875, %v1478, %v1485
          %v1487 = vrot.slane %v1482, 4
          %v1489 = vshrl.u32 %v815, 16
          %v1491 = vrot.slane %v1489, 7
          %v1492 = vshll.u32 %v815, 16
          %v1494 = vor.u32 %v1491, %v1492
          %v1495 = vsel %vm875, %v1487, %v1494
          %v1496 = vrot.slane %v1491, 4
          %v1498 = vshrl.u32 %v816, 16
          %v1500 = vrot.slane %v1498, 7
          %v1501 = vshll.u32 %v816, 16
          %v1503 = vor.u32 %v1500, %v1501
          %v1504 = vsel %vm875, %v1496, %v1503
          %v1505 = vrot.slane %v1500, 4
          %v1507 = vshrl.u32 %v817, 16
          %v1509 = vrot.slane %v1507, 7
          %v1510 = vshll.u32 %v817, 16
          %v1512 = vor.u32 %v1509, %v1510
          %v1513 = vrot.slane %v1509, 4
          %v1515 = vshrl.u32 %v818, 16
          %v1517 = vrot.slane %v1515, 7
          %v1518 = vshll.u32 %v818, 16
          %v1520 = vor.u32 %v1517, %v1518
          %v1521 = vsel %vm875, %v1513, %v1520
          %v1522 = vrot.slane %v1517, 4
          %v1524 = vshrl.u32 %v819, 16
          %v1526 = vrot.slane %v1524, 7
          %v1527 = vshll.u32 %v819, 16
          %v1529 = vor.u32 %v1526, %v1527
          %v1530 = vsel %vm875, %v1522, %v1529
          %v1531 = vrot.slane %v1526, 4
          %v1533 = vshrl.u32 %v820, 16
          %v1535 = vrot.slane %v1533, 7
          %v1536 = vshll.u32 %v820, 16
          %v1538 = vor.u32 %v1535, %v1536
          %v1539 = vsel %vm875, %v1531, %v1538
          %v1540 = vrot.slane %v1535, 4
          %v1542 = vshrl.u32 %v821, 16
          %v1544 = vrot.slane %v1542, 7
          %v1545 = vshll.u32 %v821, 16
          %v1547 = vor.u32 %v1544, %v1545
          %v1548 = vrot.slane %v1544, 4
          %v1550 = vshrl.u32 %v822, 16
          %v1552 = vrot.slane %v1550, 7
          %v1553 = vshll.u32 %v822, 16
          %v1555 = vor.u32 %v1552, %v1553
          %v1556 = vsel %vm875, %v1548, %v1555
          %v1557 = vrot.slane %v1552, 4
          %v1559 = vshrl.u32 %v823, 16
          %v1561 = vrot.slane %v1559, 7
          %v1562 = vshll.u32 %v823, 16
          %v1564 = vor.u32 %v1561, %v1562
          %v1565 = vsel %vm875, %v1557, %v1564
          %v1566 = vrot.slane %v1561, 4
          %v1568 = vshrl.u32 %v824, 16
          %v1570 = vrot.slane %v1568, 7
          %v1571 = vshll.u32 %v824, 16
          %v1573 = vor.u32 %v1570, %v1571
          %v1574 = vsel %vm875, %v1566, %v1573
          %v1575 = vrot.slane %v1570, 4
          %v1577 = vshrl.u32 %v825, 16
          %v1579 = vrot.slane %v1577, 7
          %v1580 = vshll.u32 %v825, 16
          %v1582 = vor.u32 %v1579, %v1580
          %v1583 = vrot.slane %v1579, 4
          %v1585 = vshrl.u32 %v826, 16
          %v1587 = vrot.slane %v1585, 7
          %v1588 = vshll.u32 %v826, 16
          %v1590 = vor.u32 %v1587, %v1588
          %v1591 = vsel %vm875, %v1583, %v1590
          %v1592 = vrot.slane %v1587, 4
          %v1594 = vshrl.u32 %v827, 16
          %v1596 = vrot.slane %v1594, 7
          %v1597 = vshll.u32 %v827, 16
          %v1599 = vor.u32 %v1596, %v1597
          %v1600 = vsel %vm875, %v1592, %v1599
          %v1601 = vrot.slane %v1596, 4
          %v1603 = vshrl.u32 %v828, 16
          %v1605 = vrot.slane %v1603, 7
          %v1606 = vshll.u32 %v828, 16
          %v1608 = vor.u32 %v1605, %v1606
          %v1609 = vsel %vm875, %v1601, %v1608
          %v1610 = vrot.slane %v1605, 4
          %v1612 = vshrl.u32 %v829, 16
          %v1614 = vrot.slane %v1612, 7
          %v1615 = vshll.u32 %v829, 16
          %v1617 = vor.u32 %v1614, %v1615
          %v1618 = vrot.slane %v1614, 4
          %v1620 = vshrl.u32 %v830, 16
          %v1622 = vrot.slane %v1620, 7
          %v1623 = vshll.u32 %v830, 16
          %v1625 = vor.u32 %v1622, %v1623
          %v1626 = vsel %vm875, %v1618, %v1625
          %v1627 = vrot.slane %v1622, 4
          %v1629 = vshrl.u32 %v831, 16
          %v1631 = vrot.slane %v1629, 7
          %v1632 = vshll.u32 %v831, 16
          %v1634 = vor.u32 %v1631, %v1632
          %v1635 = vsel %vm875, %v1627, %v1634
          %v1636 = vrot.slane %v1631, 4
          %v1638 = vshrl.u32 %v832, 16
          %v1640 = vrot.slane %v1638, 7
          %v1641 = vshll.u32 %v832, 16
          %v1643 = vor.u32 %v1640, %v1641
          %v1644 = vsel %vm875, %v1636, %v1643
          %v1645 = vrot.slane %v1640, 4
          %v1647 = vshrl.u32 %v833, 16
          %v1649 = vrot.slane %v1647, 7
          %v1650 = vshll.u32 %v833, 16
          %v1652 = vor.u32 %v1649, %v1650
          %v1653 = vrot.slane %v1649, 4
          %v1655 = vshrl.u32 %v834, 16
          %v1657 = vrot.slane %v1655, 7
          %v1658 = vshll.u32 %v834, 16
          %v1660 = vor.u32 %v1657, %v1658
          %v1661 = vsel %vm875, %v1653, %v1660
          %v1662 = vrot.slane %v1657, 4
          %v1664 = vshrl.u32 %v835, 16
          %v1666 = vrot.slane %v1664, 7
          %v1667 = vshll.u32 %v835, 16
          %v1669 = vor.u32 %v1666, %v1667
          %v1670 = vsel %vm875, %v1662, %v1669
          %v1671 = vrot.slane %v1666, 4
          %v1673 = vshrl.u32 %v836, 16
          %v1675 = vrot.slane %v1673, 7
          %v1676 = vshll.u32 %v836, 16
          %v1678 = vor.u32 %v1675, %v1676
          %v1679 = vsel %vm875, %v1671, %v1678
          %v1680 = vrot.slane %v1675, 4
          %v1682 = vshrl.u32 %v837, 16
          %v1684 = vrot.slane %v1682, 7
          %v1685 = vshll.u32 %v837, 16
          %v1687 = vor.u32 %v1684, %v1685
          %v1688 = vrot.slane %v1684, 4
          %v1690 = vshrl.u32 %v838, 16
          %v1692 = vrot.slane %v1690, 7
          %v1693 = vshll.u32 %v838, 16
          %v1695 = vor.u32 %v1692, %v1693
          %v1696 = vsel %vm875, %v1688, %v1695
          %v1697 = vrot.slane %v1692, 4
          %v1699 = vshrl.u32 %v839, 16
          %v1701 = vrot.slane %v1699, 7
          %v1702 = vshll.u32 %v839, 16
          %v1704 = vor.u32 %v1701, %v1702
          %v1705 = vsel %vm875, %v1697, %v1704
          %v1706 = vrot.slane %v1701, 4
          %v1708 = vshrl.u32 %v840, 16
          %v1710 = vrot.slane %v1708, 7
          %v1711 = vshll.u32 %v840, 16
          %v1713 = vor.u32 %v1710, %v1711
          %v1714 = vsel %vm875, %v1706, %v1713
          %v1715 = vrot.slane %v1710, 4
          %v1717 = vshrl.u32 %v841, 16
          %v1719 = vrot.slane %v1717, 7
          %v1720 = vshll.u32 %v841, 16
          %v1722 = vor.u32 %v1719, %v1720
          %v1723 = vrot.slane %v1719, 4
          %v1725 = vshrl.u32 %v842, 16
          %v1727 = vrot.slane %v1725, 7
          %v1728 = vshll.u32 %v842, 16
          %v1730 = vor.u32 %v1727, %v1728
          %v1731 = vsel %vm875, %v1723, %v1730
          %v1732 = vrot.slane %v1727, 4
          %v1734 = vshrl.u32 %v843, 16
          %v1736 = vrot.slane %v1734, 7
          %v1737 = vshll.u32 %v843, 16
          %v1739 = vor.u32 %v1736, %v1737
          %v1740 = vsel %vm875, %v1732, %v1739
          %v1741 = vrot.slane %v1736, 4
          %v1743 = vshrl.u32 %v844, 16
          %v1745 = vrot.slane %v1743, 7
          %v1746 = vshll.u32 %v844, 16
          %v1748 = vor.u32 %v1745, %v1746
          %v1749 = vsel %vm875, %v1741, %v1748
          %v1750 = vrot.slane %v1745, 4
          %v1752 = vshrl.u32 %v845, 16
          %v1754 = vrot.slane %v1752, 7
          %v1755 = vshll.u32 %v845, 16
          %v1757 = vor.u32 %v1754, %v1755
          %v1758 = vrot.slane %v1754, 4
          %v1760 = vshrl.u32 %v846, 16
          %v1762 = vrot.slane %v1760, 7
          %v1763 = vshll.u32 %v846, 16
          %v1765 = vor.u32 %v1762, %v1763
          %v1766 = vsel %vm875, %v1758, %v1765
          %v1767 = vrot.slane %v1762, 4
          %v1769 = vshrl.u32 %v847, 16
          %v1771 = vrot.slane %v1769, 7
          %v1772 = vshll.u32 %v847, 16
          %v1774 = vor.u32 %v1771, %v1772
          %v1775 = vsel %vm875, %v1767, %v1774
          %v1776 = vrot.slane %v1771, 4
          %v1778 = vshrl.u32 %v848, 16
          %v1780 = vrot.slane %v1778, 7
          %v1781 = vshll.u32 %v848, 16
          %v1783 = vor.u32 %v1780, %v1781
          %v1784 = vsel %vm875, %v1776, %v1783
          %v1785 = vrot.slane %v1780, 4
          %v1787 = vshrl.u32 %v849, 16
          %v1789 = vrot.slane %v1787, 7
          %v1790 = vshll.u32 %v849, 16
          %v1792 = vor.u32 %v1789, %v1790
          %v1793 = vrot.slane %v1789, 4
          %v1795 = vshrl.u32 %v850, 16
          %v1797 = vrot.slane %v1795, 7
          %v1798 = vshll.u32 %v850, 16
          %v1800 = vor.u32 %v1797, %v1798
          %v1801 = vsel %vm875, %v1793, %v1800
          %v1802 = vrot.slane %v1797, 4
          %v1804 = vshrl.u32 %v851, 16
          %v1806 = vrot.slane %v1804, 7
          %v1807 = vshll.u32 %v851, 16
          %v1809 = vor.u32 %v1806, %v1807
          %v1810 = vsel %vm875, %v1802, %v1809
          %v1811 = vrot.slane %v1806, 4
          %v1813 = vshrl.u32 %v852, 16
          %v1815 = vrot.slane %v1813, 7
          %v1816 = vshll.u32 %v852, 16
          %v1818 = vor.u32 %v1815, %v1816
          %v1819 = vsel %vm875, %v1811, %v1818
          %v1820 = vrot.slane %v1815, 4
          %v1822 = vshrl.u32 %v853, 16
          %v1824 = vrot.slane %v1822, 7
          %v1825 = vshll.u32 %v853, 16
          %v1827 = vor.u32 %v1824, %v1825
          %v1828 = vrot.slane %v1824, 4
          %v1830 = vshrl.u32 %v854, 16
          %v1832 = vrot.slane %v1830, 7
          %v1833 = vshll.u32 %v854, 16
          %v1835 = vor.u32 %v1832, %v1833
          %v1836 = vsel %vm875, %v1828, %v1835
          %v1837 = vrot.slane %v1832, 4
          %v1839 = vshrl.u32 %v855, 16
          %v1841 = vrot.slane %v1839, 7
          %v1842 = vshll.u32 %v855, 16
          %v1844 = vor.u32 %v1841, %v1842
          %v1845 = vsel %vm875, %v1837, %v1844
          %v1846 = vrot.slane %v1841, 4
          %v1848 = vshrl.u32 %v856, 16
          %v1850 = vrot.slane %v1848, 7
          %v1851 = vshll.u32 %v856, 16
          %v1853 = vor.u32 %v1850, %v1851
          %v1854 = vsel %vm875, %v1846, %v1853
          %v1855 = vrot.slane %v1850, 4
          %v1857 = vshrl.u32 %v857, 16
          %v1859 = vrot.slane %v1857, 7
          %v1860 = vshll.u32 %v857, 16
          %v1862 = vor.u32 %v1859, %v1860
          %v1863 = vrot.slane %v1859, 4
          %v1865 = vshrl.u32 %v858, 16
          %v1867 = vrot.slane %v1865, 7
          %v1868 = vshll.u32 %v858, 16
          %v1870 = vor.u32 %v1867, %v1868
          %v1871 = vsel %vm875, %v1863, %v1870
          %v1872 = vrot.slane %v1867, 4
          %v1874 = vshrl.u32 %v859, 16
          %v1876 = vrot.slane %v1874, 7
          %v1877 = vshll.u32 %v859, 16
          %v1879 = vor.u32 %v1876, %v1877
          %v1880 = vsel %vm875, %v1872, %v1879
          %v1881 = vrot.slane %v1876, 4
          %v1883 = vshrl.u32 %v860, 16
          %v1885 = vrot.slane %v1883, 7
          %v1886 = vshll.u32 %v860, 16
          %v1888 = vor.u32 %v1885, %v1886
          %v1889 = vsel %vm875, %v1881, %v1888
          %v1890 = vrot.slane %v1885, 4
          %v1892 = vshrl.u32 %v861, 16
          %v1894 = vrot.slane %v1892, 7
          %v1895 = vshll.u32 %v861, 16
          %v1897 = vor.u32 %v1894, %v1895
          %v1898 = vrot.slane %v1894, 4
          %v1900 = vshrl.u32 %v862, 16
          %v1902 = vrot.slane %v1900, 7
          %v1903 = vshll.u32 %v862, 16
          %v1905 = vor.u32 %v1902, %v1903
          %v1906 = vsel %vm875, %v1898, %v1905
          %v1907 = vrot.slane %v1902, 4
          %v1909 = vshrl.u32 %v863, 16
          %v1911 = vrot.slane %v1909, 7
          %v1912 = vshll.u32 %v863, 16
          %v1914 = vor.u32 %v1911, %v1912
          %v1915 = vsel %vm875, %v1907, %v1914
          %v1916 = vrot.slane %v1911, 4
          %v1918 = vshrl.u32 %v864, 16
          %v1920 = vrot.slane %v1918, 7
          %v1921 = vshll.u32 %v864, 16
          %v1923 = vor.u32 %v1920, %v1921
          %v1924 = vsel %vm875, %v1916, %v1923
          %v1925 = vrot.slane %v1920, 4
          %v1927 = vshrl.u32 %v865, 16
          %v1929 = vrot.slane %v1927, 7
          %v1930 = vshll.u32 %v865, 16
          %v1932 = vor.u32 %v1929, %v1930
          %v1933 = vrot.slane %v1929, 4
          %v1935 = vshrl.u32 %v866, 16
          %v1937 = vrot.slane %v1935, 7
          %v1938 = vshll.u32 %v866, 16
          %v1940 = vor.u32 %v1937, %v1938
          %v1941 = vsel %vm875, %v1933, %v1940
          %v1942 = vrot.slane %v1937, 4
          %v1944 = vshrl.u32 %v867, 16
          %v1946 = vrot.slane %v1944, 7
          %v1947 = vshll.u32 %v867, 16
          %v1949 = vor.u32 %v1946, %v1947
          %v1950 = vsel %vm875, %v1942, %v1949
          %v1951 = vrot.slane %v1946, 4
          %v1953 = vshrl.u32 %v868, 16
          %v1955 = vrot.slane %v1953, 7
          %v1956 = vshll.u32 %v868, 16
          %v1958 = vor.u32 %v1955, %v1956
          %v1959 = vsel %vm875, %v1951, %v1958
          %v1960 = vrot.slane %v1955, 4
          %v1962 = vshrl.u32 %v869, 16
          %v1964 = vrot.slane %v1962, 7
          %v1965 = vshll.u32 %v869, 16
          %v1967 = vor.u32 %v1964, %v1965
          %v1968 = vrot.slane %v1964, 4
          %v1970 = vshrl.u32 %v870, 16
          %v1972 = vrot.slane %v1970, 7
          %v1973 = vshll.u32 %v870, 16
          %v1975 = vor.u32 %v1972, %v1973
          %v1976 = vsel %vm875, %v1968, %v1975
          %v1977 = vrot.slane %v1972, 4
          %v1979 = vshrl.u32 %v871, 16
          %v1981 = vrot.slane %v1979, 7
          %v1982 = vshll.u32 %v871, 16
          %v1984 = vor.u32 %v1981, %v1982
          %v1985 = vsel %vm875, %v1977, %v1984
          %v1986 = vrot.slane %v1981, 4
          %v1988 = vshrl.u32 %v872, 16
          %v1990 = vrot.slane %v1988, 7
          %v1991 = vshll.u32 %v872, 16
          %v1993 = vor.u32 %v1990, %v1991
          %v1994 = vsel %vm875, %v1986, %v1993
          %v1995 = vrot.slane %v1990, 4
          %s2156 = scalar_lea.vmem [#allocation2], 20
          %vm2157 = vcmask 19456
          %vm2158 = vsmask.f32 7938
          %vm2159 = vmand %vm2157, %vm2158
          %v2160 = vld [vmem:[%s2156] sm:$0xf]
          %v2161 = vsel %vm2159, %v882, %v2160
          %2162 = vst [vmem:[%s2156] sm:$0xf] %v2161
          %2163 = vst.msk [vmem:[%s2156 + $0x4] sm:$0xf] %vm189, %v891
          %2164 = vst.msk [vmem:[%s2156 + $0x8] sm:$0xf] %vm189, %v900
          %2165 = vst.msk [vmem:[%s2156 + $0xc] sm:$0xf] %vm189, %v909
          %vm2166 = vcmask 16384
          %vm2167 = vmand %vm2166, %vm873
          %v2168 = vld [vmem:[%s2156 + $0x10] sm:$0x1]
          %v2169 = vsel %vm2167, %v910, %v2168
          %2170 = vst [vmem:[%s2156 + $0x10] sm:$0x1] %v2169
          %v2171 = vld [vmem:[%s2156 + $0x14] sm:$0xf]
          %v2172 = vsel %vm2159, %v917, %v2171
          %2173 = vst [vmem:[%s2156 + $0x14] sm:$0xf] %v2172
          %2174 = vst.msk [vmem:[%s2156 + $0x18] sm:$0xf] %vm189, %v926
          %2175 = vst.msk [vmem:[%s2156 + $0x1c] sm:$0xf] %vm189, %v935
          %2176 = vst.msk [vmem:[%s2156 + $0x20] sm:$0xf] %vm189, %v944
          %v2177 = vld [vmem:[%s2156 + $0x24] sm:$0x1]
          %v2178 = vsel %vm2167, %v945, %v2177
          %2179 = vst [vmem:[%s2156 + $0x24] sm:$0x1] %v2178
          %v2180 = vld [vmem:[%s2156 + $0x28] sm:$0xf]
          %v2181 = vsel %vm2159, %v952, %v2180
          %2182 = vst [vmem:[%s2156 + $0x28] sm:$0xf] %v2181
          %2183 = vst.msk [vmem:[%s2156 + $0x2c] sm:$0xf] %vm189, %v961
          %2184 = vst.msk [vmem:[%s2156 + $0x30] sm:$0xf] %vm189, %v970
          %2185 = vst.msk [vmem:[%s2156 + $0x34] sm:$0xf] %vm189, %v979
          %v2186 = vld [vmem:[%s2156 + $0x38] sm:$0x1]
          %v2187 = vsel %vm2167, %v980, %v2186
          %2188 = vst [vmem:[%s2156 + $0x38] sm:$0x1] %v2187
          %v2189 = vld [vmem:[%s2156 + $0x3c] sm:$0xf]
          %v2190 = vsel %vm2159, %v987, %v2189
          %2191 = vst [vmem:[%s2156 + $0x3c] sm:$0xf] %v2190
          %2192 = vst.msk [vmem:[%s2156 + $0x40] sm:$0xf] %vm189, %v996
          %2193 = vst.msk [vmem:[%s2156 + $0x44] sm:$0xf] %vm189, %v1005
          %2194 = vst.msk [vmem:[%s2156 + $0x48] sm:$0xf] %vm189, %v1014
          %v2195 = vld [vmem:[%s2156 + $0x4c] sm:$0x1]
          %v2196 = vsel %vm2167, %v1015, %v2195
          %2197 = vst [vmem:[%s2156 + $0x4c] sm:$0x1] %v2196
          %v2198 = vld [vmem:[%s2156 + $0x50] sm:$0xf]
          %v2199 = vsel %vm2159, %v1022, %v2198
          %2200 = vst [vmem:[%s2156 + $0x50] sm:$0xf] %v2199
          %2201 = vst.msk [vmem:[%s2156 + $0x54] sm:$0xf] %vm189, %v1031
          %2202 = vst.msk [vmem:[%s2156 + $0x58] sm:$0xf] %vm189, %v1040
          %2203 = vst.msk [vmem:[%s2156 + $0x5c] sm:$0xf] %vm189, %v1049
          %v2204 = vld [vmem:[%s2156 + $0x60] sm:$0x1]
          %v2205 = vsel %vm2167, %v1050, %v2204
          %2206 = vst [vmem:[%s2156 + $0x60] sm:$0x1] %v2205
          %v2207 = vld [vmem:[%s2156 + $0x64] sm:$0xf]
          %v2208 = vsel %vm2159, %v1057, %v2207
          %2209 = vst [vmem:[%s2156 + $0x64] sm:$0xf] %v2208
          %2210 = vst.msk [vmem:[%s2156 + $0x68] sm:$0xf] %vm189, %v1066
          %2211 = vst.msk [vmem:[%s2156 + $0x6c] sm:$0xf] %vm189, %v1075
          %2212 = vst.msk [vmem:[%s2156 + $0x70] sm:$0xf] %vm189, %v1084
          %v2213 = vld [vmem:[%s2156 + $0x74] sm:$0x1]
          %v2214 = vsel %vm2167, %v1085, %v2213
          %2215 = vst [vmem:[%s2156 + $0x74] sm:$0x1] %v2214
          %v2216 = vld [vmem:[%s2156 + $0x78] sm:$0xf]
          %v2217 = vsel %vm2159, %v1092, %v2216
          %2218 = vst [vmem:[%s2156 + $0x78] sm:$0xf] %v2217
          %2219 = vst.msk [vmem:[%s2156 + $0x7c] sm:$0xf] %vm189, %v1101
          %2220 = vst.msk [vmem:[%s2156 + $0x80] sm:$0xf] %vm189, %v1110
          %2221 = vst.msk [vmem:[%s2156 + $0x84] sm:$0xf] %vm189, %v1119
          %v2222 = vld [vmem:[%s2156 + $0x88] sm:$0x1]
          %v2223 = vsel %vm2167, %v1120, %v2222
          %2224 = vst [vmem:[%s2156 + $0x88] sm:$0x1] %v2223
          %v2225 = vld [vmem:[%s2156 + $0x8c] sm:$0xf]
          %v2226 = vsel %vm2159, %v1127, %v2225
          %2227 = vst [vmem:[%s2156 + $0x8c] sm:$0xf] %v2226
          %2228 = vst.msk [vmem:[%s2156 + $0x90] sm:$0xf] %vm189, %v1136
          %2229 = vst.msk [vmem:[%s2156 + $0x94] sm:$0xf] %vm189, %v1145
          %2230 = vst.msk [vmem:[%s2156 + $0x98] sm:$0xf] %vm189, %v1154
          %v2231 = vld [vmem:[%s2156 + $0x9c] sm:$0x1]
          %v2232 = vsel %vm2167, %v1155, %v2231
          %2233 = vst [vmem:[%s2156 + $0x9c] sm:$0x1] %v2232
          %v2234 = vld [vmem:[%s2156 + $0xa0] sm:$0xf]
          %v2235 = vsel %vm2159, %v1162, %v2234
          %2236 = vst [vmem:[%s2156 + $0xa0] sm:$0xf] %v2235
          %2237 = vst.msk [vmem:[%s2156 + $0xa4] sm:$0xf] %vm189, %v1171
          %2238 = vst.msk [vmem:[%s2156 + $0xa8] sm:$0xf] %vm189, %v1180
          %2239 = vst.msk [vmem:[%s2156 + $0xac] sm:$0xf] %vm189, %v1189
          %v2240 = vld [vmem:[%s2156 + $0xb0] sm:$0x1]
          %v2241 = vsel %vm2167, %v1190, %v2240
          %2242 = vst [vmem:[%s2156 + $0xb0] sm:$0x1] %v2241
          %v2243 = vld [vmem:[%s2156 + $0xb4] sm:$0xf]
          %v2244 = vsel %vm2159, %v1197, %v2243
          %2245 = vst [vmem:[%s2156 + $0xb4] sm:$0xf] %v2244
          %2246 = vst.msk [vmem:[%s2156 + $0xb8] sm:$0xf] %vm189, %v1206
          %2247 = vst.msk [vmem:[%s2156 + $0xbc] sm:$0xf] %vm189, %v1215
          %2248 = vst.msk [vmem:[%s2156 + $0xc0] sm:$0xf] %vm189, %v1224
          %v2249 = vld [vmem:[%s2156 + $0xc4] sm:$0x1]
          %v2250 = vsel %vm2167, %v1225, %v2249
          %2251 = vst [vmem:[%s2156 + $0xc4] sm:$0x1] %v2250
          %v2252 = vld [vmem:[%s2156 + $0xc8] sm:$0xf]
          %v2253 = vsel %vm2159, %v1232, %v2252
          %2254 = vst [vmem:[%s2156 + $0xc8] sm:$0xf] %v2253
          %2255 = vst.msk [vmem:[%s2156 + $0xcc] sm:$0xf] %vm189, %v1241
          %2256 = vst.msk [vmem:[%s2156 + $0xd0] sm:$0xf] %vm189, %v1250
          %2257 = vst.msk [vmem:[%s2156 + $0xd4] sm:$0xf] %vm189, %v1259
          %v2258 = vld [vmem:[%s2156 + $0xd8] sm:$0x1]
          %v2259 = vsel %vm2167, %v1260, %v2258
          %2260 = vst [vmem:[%s2156 + $0xd8] sm:$0x1] %v2259
          %v2261 = vld [vmem:[%s2156 + $0xdc] sm:$0xf]
          %v2262 = vsel %vm2159, %v1267, %v2261
          %2263 = vst [vmem:[%s2156 + $0xdc] sm:$0xf] %v2262
          %2264 = vst.msk [vmem:[%s2156 + $0xe0] sm:$0xf] %vm189, %v1276
          %2265 = vst.msk [vmem:[%s2156 + $0xe4] sm:$0xf] %vm189, %v1285
          %2266 = vst.msk [vmem:[%s2156 + $0xe8] sm:$0xf] %vm189, %v1294
          %v2267 = vld [vmem:[%s2156 + $0xec] sm:$0x1]
          %v2268 = vsel %vm2167, %v1295, %v2267
          %2269 = vst [vmem:[%s2156 + $0xec] sm:$0x1] %v2268
          %v2270 = vld [vmem:[%s2156 + $0xf0] sm:$0xf]
          %v2271 = vsel %vm2159, %v1302, %v2270
          %2272 = vst [vmem:[%s2156 + $0xf0] sm:$0xf] %v2271
          %2273 = vst.msk [vmem:[%s2156 + $0xf4] sm:$0xf] %vm189, %v1311
          %2274 = vst.msk [vmem:[%s2156 + $0xf8] sm:$0xf] %vm189, %v1320
          %2275 = vst.msk [vmem:[%s2156 + $0xfc] sm:$0xf] %vm189, %v1329
          %v2276 = vld [vmem:[%s2156 + $0x100] sm:$0x1]
          %v2277 = vsel %vm2167, %v1330, %v2276
          %2278 = vst [vmem:[%s2156 + $0x100] sm:$0x1] %v2277
          %v2279 = vld [vmem:[%s2156 + $0x104] sm:$0xf]
          %v2280 = vsel %vm2159, %v1337, %v2279
          %2281 = vst [vmem:[%s2156 + $0x104] sm:$0xf] %v2280
          %2282 = vst.msk [vmem:[%s2156 + $0x108] sm:$0xf] %vm189, %v1346
          %2283 = vst.msk [vmem:[%s2156 + $0x10c] sm:$0xf] %vm189, %v1355
          %2284 = vst.msk [vmem:[%s2156 + $0x110] sm:$0xf] %vm189, %v1364
          %v2285 = vld [vmem:[%s2156 + $0x114] sm:$0x1]
          %v2286 = vsel %vm2167, %v1365, %v2285
          %2287 = vst [vmem:[%s2156 + $0x114] sm:$0x1] %v2286
          %v2288 = vld [vmem:[%s2156 + $0x118] sm:$0xf]
          %v2289 = vsel %vm2159, %v1372, %v2288
          %2290 = vst [vmem:[%s2156 + $0x118] sm:$0xf] %v2289
          %2291 = vst.msk [vmem:[%s2156 + $0x11c] sm:$0xf] %vm189, %v1381
          %2292 = vst.msk [vmem:[%s2156 + $0x120] sm:$0xf] %vm189, %v1390
          %2293 = vst.msk [vmem:[%s2156 + $0x124] sm:$0xf] %vm189, %v1399
          %v2294 = vld [vmem:[%s2156 + $0x128] sm:$0x1]
          %v2295 = vsel %vm2167, %v1400, %v2294
          %2296 = vst [vmem:[%s2156 + $0x128] sm:$0x1] %v2295
          %v2297 = vld [vmem:[%s2156 + $0x12c] sm:$0xf]
          %v2298 = vsel %vm2159, %v1407, %v2297
          %2299 = vst [vmem:[%s2156 + $0x12c] sm:$0xf] %v2298
          %2300 = vst.msk [vmem:[%s2156 + $0x130] sm:$0xf] %vm189, %v1416
          %2301 = vst.msk [vmem:[%s2156 + $0x134] sm:$0xf] %vm189, %v1425
          %2302 = vst.msk [vmem:[%s2156 + $0x138] sm:$0xf] %vm189, %v1434
          %v2303 = vld [vmem:[%s2156 + $0x13c] sm:$0x1]
          %v2304 = vsel %vm2167, %v1435, %v2303
          %2305 = vst [vmem:[%s2156 + $0x13c] sm:$0x1] %v2304
          %v2306 = vld [vmem:[%s2156 + $0x140] sm:$0xf]
          %v2307 = vsel %vm2159, %v1442, %v2306
          %2308 = vst [vmem:[%s2156 + $0x140] sm:$0xf] %v2307
          %2309 = vst.msk [vmem:[%s2156 + $0x144] sm:$0xf] %vm189, %v1451
          %2310 = vst.msk [vmem:[%s2156 + $0x148] sm:$0xf] %vm189, %v1460
          %2311 = vst.msk [vmem:[%s2156 + $0x14c] sm:$0xf] %vm189, %v1469
          %v2312 = vld [vmem:[%s2156 + $0x150] sm:$0x1]
          %v2313 = vsel %vm2167, %v1470, %v2312
          %2314 = vst [vmem:[%s2156 + $0x150] sm:$0x1] %v2313
          %v2315 = vld [vmem:[%s2156 + $0x154] sm:$0xf]
          %v2316 = vsel %vm2159, %v1477, %v2315
          %2317 = vst [vmem:[%s2156 + $0x154] sm:$0xf] %v2316
          %2318 = vst.msk [vmem:[%s2156 + $0x158] sm:$0xf] %vm189, %v1486
          %2319 = vst.msk [vmem:[%s2156 + $0x15c] sm:$0xf] %vm189, %v1495
          %2320 = vst.msk [vmem:[%s2156 + $0x160] sm:$0xf] %vm189, %v1504
          %v2321 = vld [vmem:[%s2156 + $0x164] sm:$0x1]
          %v2322 = vsel %vm2167, %v1505, %v2321
          %2323 = vst [vmem:[%s2156 + $0x164] sm:$0x1] %v2322
          %v2324 = vld [vmem:[%s2156 + $0x168] sm:$0xf]
          %v2325 = vsel %vm2159, %v1512, %v2324
          %2326 = vst [vmem:[%s2156 + $0x168] sm:$0xf] %v2325
          %2327 = vst.msk [vmem:[%s2156 + $0x16c] sm:$0xf] %vm189, %v1521
          %2328 = vst.msk [vmem:[%s2156 + $0x170] sm:$0xf] %vm189, %v1530
          %2329 = vst.msk [vmem:[%s2156 + $0x174] sm:$0xf] %vm189, %v1539
          %v2330 = vld [vmem:[%s2156 + $0x178] sm:$0x1]
          %v2331 = vsel %vm2167, %v1540, %v2330
          %2332 = vst [vmem:[%s2156 + $0x178] sm:$0x1] %v2331
          %v2333 = vld [vmem:[%s2156 + $0x17c] sm:$0xf]
          %v2334 = vsel %vm2159, %v1547, %v2333
          %2335 = vst [vmem:[%s2156 + $0x17c] sm:$0xf] %v2334
          %2336 = vst.msk [vmem:[%s2156 + $0x180] sm:$0xf] %vm189, %v1556
          %2337 = vst.msk [vmem:[%s2156 + $0x184] sm:$0xf] %vm189, %v1565
          %2338 = vst.msk [vmem:[%s2156 + $0x188] sm:$0xf] %vm189, %v1574
          %v2339 = vld [vmem:[%s2156 + $0x18c] sm:$0x1]
          %v2340 = vsel %vm2167, %v1575, %v2339
          %2341 = vst [vmem:[%s2156 + $0x18c] sm:$0x1] %v2340
          %v2342 = vld [vmem:[%s2156 + $0x190] sm:$0xf]
          %v2343 = vsel %vm2159, %v1582, %v2342
          %2344 = vst [vmem:[%s2156 + $0x190] sm:$0xf] %v2343
          %2345 = vst.msk [vmem:[%s2156 + $0x194] sm:$0xf] %vm189, %v1591
          %2346 = vst.msk [vmem:[%s2156 + $0x198] sm:$0xf] %vm189, %v1600
          %2347 = vst.msk [vmem:[%s2156 + $0x19c] sm:$0xf] %vm189, %v1609
          %v2348 = vld [vmem:[%s2156 + $0x1a0] sm:$0x1]
          %v2349 = vsel %vm2167, %v1610, %v2348
          %2350 = vst [vmem:[%s2156 + $0x1a0] sm:$0x1] %v2349
          %v2351 = vld [vmem:[%s2156 + $0x1a4] sm:$0xf]
          %v2352 = vsel %vm2159, %v1617, %v2351
          %2353 = vst [vmem:[%s2156 + $0x1a4] sm:$0xf] %v2352
          %2354 = vst.msk [vmem:[%s2156 + $0x1a8] sm:$0xf] %vm189, %v1626
          %2355 = vst.msk [vmem:[%s2156 + $0x1ac] sm:$0xf] %vm189, %v1635
          %2356 = vst.msk [vmem:[%s2156 + $0x1b0] sm:$0xf] %vm189, %v1644
          %v2357 = vld [vmem:[%s2156 + $0x1b4] sm:$0x1]
          %v2358 = vsel %vm2167, %v1645, %v2357
          %2359 = vst [vmem:[%s2156 + $0x1b4] sm:$0x1] %v2358
          %v2360 = vld [vmem:[%s2156 + $0x1b8] sm:$0xf]
          %v2361 = vsel %vm2159, %v1652, %v2360
          %2362 = vst [vmem:[%s2156 + $0x1b8] sm:$0xf] %v2361
          %2363 = vst.msk [vmem:[%s2156 + $0x1bc] sm:$0xf] %vm189, %v1661
          %2364 = vst.msk [vmem:[%s2156 + $0x1c0] sm:$0xf] %vm189, %v1670
          %2365 = vst.msk [vmem:[%s2156 + $0x1c4] sm:$0xf] %vm189, %v1679
          %v2366 = vld [vmem:[%s2156 + $0x1c8] sm:$0x1]
          %v2367 = vsel %vm2167, %v1680, %v2366
          %2368 = vst [vmem:[%s2156 + $0x1c8] sm:$0x1] %v2367
          %v2369 = vld [vmem:[%s2156 + $0x1cc] sm:$0xf]
          %v2370 = vsel %vm2159, %v1687, %v2369
          %2371 = vst [vmem:[%s2156 + $0x1cc] sm:$0xf] %v2370
          %2372 = vst.msk [vmem:[%s2156 + $0x1d0] sm:$0xf] %vm189, %v1696
          %2373 = vst.msk [vmem:[%s2156 + $0x1d4] sm:$0xf] %vm189, %v1705
          %2374 = vst.msk [vmem:[%s2156 + $0x1d8] sm:$0xf] %vm189, %v1714
          %v2375 = vld [vmem:[%s2156 + $0x1dc] sm:$0x1]
          %v2376 = vsel %vm2167, %v1715, %v2375
          %2377 = vst [vmem:[%s2156 + $0x1dc] sm:$0x1] %v2376
          %v2378 = vld [vmem:[%s2156 + $0x1e0] sm:$0xf]
          %v2379 = vsel %vm2159, %v1722, %v2378
          %2380 = vst [vmem:[%s2156 + $0x1e0] sm:$0xf] %v2379
          %2381 = vst.msk [vmem:[%s2156 + $0x1e4] sm:$0xf] %vm189, %v1731
          %2382 = vst.msk [vmem:[%s2156 + $0x1e8] sm:$0xf] %vm189, %v1740
          %2383 = vst.msk [vmem:[%s2156 + $0x1ec] sm:$0xf] %vm189, %v1749
          %v2384 = vld [vmem:[%s2156 + $0x1f0] sm:$0x1]
          %v2385 = vsel %vm2167, %v1750, %v2384
          %2386 = vst [vmem:[%s2156 + $0x1f0] sm:$0x1] %v2385
          %v2387 = vld [vmem:[%s2156 + $0x1f4] sm:$0xf]
          %v2388 = vsel %vm2159, %v1757, %v2387
          %2389 = vst [vmem:[%s2156 + $0x1f4] sm:$0xf] %v2388
          %2390 = vst.msk [vmem:[%s2156 + $0x1f8] sm:$0xf] %vm189, %v1766
          %2391 = vst.msk [vmem:[%s2156 + $0x1fc] sm:$0xf] %vm189, %v1775
          %2392 = vst.msk [vmem:[%s2156 + $0x200] sm:$0xf] %vm189, %v1784
          %v2393 = vld [vmem:[%s2156 + $0x204] sm:$0x1]
          %v2394 = vsel %vm2167, %v1785, %v2393
          %2395 = vst [vmem:[%s2156 + $0x204] sm:$0x1] %v2394
          %v2396 = vld [vmem:[%s2156 + $0x208] sm:$0xf]
          %v2397 = vsel %vm2159, %v1792, %v2396
          %2398 = vst [vmem:[%s2156 + $0x208] sm:$0xf] %v2397
          %2399 = vst.msk [vmem:[%s2156 + $0x20c] sm:$0xf] %vm189, %v1801
          %2400 = vst.msk [vmem:[%s2156 + $0x210] sm:$0xf] %vm189, %v1810
          %2401 = vst.msk [vmem:[%s2156 + $0x214] sm:$0xf] %vm189, %v1819
          %v2402 = vld [vmem:[%s2156 + $0x218] sm:$0x1]
          %v2403 = vsel %vm2167, %v1820, %v2402
          %2404 = vst [vmem:[%s2156 + $0x218] sm:$0x1] %v2403
          %v2405 = vld [vmem:[%s2156 + $0x21c] sm:$0xf]
          %v2406 = vsel %vm2159, %v1827, %v2405
          %2407 = vst [vmem:[%s2156 + $0x21c] sm:$0xf] %v2406
          %2408 = vst.msk [vmem:[%s2156 + $0x220] sm:$0xf] %vm189, %v1836
          %2409 = vst.msk [vmem:[%s2156 + $0x224] sm:$0xf] %vm189, %v1845
          %2410 = vst.msk [vmem:[%s2156 + $0x228] sm:$0xf] %vm189, %v1854
          %v2411 = vld [vmem:[%s2156 + $0x22c] sm:$0x1]
          %v2412 = vsel %vm2167, %v1855, %v2411
          %2413 = vst [vmem:[%s2156 + $0x22c] sm:$0x1] %v2412
          %v2414 = vld [vmem:[%s2156 + $0x230] sm:$0xf]
          %v2415 = vsel %vm2159, %v1862, %v2414
          %2416 = vst [vmem:[%s2156 + $0x230] sm:$0xf] %v2415
          %2417 = vst.msk [vmem:[%s2156 + $0x234] sm:$0xf] %vm189, %v1871
          %2418 = vst.msk [vmem:[%s2156 + $0x238] sm:$0xf] %vm189, %v1880
          %2419 = vst.msk [vmem:[%s2156 + $0x23c] sm:$0xf] %vm189, %v1889
          %v2420 = vld [vmem:[%s2156 + $0x240] sm:$0x1]
          %v2421 = vsel %vm2167, %v1890, %v2420
          %2422 = vst [vmem:[%s2156 + $0x240] sm:$0x1] %v2421
          %v2423 = vld [vmem:[%s2156 + $0x244] sm:$0xf]
          %v2424 = vsel %vm2159, %v1897, %v2423
          %2425 = vst [vmem:[%s2156 + $0x244] sm:$0xf] %v2424
          %2426 = vst.msk [vmem:[%s2156 + $0x248] sm:$0xf] %vm189, %v1906
          %2427 = vst.msk [vmem:[%s2156 + $0x24c] sm:$0xf] %vm189, %v1915
          %2428 = vst.msk [vmem:[%s2156 + $0x250] sm:$0xf] %vm189, %v1924
          %v2429 = vld [vmem:[%s2156 + $0x254] sm:$0x1]
          %v2430 = vsel %vm2167, %v1925, %v2429
          %2431 = vst [vmem:[%s2156 + $0x254] sm:$0x1] %v2430
          %v2432 = vld [vmem:[%s2156 + $0x258] sm:$0xf]
          %v2433 = vsel %vm2159, %v1932, %v2432
          %2434 = vst [vmem:[%s2156 + $0x258] sm:$0xf] %v2433
          %2435 = vst.msk [vmem:[%s2156 + $0x25c] sm:$0xf] %vm189, %v1941
          %2436 = vst.msk [vmem:[%s2156 + $0x260] sm:$0xf] %vm189, %v1950
          %2437 = vst.msk [vmem:[%s2156 + $0x264] sm:$0xf] %vm189, %v1959
          %v2438 = vld [vmem:[%s2156 + $0x268] sm:$0x1]
          %v2439 = vsel %vm2167, %v1960, %v2438
          %2440 = vst [vmem:[%s2156 + $0x268] sm:$0x1] %v2439
          %v2441 = vld [vmem:[%s2156 + $0x26c] sm:$0xf]
          %v2442 = vsel %vm2159, %v1967, %v2441
          %2443 = vst [vmem:[%s2156 + $0x26c] sm:$0xf] %v2442
          %2444 = vst.msk [vmem:[%s2156 + $0x270] sm:$0xf] %vm189, %v1976
          %2445 = vst.msk [vmem:[%s2156 + $0x274] sm:$0xf] %vm189, %v1985
          %2446 = vst.msk [vmem:[%s2156 + $0x278] sm:$0xf] %vm189, %v1994
          %v2447 = vld [vmem:[%s2156 + $0x27c] sm:$0x1]
          %v2448 = vsel %vm2167, %v1995, %v2447
          %2449 = vst [vmem:[%s2156 + $0x27c] sm:$0x1] %v2448
        $region36: #{tpu_custom_call.1} parent=31 // pred_fallthru
          _
        %s2450 = smul.u32 %s22, 8
        %s2451 = smul.u32 %s2450, 5
        %s2452 = smul.addr %s2451, 4
        %s2453 = scalar_lea.vmem [#allocation2], %s2452
        %v2454 = vld [vmem:[%s2453] sm:$0xf]
        %v2455 = vld [vmem:[%s2453 + $0x4] sm:$0xf]
        %v2456 = vld [vmem:[%s2453 + $0x8] sm:$0xf]
        %v2457 = vld [vmem:[%s2453 + $0xc] sm:$0xf]
        %v2458 = vld [vmem:[%s2453 + $0x14] sm:$0xf]
        %v2459 = vld [vmem:[%s2453 + $0x18] sm:$0xf]
        %v2460 = vld [vmem:[%s2453 + $0x1c] sm:$0xf]
        %v2461 = vld [vmem:[%s2453 + $0x20] sm:$0xf]
        %v2462 = vld [vmem:[%s2453 + $0x28] sm:$0xf]
        %v2463 = vld [vmem:[%s2453 + $0x2c] sm:$0xf]
        %v2464 = vld [vmem:[%s2453 + $0x30] sm:$0xf]
        %v2465 = vld [vmem:[%s2453 + $0x34] sm:$0xf]
        %v2466 = vld [vmem:[%s2453 + $0x3c] sm:$0xf]
        %v2467 = vld [vmem:[%s2453 + $0x40] sm:$0xf]
        %v2468 = vld [vmem:[%s2453 + $0x44] sm:$0xf]
        %v2469 = vld [vmem:[%s2453 + $0x48] sm:$0xf]
        %v2470 = vld [vmem:[%s2453 + $0x50] sm:$0xf]
        %v2471 = vld [vmem:[%s2453 + $0x54] sm:$0xf]
        %v2472 = vld [vmem:[%s2453 + $0x58] sm:$0xf]
        %v2473 = vld [vmem:[%s2453 + $0x5c] sm:$0xf]
        %v2474 = vld [vmem:[%s2453 + $0x64] sm:$0xf]
        %v2475 = vld [vmem:[%s2453 + $0x68] sm:$0xf]
        %v2476 = vld [vmem:[%s2453 + $0x6c] sm:$0xf]
        %v2477 = vld [vmem:[%s2453 + $0x70] sm:$0xf]
        %v2478 = vld [vmem:[%s2453 + $0x78] sm:$0xf]
        %v2479 = vld [vmem:[%s2453 + $0x7c] sm:$0xf]
        %v2480 = vld [vmem:[%s2453 + $0x80] sm:$0xf]
        %v2481 = vld [vmem:[%s2453 + $0x84] sm:$0xf]
        %v2482 = vld [vmem:[%s2453 + $0x8c] sm:$0xf]
        %v2483 = vld [vmem:[%s2453 + $0x90] sm:$0xf]
        %v2484 = vld [vmem:[%s2453 + $0x94] sm:$0xf]
        %v2485 = vld [vmem:[%s2453 + $0x98] sm:$0xf]
        %v2518 = vunpack.c.l.b16 %v2454
        %v2519 = vunpack.c.l.b16 %v2455
        %v2520 = vunpack.c.l.b16 %v2456
        %v2521 = vunpack.c.l.b16 %v2457
        %v2522 = vunpack.c.l.b16 %v2458
        %v2523 = vunpack.c.l.b16 %v2459
        %v2524 = vunpack.c.l.b16 %v2460
        %v2525 = vunpack.c.l.b16 %v2461
        %v2526 = vunpack.c.l.b16 %v2462
        %v2527 = vunpack.c.l.b16 %v2463
        %v2528 = vunpack.c.l.b16 %v2464
        %v2529 = vunpack.c.l.b16 %v2465
        %v2530 = vunpack.c.l.b16 %v2466
        %v2531 = vunpack.c.l.b16 %v2467
        %v2532 = vunpack.c.l.b16 %v2468
        %v2533 = vunpack.c.l.b16 %v2469
        %v2534 = vunpack.c.l.b16 %v2470
        %v2535 = vunpack.c.l.b16 %v2471
        %v2536 = vunpack.c.l.b16 %v2472
        %v2537 = vunpack.c.l.b16 %v2473
        %v2538 = vunpack.c.l.b16 %v2474
        %v2539 = vunpack.c.l.b16 %v2475
        %v2540 = vunpack.c.l.b16 %v2476
        %v2541 = vunpack.c.l.b16 %v2477
        %v2542 = vunpack.c.l.b16 %v2478
        %v2543 = vunpack.c.l.b16 %v2479
        %v2544 = vunpack.c.l.b16 %v2480
        %v2545 = vunpack.c.l.b16 %v2481
        %v2546 = vunpack.c.l.b16 %v2482
        %v2547 = vunpack.c.l.b16 %v2483
        %v2548 = vunpack.c.l.b16 %v2484
        %v2549 = vunpack.c.l.b16 %v2485
        %v2550 = vpack.c.b16 %v2519, %v2518
        %v2551 = vpack.c.b16 %v2521, %v2520
        %v2552 = vpack.c.b16 %v2523, %v2522
        %v2553 = vpack.c.b16 %v2525, %v2524
        %v2554 = vpack.c.b16 %v2527, %v2526
        %v2555 = vpack.c.b16 %v2529, %v2528
        %v2556 = vpack.c.b16 %v2531, %v2530
        %v2557 = vpack.c.b16 %v2533, %v2532
        %v2558 = vpack.c.b16 %v2535, %v2534
        %v2559 = vpack.c.b16 %v2537, %v2536
        %v2560 = vpack.c.b16 %v2539, %v2538
        %v2561 = vpack.c.b16 %v2541, %v2540
        %v2562 = vpack.c.b16 %v2543, %v2542
        %v2563 = vpack.c.b16 %v2545, %v2544
        %v2564 = vpack.c.b16 %v2547, %v2546
        %v2565 = vpack.c.b16 %v2549, %v2548
        %vm2582 = vcmask 23552
        %2583 = vst.msk [vmem:[#allocation3] sm:$0xff] %vm2582, %v2550
        %2584 = vst.msk [vmem:[#allocation3 + $0x8] sm:$0xff] %vm2582, %v2551
        %2585 = vst.msk [vmem:[#allocation3 + $0x10] sm:$0xff] %vm2582, %v2552
        %2586 = vst.msk [vmem:[#allocation3 + $0x18] sm:$0xff] %vm2582, %v2553
        %2587 = vst.msk [vmem:[#allocation3 + $0x20] sm:$0xff] %vm2582, %v2554
        %2588 = vst.msk [vmem:[#allocation3 + $0x28] sm:$0xff] %vm2582, %v2555
        %2589 = vst.msk [vmem:[#allocation3 + $0x30] sm:$0xff] %vm2582, %v2556
        %2590 = vst.msk [vmem:[#allocation3 + $0x38] sm:$0xff] %vm2582, %v2557
        %2591 = vst.msk [vmem:[#allocation3 + $0x40] sm:$0xff] %vm2582, %v2558
        %2592 = vst.msk [vmem:[#allocation3 + $0x48] sm:$0xff] %vm2582, %v2559
        %2593 = vst.msk [vmem:[#allocation3 + $0x50] sm:$0xff] %vm2582, %v2560
        %2594 = vst.msk [vmem:[#allocation3 + $0x58] sm:$0xff] %vm2582, %v2561
        %2595 = vst.msk [vmem:[#allocation3 + $0x60] sm:$0xff] %vm2582, %v2562
        %2596 = vst.msk [vmem:[#allocation3 + $0x68] sm:$0xff] %vm2582, %v2563
        %2597 = vst.msk [vmem:[#allocation3 + $0x70] sm:$0xff] %vm2582, %v2564
        %2598 = vst.msk [vmem:[#allocation3 + $0x78] sm:$0xff] %vm2582, %v2565
        %v2599 = vld [vmem:[%s2453] sm:$0xf]
        %v2600 = vld [vmem:[%s2453 + $0x4] sm:$0xf]
        %v2601 = vld [vmem:[%s2453 + $0x8] sm:$0xf]
        %v2602 = vld [vmem:[%s2453 + $0xc] sm:$0xf]
        %v2603 = vld [vmem:[%s2453 + $0x10] sm:$0x1]
        %v2604 = vld [vmem:[%s2453 + $0x14] sm:$0xf]
        %v2605 = vld [vmem:[%s2453 + $0x18] sm:$0xf]
        %v2606 = vld [vmem:[%s2453 + $0x1c] sm:$0xf]
        %v2607 = vld [vmem:[%s2453 + $0x20] sm:$0xf]
        %v2608 = vld [vmem:[%s2453 + $0x24] sm:$0x1]
        %v2609 = vld [vmem:[%s2453 + $0x28] sm:$0xf]
        %v2610 = vld [vmem:[%s2453 + $0x2c] sm:$0xf]
        %v2611 = vld [vmem:[%s2453 + $0x30] sm:$0xf]
        %v2612 = vld [vmem:[%s2453 + $0x34] sm:$0xf]
        %v2613 = vld [vmem:[%s2453 + $0x38] sm:$0x1]
        %v2614 = vld [vmem:[%s2453 + $0x3c] sm:$0xf]
        %v2615 = vld [vmem:[%s2453 + $0x40] sm:$0xf]
        %v2616 = vld [vmem:[%s2453 + $0x44] sm:$0xf]
        %v2617 = vld [vmem:[%s2453 + $0x48] sm:$0xf]
        %v2618 = vld [vmem:[%s2453 + $0x4c] sm:$0x1]
        %v2619 = vld [vmem:[%s2453 + $0x50] sm:$0xf]
        %v2620 = vld [vmem:[%s2453 + $0x54] sm:$0xf]
        %v2621 = vld [vmem:[%s2453 + $0x58] sm:$0xf]
        %v2622 = vld [vmem:[%s2453 + $0x5c] sm:$0xf]
        %v2623 = vld [vmem:[%s2453 + $0x60] sm:$0x1]
        %v2624 = vld [vmem:[%s2453 + $0x64] sm:$0xf]
        %v2625 = vld [vmem:[%s2453 + $0x68] sm:$0xf]
        %v2626 = vld [vmem:[%s2453 + $0x6c] sm:$0xf]
        %v2627 = vld [vmem:[%s2453 + $0x70] sm:$0xf]
        %v2628 = vld [vmem:[%s2453 + $0x74] sm:$0x1]
        %v2629 = vld [vmem:[%s2453 + $0x78] sm:$0xf]
        %v2630 = vld [vmem:[%s2453 + $0x7c] sm:$0xf]
        %v2631 = vld [vmem:[%s2453 + $0x80] sm:$0xf]
        %v2632 = vld [vmem:[%s2453 + $0x84] sm:$0xf]
        %v2633 = vld [vmem:[%s2453 + $0x88] sm:$0x1]
        %v2634 = vld [vmem:[%s2453 + $0x8c] sm:$0xf]
        %v2635 = vld [vmem:[%s2453 + $0x90] sm:$0xf]
        %v2636 = vld [vmem:[%s2453 + $0x94] sm:$0xf]
        %v2637 = vld [vmem:[%s2453 + $0x98] sm:$0xf]
        %v2638 = vld [vmem:[%s2453 + $0x9c] sm:$0x1]
        %vm2639 = vsmask.f32 3328
        %vm2640 = vsmask.f32 7440
        %vm2641 = vmor %vm2639, %vm2640
        %v2643 = vshrl.u32 %v2599, 16
        %v2645 = vrot.slane %v2643, 4
        %v2646 = vshll.u32 %v2599, 16
        %v2648 = vrot.slane %v2646, 5
        %v2649 = vor.u32 %v2645, %v2648
        %v2650 = vrot.slane %v2649, 4
        %v2652 = vshll.u32 %v2600, 16
        %v2654 = vrot.slane %v2652, 5
        %v2655 = vsel %vm2641, %v2650, %v2654
        %v2656 = vshrl.u32 %v2600, 16
        %v2658 = vrot.slane %v2656, 4
        %v2659 = vor.u32 %v2658, %v2654
        %v2660 = vrot.slane %v2659, 4
        %v2662 = vshll.u32 %v2601, 16
        %v2664 = vrot.slane %v2662, 5
        %v2665 = vsel %vm2641, %v2660, %v2664
        %v2666 = vshrl.u32 %v2601, 16
        %v2668 = vrot.slane %v2666, 4
        %v2669 = vor.u32 %v2668, %v2664
        %v2670 = vrot.slane %v2669, 4
        %v2672 = vshll.u32 %v2602, 16
        %v2674 = vrot.slane %v2672, 5
        %v2675 = vsel %vm2641, %v2670, %v2674
        %v2676 = vshrl.u32 %v2602, 16
        %v2678 = vrot.slane %v2676, 4
        %v2679 = vor.u32 %v2678, %v2674
        %v2680 = vrot.slane %v2679, 4
        %v2682 = vshll.u32 %v2603, 16
        %v2684 = vrot.slane %v2682, 5
        %v2685 = vsel %vm2641, %v2680, %v2684
        %v2687 = vshrl.u32 %v2604, 16
        %v2689 = vrot.slane %v2687, 4
        %v2690 = vshll.u32 %v2604, 16
        %v2692 = vrot.slane %v2690, 5
        %v2693 = vor.u32 %v2689, %v2692
        %v2694 = vrot.slane %v2693, 4
        %v2696 = vshll.u32 %v2605, 16
        %v2698 = vrot.slane %v2696, 5
        %v2699 = vsel %vm2641, %v2694, %v2698
        %v2700 = vshrl.u32 %v2605, 16
        %v2702 = vrot.slane %v2700, 4
        %v2703 = vor.u32 %v2702, %v2698
        %v2704 = vrot.slane %v2703, 4
        %v2706 = vshll.u32 %v2606, 16
        %v2708 = vrot.slane %v2706, 5
        %v2709 = vsel %vm2641, %v2704, %v2708
        %v2710 = vshrl.u32 %v2606, 16
        %v2712 = vrot.slane %v2710, 4
        %v2713 = vor.u32 %v2712, %v2708
        %v2714 = vrot.slane %v2713, 4
        %v2716 = vshll.u32 %v2607, 16
        %v2718 = vrot.slane %v2716, 5
        %v2719 = vsel %vm2641, %v2714, %v2718
        %v2720 = vshrl.u32 %v2607, 16
        %v2722 = vrot.slane %v2720, 4
        %v2723 = vor.u32 %v2722, %v2718
        %v2724 = vrot.slane %v2723, 4
        %v2726 = vshll.u32 %v2608, 16
        %v2728 = vrot.slane %v2726, 5
        %v2729 = vsel %vm2641, %v2724, %v2728
        %v2731 = vshrl.u32 %v2609, 16
        %v2733 = vrot.slane %v2731, 4
        %v2734 = vshll.u32 %v2609, 16
        %v2736 = vrot.slane %v2734, 5
        %v2737 = vor.u32 %v2733, %v2736
        %v2738 = vrot.slane %v2737, 4
        %v2740 = vshll.u32 %v2610, 16
        %v2742 = vrot.slane %v2740, 5
        %v2743 = vsel %vm2641, %v2738, %v2742
        %v2744 = vshrl.u32 %v2610, 16
        %v2746 = vrot.slane %v2744, 4
        %v2747 = vor.u32 %v2746, %v2742
        %v2748 = vrot.slane %v2747, 4
        %v2750 = vshll.u32 %v2611, 16
        %v2752 = vrot.slane %v2750, 5
        %v2753 = vsel %vm2641, %v2748, %v2752
        %v2754 = vshrl.u32 %v2611, 16
        %v2756 = vrot.slane %v2754, 4
        %v2757 = vor.u32 %v2756, %v2752
        %v2758 = vrot.slane %v2757, 4
        %v2760 = vshll.u32 %v2612, 16
        %v2762 = vrot.slane %v2760, 5
        %v2763 = vsel %vm2641, %v2758, %v2762
        %v2764 = vshrl.u32 %v2612, 16
        %v2766 = vrot.slane %v2764, 4
        %v2767 = vor.u32 %v2766, %v2762
        %v2768 = vrot.slane %v2767, 4
        %v2770 = vshll.u32 %v2613, 16
        %v2772 = vrot.slane %v2770, 5
        %v2773 = vsel %vm2641, %v2768, %v2772
        %v2775 = vshrl.u32 %v2614, 16
        %v2777 = vrot.slane %v2775, 4
        %v2778 = vshll.u32 %v2614, 16
        %v2780 = vrot.slane %v2778, 5
        %v2781 = vor.u32 %v2777, %v2780
        %v2782 = vrot.slane %v2781, 4
        %v2784 = vshll.u32 %v2615, 16
        %v2786 = vrot.slane %v2784, 5
        %v2787 = vsel %vm2641, %v2782, %v2786
        %v2788 = vshrl.u32 %v2615, 16
        %v2790 = vrot.slane %v2788, 4
        %v2791 = vor.u32 %v2790, %v2786
        %v2792 = vrot.slane %v2791, 4
        %v2794 = vshll.u32 %v2616, 16
        %v2796 = vrot.slane %v2794, 5
        %v2797 = vsel %vm2641, %v2792, %v2796
        %v2798 = vshrl.u32 %v2616, 16
        %v2800 = vrot.slane %v2798, 4
        %v2801 = vor.u32 %v2800, %v2796
        %v2802 = vrot.slane %v2801, 4
        %v2804 = vshll.u32 %v2617, 16
        %v2806 = vrot.slane %v2804, 5
        %v2807 = vsel %vm2641, %v2802, %v2806
        %v2808 = vshrl.u32 %v2617, 16
        %v2810 = vrot.slane %v2808, 4
        %v2811 = vor.u32 %v2810, %v2806
        %v2812 = vrot.slane %v2811, 4
        %v2814 = vshll.u32 %v2618, 16
        %v2816 = vrot.slane %v2814, 5
        %v2817 = vsel %vm2641, %v2812, %v2816
        %v2819 = vshrl.u32 %v2619, 16
        %v2821 = vrot.slane %v2819, 4
        %v2822 = vshll.u32 %v2619, 16
        %v2824 = vrot.slane %v2822, 5
        %v2825 = vor.u32 %v2821, %v2824
        %v2826 = vrot.slane %v2825, 4
        %v2828 = vshll.u32 %v2620, 16
        %v2830 = vrot.slane %v2828, 5
        %v2831 = vsel %vm2641, %v2826, %v2830
        %v2832 = vshrl.u32 %v2620, 16
        %v2834 = vrot.slane %v2832, 4
        %v2835 = vor.u32 %v2834, %v2830
        %v2836 = vrot.slane %v2835, 4
        %v2838 = vshll.u32 %v2621, 16
        %v2840 = vrot.slane %v2838, 5
        %v2841 = vsel %vm2641, %v2836, %v2840
        %v2842 = vshrl.u32 %v2621, 16
        %v2844 = vrot.slane %v2842, 4
        %v2845 = vor.u32 %v2844, %v2840
        %v2846 = vrot.slane %v2845, 4
        %v2848 = vshll.u32 %v2622, 16
        %v2850 = vrot.slane %v2848, 5
        %v2851 = vsel %vm2641, %v2846, %v2850
        %v2852 = vshrl.u32 %v2622, 16
        %v2854 = vrot.slane %v2852, 4
        %v2855 = vor.u32 %v2854, %v2850
        %v2856 = vrot.slane %v2855, 4
        %v2858 = vshll.u32 %v2623, 16
        %v2860 = vrot.slane %v2858, 5
        %v2861 = vsel %vm2641, %v2856, %v2860
        %v2863 = vshrl.u32 %v2624, 16
        %v2865 = vrot.slane %v2863, 4
        %v2866 = vshll.u32 %v2624, 16
        %v2868 = vrot.slane %v2866, 5
        %v2869 = vor.u32 %v2865, %v2868
        %v2870 = vrot.slane %v2869, 4
        %v2872 = vshll.u32 %v2625, 16
        %v2874 = vrot.slane %v2872, 5
        %v2875 = vsel %vm2641, %v2870, %v2874
        %v2876 = vshrl.u32 %v2625, 16
        %v2878 = vrot.slane %v2876, 4
        %v2879 = vor.u32 %v2878, %v2874
        %v2880 = vrot.slane %v2879, 4
        %v2882 = vshll.u32 %v2626, 16
        %v2884 = vrot.slane %v2882, 5
        %v2885 = vsel %vm2641, %v2880, %v2884
        %v2886 = vshrl.u32 %v2626, 16
        %v2888 = vrot.slane %v2886, 4
        %v2889 = vor.u32 %v2888, %v2884
        %v2890 = vrot.slane %v2889, 4
        %v2892 = vshll.u32 %v2627, 16
        %v2894 = vrot.slane %v2892, 5
        %v2895 = vsel %vm2641, %v2890, %v2894
        %v2896 = vshrl.u32 %v2627, 16
        %v2898 = vrot.slane %v2896, 4
        %v2899 = vor.u32 %v2898, %v2894
        %v2900 = vrot.slane %v2899, 4
        %v2902 = vshll.u32 %v2628, 16
        %v2904 = vrot.slane %v2902, 5
        %v2905 = vsel %vm2641, %v2900, %v2904
        %v2907 = vshrl.u32 %v2629, 16
        %v2909 = vrot.slane %v2907, 4
        %v2910 = vshll.u32 %v2629, 16
        %v2912 = vrot.slane %v2910, 5
        %v2913 = vor.u32 %v2909, %v2912
        %v2914 = vrot.slane %v2913, 4
        %v2916 = vshll.u32 %v2630, 16
        %v2918 = vrot.slane %v2916, 5
        %v2919 = vsel %vm2641, %v2914, %v2918
        %v2920 = vshrl.u32 %v2630, 16
        %v2922 = vrot.slane %v2920, 4
        %v2923 = vor.u32 %v2922, %v2918
        %v2924 = vrot.slane %v2923, 4
        %v2926 = vshll.u32 %v2631, 16
        %v2928 = vrot.slane %v2926, 5
        %v2929 = vsel %vm2641, %v2924, %v2928
        %v2930 = vshrl.u32 %v2631, 16
        %v2932 = vrot.slane %v2930, 4
        %v2933 = vor.u32 %v2932, %v2928
        %v2934 = vrot.slane %v2933, 4
        %v2936 = vshll.u32 %v2632, 16
        %v2938 = vrot.slane %v2936, 5
        %v2939 = vsel %vm2641, %v2934, %v2938
        %v2940 = vshrl.u32 %v2632, 16
        %v2942 = vrot.slane %v2940, 4
        %v2943 = vor.u32 %v2942, %v2938
        %v2944 = vrot.slane %v2943, 4
        %v2946 = vshll.u32 %v2633, 16
        %v2948 = vrot.slane %v2946, 5
        %v2949 = vsel %vm2641, %v2944, %v2948
        %v2951 = vshrl.u32 %v2634, 16
        %v2953 = vrot.slane %v2951, 4
        %v2954 = vshll.u32 %v2634, 16
        %v2956 = vrot.slane %v2954, 5
        %v2957 = vor.u32 %v2953, %v2956
        %v2958 = vrot.slane %v2957, 4
        %v2960 = vshll.u32 %v2635, 16
        %v2962 = vrot.slane %v2960, 5
        %v2963 = vsel %vm2641, %v2958, %v2962
        %v2964 = vshrl.u32 %v2635, 16
        %v2966 = vrot.slane %v2964, 4
        %v2967 = vor.u32 %v2966, %v2962
        %v2968 = vrot.slane %v2967, 4
        %v2970 = vshll.u32 %v2636, 16
        %v2972 = vrot.slane %v2970, 5
        %v2973 = vsel %vm2641, %v2968, %v2972
        %v2974 = vshrl.u32 %v2636, 16
        %v2976 = vrot.slane %v2974, 4
        %v2977 = vor.u32 %v2976, %v2972
        %v2978 = vrot.slane %v2977, 4
        %v2980 = vshll.u32 %v2637, 16
        %v2982 = vrot.slane %v2980, 5
        %v2983 = vsel %vm2641, %v2978, %v2982
        %v2984 = vshrl.u32 %v2637, 16
        %v2986 = vrot.slane %v2984, 4
        %v2987 = vor.u32 %v2986, %v2982
        %v2988 = vrot.slane %v2987, 4
        %v2990 = vshll.u32 %v2638, 16
        %v2992 = vrot.slane %v2990, 5
        %v2993 = vsel %vm2641, %v2988, %v2992
        %v2994 = vunpack.c.l.b16 %v2655
        %v2995 = vunpack.c.l.b16 %v2665
        %v2996 = vunpack.c.l.b16 %v2675
        %v2997 = vunpack.c.l.b16 %v2685
        %v2998 = vunpack.c.l.b16 %v2699
        %v2999 = vunpack.c.l.b16 %v2709
        %v3000 = vunpack.c.l.b16 %v2719
        %v3001 = vunpack.c.l.b16 %v2729
        %v3002 = vunpack.c.l.b16 %v2743
        %v3003 = vunpack.c.l.b16 %v2753
        %v3004 = vunpack.c.l.b16 %v2763
        %v3005 = vunpack.c.l.b16 %v2773
        %v3006 = vunpack.c.l.b16 %v2787
        %v3007 = vunpack.c.l.b16 %v2797
        %v3008 = vunpack.c.l.b16 %v2807
        %v3009 = vunpack.c.l.b16 %v2817
        %v3010 = vunpack.c.l.b16 %v2831
        %v3011 = vunpack.c.l.b16 %v2841
        %v3012 = vunpack.c.l.b16 %v2851
        %v3013 = vunpack.c.l.b16 %v2861
        %v3014 = vunpack.c.l.b16 %v2875
        %v3015 = vunpack.c.l.b16 %v2885
        %v3016 = vunpack.c.l.b16 %v2895
        %v3017 = vunpack.c.l.b16 %v2905
        %v3018 = vunpack.c.l.b16 %v2919
        %v3019 = vunpack.c.l.b16 %v2929
        %v3020 = vunpack.c.l.b16 %v2939
        %v3021 = vunpack.c.l.b16 %v2949
        %v3022 = vunpack.c.l.b16 %v2963
        %v3023 = vunpack.c.l.b16 %v2973
        %v3024 = vunpack.c.l.b16 %v2983
        %v3025 = vunpack.c.l.b16 %v2993
        %v3026 = vpack.c.b16 %v2995, %v2994
        %v3027 = vpack.c.b16 %v2997, %v2996
        %v3028 = vpack.c.b16 %v2999, %v2998
        %v3029 = vpack.c.b16 %v3001, %v3000
        %v3030 = vpack.c.b16 %v3003, %v3002
        %v3031 = vpack.c.b16 %v3005, %v3004
        %v3032 = vpack.c.b16 %v3007, %v3006
        %v3033 = vpack.c.b16 %v3009, %v3008
        %v3034 = vpack.c.b16 %v3011, %v3010
        %v3035 = vpack.c.b16 %v3013, %v3012
        %v3036 = vpack.c.b16 %v3015, %v3014
        %v3037 = vpack.c.b16 %v3017, %v3016
        %v3038 = vpack.c.b16 %v3019, %v3018
        %v3039 = vpack.c.b16 %v3021, %v3020
        %v3040 = vpack.c.b16 %v3023, %v3022
        %v3041 = vpack.c.b16 %v3025, %v3024
        %3042 = vrot.lane.b32.xlu0 %v3026, 3
        %v3043 = vpop.permute.xlu0 %3042
        %3044 = vrot.lane.b32.xlu0 %v3027, 3
        %v3045 = vpop.permute.xlu0 %3044
        %3046 = vrot.lane.b32.xlu0 %v3028, 3
        %v3047 = vpop.permute.xlu0 %3046
        %3048 = vrot.lane.b32.xlu0 %v3029, 3
        %v3049 = vpop.permute.xlu0 %3048
        %3050 = vrot.lane.b32.xlu0 %v3030, 3
        %v3051 = vpop.permute.xlu0 %3050
        %3052 = vrot.lane.b32.xlu0 %v3031, 3
        %v3053 = vpop.permute.xlu0 %3052
        %3054 = vrot.lane.b32.xlu0 %v3032, 3
        %v3055 = vpop.permute.xlu0 %3054
        %3056 = vrot.lane.b32.xlu0 %v3033, 3
        %v3057 = vpop.permute.xlu0 %3056
        %3058 = vrot.lane.b32.xlu0 %v3034, 3
        %v3059 = vpop.permute.xlu0 %3058
        %3060 = vrot.lane.b32.xlu0 %v3035, 3
        %v3061 = vpop.permute.xlu0 %3060
        %3062 = vrot.lane.b32.xlu0 %v3036, 3
        %v3063 = vpop.permute.xlu0 %3062
        %3064 = vrot.lane.b32.xlu0 %v3037, 3
        %v3065 = vpop.permute.xlu0 %3064
        %3066 = vrot.lane.b32.xlu0 %v3038, 3
        %v3067 = vpop.permute.xlu0 %3066
        %3068 = vrot.lane.b32.xlu0 %v3039, 3
        %v3069 = vpop.permute.xlu0 %3068
        %3070 = vrot.lane.b32.xlu0 %v3040, 3
        %v3071 = vpop.permute.xlu0 %3070
        %3072 = vrot.lane.b32.xlu0 %v3041, 3
        %v3073 = vpop.permute.xlu0 %3072
        %vm3090 = vcmask 48152
        %3091 = vst.msk [vmem:[#allocation3] sm:$0xff] %vm3090, %v3043
        %3092 = vst.msk [vmem:[#allocation3 + $0x8] sm:$0xff] %vm3090, %v3045
        %3093 = vst.msk [vmem:[#allocation3 + $0x10] sm:$0xff] %vm3090, %v3047
        %3094 = vst.msk [vmem:[#allocation3 + $0x18] sm:$0xff] %vm3090, %v3049
        %3095 = vst.msk [vmem:[#allocation3 + $0x20] sm:$0xff] %vm3090, %v3051
        %3096 = vst.msk [vmem:[#allocation3 + $0x28] sm:$0xff] %vm3090, %v3053
        %3097 = vst.msk [vmem:[#allocation3 + $0x30] sm:$0xff] %vm3090, %v3055
        %3098 = vst.msk [vmem:[#allocation3 + $0x38] sm:$0xff] %vm3090, %v3057
        %3099 = vst.msk [vmem:[#allocation3 + $0x40] sm:$0xff] %vm3090, %v3059
        %3100 = vst.msk [vmem:[#allocation3 + $0x48] sm:$0xff] %vm3090, %v3061
        %3101 = vst.msk [vmem:[#allocation3 + $0x50] sm:$0xff] %vm3090, %v3063
        %3102 = vst.msk [vmem:[#allocation3 + $0x58] sm:$0xff] %vm3090, %v3065
        %3103 = vst.msk [vmem:[#allocation3 + $0x60] sm:$0xff] %vm3090, %v3067
        %3104 = vst.msk [vmem:[#allocation3 + $0x68] sm:$0xff] %vm3090, %v3069
        %3105 = vst.msk [vmem:[#allocation3 + $0x70] sm:$0xff] %vm3090, %v3071
        %3106 = vst.msk [vmem:[#allocation3 + $0x78] sm:$0xff] %vm3090, %v3073
        %v3107 = vld [vmem:[%s2453] sm:$0xe]
        %v3108 = vld [vmem:[%s2453 + $0x4] sm:$0xf]
        %v3109 = vld [vmem:[%s2453 + $0x8] sm:$0xf]
        %v3110 = vld [vmem:[%s2453 + $0xc] sm:$0xf]
        %v3111 = vld [vmem:[%s2453 + $0x10] sm:$0x1]
        %v3112 = vld [vmem:[%s2453 + $0x14] sm:$0xe]
        %v3113 = vld [vmem:[%s2453 + $0x18] sm:$0xf]
        %v3114 = vld [vmem:[%s2453 + $0x1c] sm:$0xf]
        %v3115 = vld [vmem:[%s2453 + $0x20] sm:$0xf]
        %v3116 = vld [vmem:[%s2453 + $0x24] sm:$0x1]
        %v3117 = vld [vmem:[%s2453 + $0x28] sm:$0xe]
        %v3118 = vld [vmem:[%s2453 + $0x2c] sm:$0xf]
        %v3119 = vld [vmem:[%s2453 + $0x30] sm:$0xf]
        %v3120 = vld [vmem:[%s2453 + $0x34] sm:$0xf]
        %v3121 = vld [vmem:[%s2453 + $0x38] sm:$0x1]
        %v3122 = vld [vmem:[%s2453 + $0x3c] sm:$0xe]
        %v3123 = vld [vmem:[%s2453 + $0x40] sm:$0xf]
        %v3124 = vld [vmem:[%s2453 + $0x44] sm:$0xf]
        %v3125 = vld [vmem:[%s2453 + $0x48] sm:$0xf]
        %v3126 = vld [vmem:[%s2453 + $0x4c] sm:$0x1]
        %v3127 = vld [vmem:[%s2453 + $0x50] sm:$0xe]
        %v3128 = vld [vmem:[%s2453 + $0x54] sm:$0xf]
        %v3129 = vld [vmem:[%s2453 + $0x58] sm:$0xf]
        %v3130 = vld [vmem:[%s2453 + $0x5c] sm:$0xf]
        %v3131 = vld [vmem:[%s2453 + $0x60] sm:$0x1]
        %v3132 = vld [vmem:[%s2453 + $0x64] sm:$0xe]
        %v3133 = vld [vmem:[%s2453 + $0x68] sm:$0xf]
        %v3134 = vld [vmem:[%s2453 + $0x6c] sm:$0xf]
        %v3135 = vld [vmem:[%s2453 + $0x70] sm:$0xf]
        %v3136 = vld [vmem:[%s2453 + $0x74] sm:$0x1]
        %v3137 = vld [vmem:[%s2453 + $0x78] sm:$0xe]
        %v3138 = vld [vmem:[%s2453 + $0x7c] sm:$0xf]
        %v3139 = vld [vmem:[%s2453 + $0x80] sm:$0xf]
        %v3140 = vld [vmem:[%s2453 + $0x84] sm:$0xf]
        %v3141 = vld [vmem:[%s2453 + $0x88] sm:$0x1]
        %v3142 = vld [vmem:[%s2453 + $0x8c] sm:$0xe]
        %v3143 = vld [vmem:[%s2453 + $0x90] sm:$0xf]
        %v3144 = vld [vmem:[%s2453 + $0x94] sm:$0xf]
        %v3145 = vld [vmem:[%s2453 + $0x98] sm:$0xf]
        %v3146 = vld [vmem:[%s2453 + $0x9c] sm:$0x1]
        %vm3187 = vcmask 1042432
        %vm3188 = vcmask 1046532
        %vm3189 = vmor %vm3187, %vm3188
        %v3190 = vrot.slane %v3107, 5
        %v3191 = vrot.slane %v3190, 4
        %v3192 = vrot.slane %v3108, 5
        %v3193 = vsel %vm3189, %v3191, %v3192
        %v3194 = vrot.slane %v3192, 4
        %v3195 = vrot.slane %v3109, 5
        %v3196 = vsel %vm3189, %v3194, %v3195
        %v3197 = vrot.slane %v3195, 4
        %v3198 = vrot.slane %v3110, 5
        %v3199 = vsel %vm3189, %v3197, %v3198
        %v3200 = vrot.slane %v3198, 4
        %v3201 = vrot.slane %v3111, 5
        %v3202 = vsel %vm3189, %v3200, %v3201
        %v3203 = vrot.slane %v3112, 5
        %v3204 = vrot.slane %v3203, 4
        %v3205 = vrot.slane %v3113, 5
        %v3206 = vsel %vm3189, %v3204, %v3205
        %v3207 = vrot.slane %v3205, 4
        %v3208 = vrot.slane %v3114, 5
        %v3209 = vsel %vm3189, %v3207, %v3208
        %v3210 = vrot.slane %v3208, 4
        %v3211 = vrot.slane %v3115, 5
        %v3212 = vsel %vm3189, %v3210, %v3211
        %v3213 = vrot.slane %v3211, 4
        %v3214 = vrot.slane %v3116, 5
        %v3215 = vsel %vm3189, %v3213, %v3214
        %v3216 = vrot.slane %v3117, 5
        %v3217 = vrot.slane %v3216, 4
        %v3218 = vrot.slane %v3118, 5
        %v3219 = vsel %vm3189, %v3217, %v3218
        %v3220 = vrot.slane %v3218, 4
        %v3221 = vrot.slane %v3119, 5
        %v3222 = vsel %vm3189, %v3220, %v3221
        %v3223 = vrot.slane %v3221, 4
        %v3224 = vrot.slane %v3120, 5
        %v3225 = vsel %vm3189, %v3223, %v3224
        %v3226 = vrot.slane %v3224, 4
        %v3227 = vrot.slane %v3121, 5
        %v3228 = vsel %vm3189, %v3226, %v3227
        %v3229 = vrot.slane %v3122, 5
        %v3230 = vrot.slane %v3229, 4
        %v3231 = vrot.slane %v3123, 5
        %v3232 = vsel %vm3189, %v3230, %v3231
        %v3233 = vrot.slane %v3231, 4
        %v3234 = vrot.slane %v3124, 5
        %v3235 = vsel %vm3189, %v3233, %v3234
        %v3236 = vrot.slane %v3234, 4
        %v3237 = vrot.slane %v3125, 5
        %v3238 = vsel %vm3189, %v3236, %v3237
        %v3239 = vrot.slane %v3237, 4
        %v3240 = vrot.slane %v3126, 5
        %v3241 = vsel %vm3189, %v3239, %v3240
        %v3242 = vrot.slane %v3127, 5
        %v3243 = vrot.slane %v3242, 4
        %v3244 = vrot.slane %v3128, 5
        %v3245 = vsel %vm3189, %v3243, %v3244
        %v3246 = vrot.slane %v3244, 4
        %v3247 = vrot.slane %v3129, 5
        %v3248 = vsel %vm3189, %v3246, %v3247
        %v3249 = vrot.slane %v3247, 4
        %v3250 = vrot.slane %v3130, 5
        %v3251 = vsel %vm3189, %v3249, %v3250
        %v3252 = vrot.slane %v3250, 4
        %v3253 = vrot.slane %v3131, 5
        %v3254 = vsel %vm3189, %v3252, %v3253
        %v3255 = vrot.slane %v3132, 5
        %v3256 = vrot.slane %v3255, 4
        %v3257 = vrot.slane %v3133, 5
        %v3258 = vsel %vm3189, %v3256, %v3257
        %v3259 = vrot.slane %v3257, 4
        %v3260 = vrot.slane %v3134, 5
        %v3261 = vsel %vm3189, %v3259, %v3260
        %v3262 = vrot.slane %v3260, 4
        %v3263 = vrot.slane %v3135, 5
        %v3264 = vsel %vm3189, %v3262, %v3263
        %v3265 = vrot.slane %v3263, 4
        %v3266 = vrot.slane %v3136, 5
        %v3267 = vsel %vm3189, %v3265, %v3266
        %v3268 = vrot.slane %v3137, 5
        %v3269 = vrot.slane %v3268, 4
        %v3270 = vrot.slane %v3138, 5
        %v3271 = vsel %vm3189, %v3269, %v3270
        %v3272 = vrot.slane %v3270, 4
        %v3273 = vrot.slane %v3139, 5
        %v3274 = vsel %vm3189, %v3272, %v3273
        %v3275 = vrot.slane %v3273, 4
        %v3276 = vrot.slane %v3140, 5
        %v3277 = vsel %vm3189, %v3275, %v3276
        %v3278 = vrot.slane %v3276, 4
        %v3279 = vrot.slane %v3141, 5
        %v3280 = vsel %vm3189, %v3278, %v3279
        %v3281 = vrot.slane %v3142, 5
        %v3282 = vrot.slane %v3281, 4
        %v3283 = vrot.slane %v3143, 5
        %v3284 = vsel %vm3189, %v3282, %v3283
        %v3285 = vrot.slane %v3283, 4
        %v3286 = vrot.slane %v3144, 5
        %v3287 = vsel %vm3189, %v3285, %v3286
        %v3288 = vrot.slane %v3286, 4
        %v3289 = vrot.slane %v3145, 5
        %v3290 = vsel %vm3189, %v3288, %v3289
        %v3291 = vrot.slane %v3289, 4
        %v3292 = vrot.slane %v3146, 5
        %v3293 = vsel %vm3189, %v3291, %v3292
        %v3294 = vunpack.c.l.b16 %v3193
        %v3295 = vunpack.c.l.b16 %v3196
        %v3296 = vunpack.c.l.b16 %v3199
        %v3297 = vunpack.c.l.b16 %v3202
        %v3298 = vunpack.c.l.b16 %v3206
        %v3299 = vunpack.c.l.b16 %v3209
        %v3300 = vunpack.c.l.b16 %v3212
        %v3301 = vunpack.c.l.b16 %v3215
        %v3302 = vunpack.c.l.b16 %v3219
        %v3303 = vunpack.c.l.b16 %v3222
        %v3304 = vunpack.c.l.b16 %v3225
        %v3305 = vunpack.c.l.b16 %v3228
        %v3306 = vunpack.c.l.b16 %v3232
        %v3307 = vunpack.c.l.b16 %v3235
        %v3308 = vunpack.c.l.b16 %v3238
        %v3309 = vunpack.c.l.b16 %v3241
        %v3310 = vunpack.c.l.b16 %v3245
        %v3311 = vunpack.c.l.b16 %v3248
        %v3312 = vunpack.c.l.b16 %v3251
        %v3313 = vunpack.c.l.b16 %v3254
        %v3314 = vunpack.c.l.b16 %v3258
        %v3315 = vunpack.c.l.b16 %v3261
        %v3316 = vunpack.c.l.b16 %v3264
        %v3317 = vunpack.c.l.b16 %v3267
        %v3318 = vunpack.c.l.b16 %v3271
        %v3319 = vunpack.c.l.b16 %v3274
        %v3320 = vunpack.c.l.b16 %v3277
        %v3321 = vunpack.c.l.b16 %v3280
        %v3322 = vunpack.c.l.b16 %v3284
        %v3323 = vunpack.c.l.b16 %v3287
        %v3324 = vunpack.c.l.b16 %v3290
        %v3325 = vunpack.c.l.b16 %v3293
        %v3326 = vpack.c.b16 %v3295, %v3294
        %v3327 = vpack.c.b16 %v3297, %v3296
        %v3328 = vpack.c.b16 %v3299, %v3298
        %v3329 = vpack.c.b16 %v3301, %v3300
        %v3330 = vpack.c.b16 %v3303, %v3302
        %v3331 = vpack.c.b16 %v3305, %v3304
        %v3332 = vpack.c.b16 %v3307, %v3306
        %v3333 = vpack.c.b16 %v3309, %v3308
        %v3334 = vpack.c.b16 %v3311, %v3310
        %v3335 = vpack.c.b16 %v3313, %v3312
        %v3336 = vpack.c.b16 %v3315, %v3314
        %v3337 = vpack.c.b16 %v3317, %v3316
        %v3338 = vpack.c.b16 %v3319, %v3318
        %v3339 = vpack.c.b16 %v3321, %v3320
        %v3340 = vpack.c.b16 %v3323, %v3322
        %v3341 = vpack.c.b16 %v3325, %v3324
        %3342 = vrot.lane.b32.xlu0 %v3326, 6
        %v3343 = vpop.permute.xlu0 %3342
        %3344 = vrot.lane.b32.xlu0 %v3327, 6
        %v3345 = vpop.permute.xlu0 %3344
        %3346 = vrot.lane.b32.xlu0 %v3328, 6
        %v3347 = vpop.permute.xlu0 %3346
        %3348 = vrot.lane.b32.xlu0 %v3329, 6
        %v3349 = vpop.permute.xlu0 %3348
        %3350 = vrot.lane.b32.xlu0 %v3330, 6
        %v3351 = vpop.permute.xlu0 %3350
        %3352 = vrot.lane.b32.xlu0 %v3331, 6
        %v3353 = vpop.permute.xlu0 %3352
        %3354 = vrot.lane.b32.xlu0 %v3332, 6
        %v3355 = vpop.permute.xlu0 %3354
        %3356 = vrot.lane.b32.xlu0 %v3333, 6
        %v3357 = vpop.permute.xlu0 %3356
        %3358 = vrot.lane.b32.xlu0 %v3334, 6
        %v3359 = vpop.permute.xlu0 %3358
        %3360 = vrot.lane.b32.xlu0 %v3335, 6
        %v3361 = vpop.permute.xlu0 %3360
        %3362 = vrot.lane.b32.xlu0 %v3336, 6
        %v3363 = vpop.permute.xlu0 %3362
        %3364 = vrot.lane.b32.xlu0 %v3337, 6
        %v3365 = vpop.permute.xlu0 %3364
        %3366 = vrot.lane.b32.xlu0 %v3338, 6
        %v3367 = vpop.permute.xlu0 %3366
        %3368 = vrot.lane.b32.xlu0 %v3339, 6
        %v3369 = vpop.permute.xlu0 %3368
        %3370 = vrot.lane.b32.xlu0 %v3340, 6
        %v3371 = vpop.permute.xlu0 %3370
        %3372 = vrot.lane.b32.xlu0 %v3341, 6
        %v3373 = vpop.permute.xlu0 %3372
        %vm3390 = vcmask 72752
        %3391 = vst.msk [vmem:[#allocation3] sm:$0xff] %vm3390, %v3343
        %3392 = vst.msk [vmem:[#allocation3 + $0x8] sm:$0xff] %vm3390, %v3345
        %3393 = vst.msk [vmem:[#allocation3 + $0x10] sm:$0xff] %vm3390, %v3347
        %3394 = vst.msk [vmem:[#allocation3 + $0x18] sm:$0xff] %vm3390, %v3349
        %3395 = vst.msk [vmem:[#allocation3 + $0x20] sm:$0xff] %vm3390, %v3351
        %3396 = vst.msk [vmem:[#allocation3 + $0x28] sm:$0xff] %vm3390, %v3353
        %3397 = vst.msk [vmem:[#allocation3 + $0x30] sm:$0xff] %vm3390, %v3355
        %3398 = vst.msk [vmem:[#allocation3 + $0x38] sm:$0xff] %vm3390, %v3357
        %3399 = vst.msk [vmem:[#allocation3 + $0x40] sm:$0xff] %vm3390, %v3359
        %3400 = vst.msk [vmem:[#allocation3 + $0x48] sm:$0xff] %vm3390, %v3361
        %3401 = vst.msk [vmem:[#allocation3 + $0x50] sm:$0xff] %vm3390, %v3363
        %3402 = vst.msk [vmem:[#allocation3 + $0x58] sm:$0xff] %vm3390, %v3365
        %3403 = vst.msk [vmem:[#allocation3 + $0x60] sm:$0xff] %vm3390, %v3367
        %3404 = vst.msk [vmem:[#allocation3 + $0x68] sm:$0xff] %vm3390, %v3369
        %3405 = vst.msk [vmem:[#allocation3 + $0x70] sm:$0xff] %vm3390, %v3371
        %3406 = vst.msk [vmem:[#allocation3 + $0x78] sm:$0xff] %vm3390, %v3373
        %s3407 = sadd.s32 %s2450, 1
        %s3408 = smul.u32 %s3407, 5
        %s3409 = smul.addr %s3408, 4
        %s3410 = scalar_lea.vmem [#allocation2], %s3409
        %v3411 = vld [vmem:[%s3410] sm:$0xf]
        %v3412 = vld [vmem:[%s3410 + $0x4] sm:$0xf]
        %v3413 = vld [vmem:[%s3410 + $0x8] sm:$0xf]
        %v3414 = vld [vmem:[%s3410 + $0xc] sm:$0xf]
        %v3415 = vld [vmem:[%s3410 + $0x14] sm:$0xf]
        %v3416 = vld [vmem:[%s3410 + $0x18] sm:$0xf]
        %v3417 = vld [vmem:[%s3410 + $0x1c] sm:$0xf]
        %v3418 = vld [vmem:[%s3410 + $0x20] sm:$0xf]
        %v3419 = vld [vmem:[%s3410 + $0x28] sm:$0xf]
        %v3420 = vld [vmem:[%s3410 + $0x2c] sm:$0xf]
        %v3421 = vld [vmem:[%s3410 + $0x30] sm:$0xf]
        %v3422 = vld [vmem:[%s3410 + $0x34] sm:$0xf]
        %v3423 = vld [vmem:[%s3410 + $0x3c] sm:$0xf]
        %v3424 = vld [vmem:[%s3410 + $0x40] sm:$0xf]
        %v3425 = vld [vmem:[%s3410 + $0x44] sm:$0xf]
        %v3426 = vld [vmem:[%s3410 + $0x48] sm:$0xf]
        %v3427 = vld [vmem:[%s3410 + $0x50] sm:$0xf]
        %v3428 = vld [vmem:[%s3410 + $0x54] sm:$0xf]
        %v3429 = vld [vmem:[%s3410 + $0x58] sm:$0xf]
        %v3430 = vld [vmem:[%s3410 + $0x5c] sm:$0xf]
        %v3431 = vld [vmem:[%s3410 + $0x64] sm:$0xf]
        %v3432 = vld [vmem:[%s3410 + $0x68] sm:$0xf]
        %v3433 = vld [vmem:[%s3410 + $0x6c] sm:$0xf]
        %v3434 = vld [vmem:[%s3410 + $0x70] sm:$0xf]
        %v3435 = vld [vmem:[%s3410 + $0x78] sm:$0xf]
        %v3436 = vld [vmem:[%s3410 + $0x7c] sm:$0xf]
        %v3437 = vld [vmem:[%s3410 + $0x80] sm:$0xf]
        %v3438 = vld [vmem:[%s3410 + $0x84] sm:$0xf]
        %v3439 = vld [vmem:[%s3410 + $0x8c] sm:$0xf]
        %v3440 = vld [vmem:[%s3410 + $0x90] sm:$0xf]
        %v3441 = vld [vmem:[%s3410 + $0x94] sm:$0xf]
        %v3442 = vld [vmem:[%s3410 + $0x98] sm:$0xf]
        %v3475 = vunpack.c.l.b16 %v3411
        %v3476 = vunpack.c.l.b16 %v3412
        %v3477 = vunpack.c.l.b16 %v3413
        %v3478 = vunpack.c.l.b16 %v3414
        %v3479 = vunpack.c.l.b16 %v3415
        %v3480 = vunpack.c.l.b16 %v3416
        %v3481 = vunpack.c.l.b16 %v3417
        %v3482 = vunpack.c.l.b16 %v3418
        %v3483 = vunpack.c.l.b16 %v3419
        %v3484 = vunpack.c.l.b16 %v3420
        %v3485 = vunpack.c.l.b16 %v3421
        %v3486 = vunpack.c.l.b16 %v3422
        %v3487 = vunpack.c.l.b16 %v3423
        %v3488 = vunpack.c.l.b16 %v3424
        %v3489 = vunpack.c.l.b16 %v3425
        %v3490 = vunpack.c.l.b16 %v3426
        %v3491 = vunpack.c.l.b16 %v3427
        %v3492 = vunpack.c.l.b16 %v3428
        %v3493 = vunpack.c.l.b16 %v3429
        %v3494 = vunpack.c.l.b16 %v3430
        %v3495 = vunpack.c.l.b16 %v3431
        %v3496 = vunpack.c.l.b16 %v3432
        %v3497 = vunpack.c.l.b16 %v3433
        %v3498 = vunpack.c.l.b16 %v3434
        %v3499 = vunpack.c.l.b16 %v3435
        %v3500 = vunpack.c.l.b16 %v3436
        %v3501 = vunpack.c.l.b16 %v3437
        %v3502 = vunpack.c.l.b16 %v3438
        %v3503 = vunpack.c.l.b16 %v3439
        %v3504 = vunpack.c.l.b16 %v3440
        %v3505 = vunpack.c.l.b16 %v3441
        %v3506 = vunpack.c.l.b16 %v3442
        %v3507 = vpack.c.b16 %v3476, %v3475
        %v3508 = vpack.c.b16 %v3478, %v3477
        %v3509 = vpack.c.b16 %v3480, %v3479
        %v3510 = vpack.c.b16 %v3482, %v3481
        %v3511 = vpack.c.b16 %v3484, %v3483
        %v3512 = vpack.c.b16 %v3486, %v3485
        %v3513 = vpack.c.b16 %v3488, %v3487
        %v3514 = vpack.c.b16 %v3490, %v3489
        %v3515 = vpack.c.b16 %v3492, %v3491
        %v3516 = vpack.c.b16 %v3494, %v3493
        %v3517 = vpack.c.b16 %v3496, %v3495
        %v3518 = vpack.c.b16 %v3498, %v3497
        %v3519 = vpack.c.b16 %v3500, %v3499
        %v3520 = vpack.c.b16 %v3502, %v3501
        %v3521 = vpack.c.b16 %v3504, %v3503
        %v3522 = vpack.c.b16 %v3506, %v3505
        %3523 = vrot.lane.b32.xlu0 %v3507, 9
        %v3524 = vpop.permute.xlu0 %3523
        %3525 = vrot.lane.b32.xlu0 %v3508, 9
        %v3526 = vpop.permute.xlu0 %3525
        %3527 = vrot.lane.b32.xlu0 %v3509, 9
        %v3528 = vpop.permute.xlu0 %3527
        %3529 = vrot.lane.b32.xlu0 %v3510, 9
        %v3530 = vpop.permute.xlu0 %3529
        %3531 = vrot.lane.b32.xlu0 %v3511, 9
        %v3532 = vpop.permute.xlu0 %3531
        %3533 = vrot.lane.b32.xlu0 %v3512, 9
        %v3534 = vpop.permute.xlu0 %3533
        %3535 = vrot.lane.b32.xlu0 %v3513, 9
        %v3536 = vpop.permute.xlu0 %3535
        %3537 = vrot.lane.b32.xlu0 %v3514, 9
        %v3538 = vpop.permute.xlu0 %3537
        %3539 = vrot.lane.b32.xlu0 %v3515, 9
        %v3540 = vpop.permute.xlu0 %3539
        %3541 = vrot.lane.b32.xlu0 %v3516, 9
        %v3542 = vpop.permute.xlu0 %3541
        %3543 = vrot.lane.b32.xlu0 %v3517, 9
        %v3544 = vpop.permute.xlu0 %3543
        %3545 = vrot.lane.b32.xlu0 %v3518, 9
        %v3546 = vpop.permute.xlu0 %3545
        %3547 = vrot.lane.b32.xlu0 %v3519, 9
        %v3548 = vpop.permute.xlu0 %3547
        %3549 = vrot.lane.b32.xlu0 %v3520, 9
        %v3550 = vpop.permute.xlu0 %3549
        %3551 = vrot.lane.b32.xlu0 %v3521, 9
        %v3552 = vpop.permute.xlu0 %3551
        %3553 = vrot.lane.b32.xlu0 %v3522, 9
        %v3554 = vpop.permute.xlu0 %3553
        %vm3571 = vcmask 97352
        %3572 = vst.msk [vmem:[#allocation3] sm:$0xff] %vm3571, %v3524
        %3573 = vst.msk [vmem:[#allocation3 + $0x8] sm:$0xff] %vm3571, %v3526
        %3574 = vst.msk [vmem:[#allocation3 + $0x10] sm:$0xff] %vm3571, %v3528
        %3575 = vst.msk [vmem:[#allocation3 + $0x18] sm:$0xff] %vm3571, %v3530
        %3576 = vst.msk [vmem:[#allocation3 + $0x20] sm:$0xff] %vm3571, %v3532
        %3577 = vst.msk [vmem:[#allocation3 + $0x28] sm:$0xff] %vm3571, %v3534
        %3578 = vst.msk [vmem:[#allocation3 + $0x30] sm:$0xff] %vm3571, %v3536
        %3579 = vst.msk [vmem:[#allocation3 + $0x38] sm:$0xff] %vm3571, %v3538
        %3580 = vst.msk [vmem:[#allocation3 + $0x40] sm:$0xff] %vm3571, %v3540
        %3581 = vst.msk [vmem:[#allocation3 + $0x48] sm:$0xff] %vm3571, %v3542
        %3582 = vst.msk [vmem:[#allocation3 + $0x50] sm:$0xff] %vm3571, %v3544
        %3583 = vst.msk [vmem:[#allocation3 + $0x58] sm:$0xff] %vm3571, %v3546
        %3584 = vst.msk [vmem:[#allocation3 + $0x60] sm:$0xff] %vm3571, %v3548
        %3585 = vst.msk [vmem:[#allocation3 + $0x68] sm:$0xff] %vm3571, %v3550
        %3586 = vst.msk [vmem:[#allocation3 + $0x70] sm:$0xff] %vm3571, %v3552
        %3587 = vst.msk [vmem:[#allocation3 + $0x78] sm:$0xff] %vm3571, %v3554
        %v3588 = vld [vmem:[%s3410] sm:$0xf]
        %v3589 = vld [vmem:[%s3410 + $0x4] sm:$0xf]
        %v3590 = vld [vmem:[%s3410 + $0x8] sm:$0xf]
        %v3591 = vld [vmem:[%s3410 + $0xc] sm:$0xf]
        %v3592 = vld [vmem:[%s3410 + $0x10] sm:$0x1]
        %v3593 = vld [vmem:[%s3410 + $0x14] sm:$0xf]
        %v3594 = vld [vmem:[%s3410 + $0x18] sm:$0xf]
        %v3595 = vld [vmem:[%s3410 + $0x1c] sm:$0xf]
        %v3596 = vld [vmem:[%s3410 + $0x20] sm:$0xf]
        %v3597 = vld [vmem:[%s3410 + $0x24] sm:$0x1]
        %v3598 = vld [vmem:[%s3410 + $0x28] sm:$0xf]
        %v3599 = vld [vmem:[%s3410 + $0x2c] sm:$0xf]
        %v3600 = vld [vmem:[%s3410 + $0x30] sm:$0xf]
        %v3601 = vld [vmem:[%s3410 + $0x34] sm:$0xf]
        %v3602 = vld [vmem:[%s3410 + $0x38] sm:$0x1]
        %v3603 = vld [vmem:[%s3410 + $0x3c] sm:$0xf]
        %v3604 = vld [vmem:[%s3410 + $0x40] sm:$0xf]
        %v3605 = vld [vmem:[%s3410 + $0x44] sm:$0xf]
        %v3606 = vld [vmem:[%s3410 + $0x48] sm:$0xf]
        %v3607 = vld [vmem:[%s3410 + $0x4c] sm:$0x1]
        %v3608 = vld [vmem:[%s3410 + $0x50] sm:$0xf]
        %v3609 = vld [vmem:[%s3410 + $0x54] sm:$0xf]
        %v3610 = vld [vmem:[%s3410 + $0x58] sm:$0xf]
        %v3611 = vld [vmem:[%s3410 + $0x5c] sm:$0xf]
        %v3612 = vld [vmem:[%s3410 + $0x60] sm:$0x1]
        %v3613 = vld [vmem:[%s3410 + $0x64] sm:$0xf]
        %v3614 = vld [vmem:[%s3410 + $0x68] sm:$0xf]
        %v3615 = vld [vmem:[%s3410 + $0x6c] sm:$0xf]
        %v3616 = vld [vmem:[%s3410 + $0x70] sm:$0xf]
        %v3617 = vld [vmem:[%s3410 + $0x74] sm:$0x1]
        %v3618 = vld [vmem:[%s3410 + $0x78] sm:$0xf]
        %v3619 = vld [vmem:[%s3410 + $0x7c] sm:$0xf]
        %v3620 = vld [vmem:[%s3410 + $0x80] sm:$0xf]
        %v3621 = vld [vmem:[%s3410 + $0x84] sm:$0xf]
        %v3622 = vld [vmem:[%s3410 + $0x88] sm:$0x1]
        %v3623 = vld [vmem:[%s3410 + $0x8c] sm:$0xf]
        %v3624 = vld [vmem:[%s3410 + $0x90] sm:$0xf]
        %v3625 = vld [vmem:[%s3410 + $0x94] sm:$0xf]
        %v3626 = vld [vmem:[%s3410 + $0x98] sm:$0xf]
        %v3627 = vld [vmem:[%s3410 + $0x9c] sm:$0x1]
        %v3629 = vshrl.u32 %v3588, 16
        %v3631 = vrot.slane %v3629, 4
        %v3632 = vshll.u32 %v3588, 16
        %v3634 = vrot.slane %v3632, 5
        %v3635 = vor.u32 %v3631, %v3634
        %v3636 = vrot.slane %v3635, 4
        %v3638 = vshll.u32 %v3589, 16
        %v3640 = vrot.slane %v3638, 5
        %v3641 = vsel %vm2641, %v3636, %v3640
        %v3642 = vshrl.u32 %v3589, 16
        %v3644 = vrot.slane %v3642, 4
        %v3645 = vor.u32 %v3644, %v3640
        %v3646 = vrot.slane %v3645, 4
        %v3648 = vshll.u32 %v3590, 16
        %v3650 = vrot.slane %v3648, 5
        %v3651 = vsel %vm2641, %v3646, %v3650
        %v3652 = vshrl.u32 %v3590, 16
        %v3654 = vrot.slane %v3652, 4
        %v3655 = vor.u32 %v3654, %v3650
        %v3656 = vrot.slane %v3655, 4
        %v3658 = vshll.u32 %v3591, 16
        %v3660 = vrot.slane %v3658, 5
        %v3661 = vsel %vm2641, %v3656, %v3660
        %v3662 = vshrl.u32 %v3591, 16
        %v3664 = vrot.slane %v3662, 4
        %v3665 = vor.u32 %v3664, %v3660
        %v3666 = vrot.slane %v3665, 4
        %v3668 = vshll.u32 %v3592, 16
        %v3670 = vrot.slane %v3668, 5
        %v3671 = vsel %vm2641, %v3666, %v3670
        %v3673 = vshrl.u32 %v3593, 16
        %v3675 = vrot.slane %v3673, 4
        %v3676 = vshll.u32 %v3593, 16
        %v3678 = vrot.slane %v3676, 5
        %v3679 = vor.u32 %v3675, %v3678
        %v3680 = vrot.slane %v3679, 4
        %v3682 = vshll.u32 %v3594, 16
        %v3684 = vrot.slane %v3682, 5
        %v3685 = vsel %vm2641, %v3680, %v3684
        %v3686 = vshrl.u32 %v3594, 16
        %v3688 = vrot.slane %v3686, 4
        %v3689 = vor.u32 %v3688, %v3684
        %v3690 = vrot.slane %v3689, 4
        %v3692 = vshll.u32 %v3595, 16
        %v3694 = vrot.slane %v3692, 5
        %v3695 = vsel %vm2641, %v3690, %v3694
        %v3696 = vshrl.u32 %v3595, 16
        %v3698 = vrot.slane %v3696, 4
        %v3699 = vor.u32 %v3698, %v3694
        %v3700 = vrot.slane %v3699, 4
        %v3702 = vshll.u32 %v3596, 16
        %v3704 = vrot.slane %v3702, 5
        %v3705 = vsel %vm2641, %v3700, %v3704
        %v3706 = vshrl.u32 %v3596, 16
        %v3708 = vrot.slane %v3706, 4
        %v3709 = vor.u32 %v3708, %v3704
        %v3710 = vrot.slane %v3709, 4
        %v3712 = vshll.u32 %v3597, 16
        %v3714 = vrot.slane %v3712, 5
        %v3715 = vsel %vm2641, %v3710, %v3714
        %v3717 = vshrl.u32 %v3598, 16
        %v3719 = vrot.slane %v3717, 4
        %v3720 = vshll.u32 %v3598, 16
        %v3722 = vrot.slane %v3720, 5
        %v3723 = vor.u32 %v3719, %v3722
        %v3724 = vrot.slane %v3723, 4
        %v3726 = vshll.u32 %v3599, 16
        %v3728 = vrot.slane %v3726, 5
        %v3729 = vsel %vm2641, %v3724, %v3728
        %v3730 = vshrl.u32 %v3599, 16
        %v3732 = vrot.slane %v3730, 4
        %v3733 = vor.u32 %v3732, %v3728
        %v3734 = vrot.slane %v3733, 4
        %v3736 = vshll.u32 %v3600, 16
        %v3738 = vrot.slane %v3736, 5
        %v3739 = vsel %vm2641, %v3734, %v3738
        %v3740 = vshrl.u32 %v3600, 16
        %v3742 = vrot.slane %v3740, 4
        %v3743 = vor.u32 %v3742, %v3738
        %v3744 = vrot.slane %v3743, 4
        %v3746 = vshll.u32 %v3601, 16
        %v3748 = vrot.slane %v3746, 5
        %v3749 = vsel %vm2641, %v3744, %v3748
        %v3750 = vshrl.u32 %v3601, 16
        %v3752 = vrot.slane %v3750, 4
        %v3753 = vor.u32 %v3752, %v3748
        %v3754 = vrot.slane %v3753, 4
        %v3756 = vshll.u32 %v3602, 16
        %v3758 = vrot.slane %v3756, 5
        %v3759 = vsel %vm2641, %v3754, %v3758
        %v3761 = vshrl.u32 %v3603, 16
        %v3763 = vrot.slane %v3761, 4
        %v3764 = vshll.u32 %v3603, 16
        %v3766 = vrot.slane %v3764, 5
        %v3767 = vor.u32 %v3763, %v3766
        %v3768 = vrot.slane %v3767, 4
        %v3770 = vshll.u32 %v3604, 16
        %v3772 = vrot.slane %v3770, 5
        %v3773 = vsel %vm2641, %v3768, %v3772
        %v3774 = vshrl.u32 %v3604, 16
        %v3776 = vrot.slane %v3774, 4
        %v3777 = vor.u32 %v3776, %v3772
        %v3778 = vrot.slane %v3777, 4
        %v3780 = vshll.u32 %v3605, 16
        %v3782 = vrot.slane %v3780, 5
        %v3783 = vsel %vm2641, %v3778, %v3782
        %v3784 = vshrl.u32 %v3605, 16
        %v3786 = vrot.slane %v3784, 4
        %v3787 = vor.u32 %v3786, %v3782
        %v3788 = vrot.slane %v3787, 4
        %v3790 = vshll.u32 %v3606, 16
        %v3792 = vrot.slane %v3790, 5
        %v3793 = vsel %vm2641, %v3788, %v3792
        %v3794 = vshrl.u32 %v3606, 16
        %v3796 = vrot.slane %v3794, 4
        %v3797 = vor.u32 %v3796, %v3792
        %v3798 = vrot.slane %v3797, 4
        %v3800 = vshll.u32 %v3607, 16
        %v3802 = vrot.slane %v3800, 5
        %v3803 = vsel %vm2641, %v3798, %v3802
        %v3805 = vshrl.u32 %v3608, 16
        %v3807 = vrot.slane %v3805, 4
        %v3808 = vshll.u32 %v3608, 16
        %v3810 = vrot.slane %v3808, 5
        %v3811 = vor.u32 %v3807, %v3810
        %v3812 = vrot.slane %v3811, 4
        %v3814 = vshll.u32 %v3609, 16
        %v3816 = vrot.slane %v3814, 5
        %v3817 = vsel %vm2641, %v3812, %v3816
        %v3818 = vshrl.u32 %v3609, 16
        %v3820 = vrot.slane %v3818, 4
        %v3821 = vor.u32 %v3820, %v3816
        %v3822 = vrot.slane %v3821, 4
        %v3824 = vshll.u32 %v3610, 16
        %v3826 = vrot.slane %v3824, 5
        %v3827 = vsel %vm2641, %v3822, %v3826
        %v3828 = vshrl.u32 %v3610, 16
        %v3830 = vrot.slane %v3828, 4
        %v3831 = vor.u32 %v3830, %v3826
        %v3832 = vrot.slane %v3831, 4
        %v3834 = vshll.u32 %v3611, 16
        %v3836 = vrot.slane %v3834, 5
        %v3837 = vsel %vm2641, %v3832, %v3836
        %v3838 = vshrl.u32 %v3611, 16
        %v3840 = vrot.slane %v3838, 4
        %v3841 = vor.u32 %v3840, %v3836
        %v3842 = vrot.slane %v3841, 4
        %v3844 = vshll.u32 %v3612, 16
        %v3846 = vrot.slane %v3844, 5
        %v3847 = vsel %vm2641, %v3842, %v3846
        %v3849 = vshrl.u32 %v3613, 16
        %v3851 = vrot.slane %v3849, 4
        %v3852 = vshll.u32 %v3613, 16
        %v3854 = vrot.slane %v3852, 5
        %v3855 = vor.u32 %v3851, %v3854
        %v3856 = vrot.slane %v3855, 4
        %v3858 = vshll.u32 %v3614, 16
        %v3860 = vrot.slane %v3858, 5
        %v3861 = vsel %vm2641, %v3856, %v3860
        %v3862 = vshrl.u32 %v3614, 16
        %v3864 = vrot.slane %v3862, 4
        %v3865 = vor.u32 %v3864, %v3860
        %v3866 = vrot.slane %v3865, 4
        %v3868 = vshll.u32 %v3615, 16
        %v3870 = vrot.slane %v3868, 5
        %v3871 = vsel %vm2641, %v3866, %v3870
        %v3872 = vshrl.u32 %v3615, 16
        %v3874 = vrot.slane %v3872, 4
        %v3875 = vor.u32 %v3874, %v3870
        %v3876 = vrot.slane %v3875, 4
        %v3878 = vshll.u32 %v3616, 16
        %v3880 = vrot.slane %v3878, 5
        %v3881 = vsel %vm2641, %v3876, %v3880
        %v3882 = vshrl.u32 %v3616, 16
        %v3884 = vrot.slane %v3882, 4
        %v3885 = vor.u32 %v3884, %v3880
        %v3886 = vrot.slane %v3885, 4
        %v3888 = vshll.u32 %v3617, 16
        %v3890 = vrot.slane %v3888, 5
        %v3891 = vsel %vm2641, %v3886, %v3890
        %v3893 = vshrl.u32 %v3618, 16
        %v3895 = vrot.slane %v3893, 4
        %v3896 = vshll.u32 %v3618, 16
        %v3898 = vrot.slane %v3896, 5
        %v3899 = vor.u32 %v3895, %v3898
        %v3900 = vrot.slane %v3899, 4
        %v3902 = vshll.u32 %v3619, 16
        %v3904 = vrot.slane %v3902, 5
        %v3905 = vsel %vm2641, %v3900, %v3904
        %v3906 = vshrl.u32 %v3619, 16
        %v3908 = vrot.slane %v3906, 4
        %v3909 = vor.u32 %v3908, %v3904
        %v3910 = vrot.slane %v3909, 4
        %v3912 = vshll.u32 %v3620, 16
        %v3914 = vrot.slane %v3912, 5
        %v3915 = vsel %vm2641, %v3910, %v3914
        %v3916 = vshrl.u32 %v3620, 16
        %v3918 = vrot.slane %v3916, 4
        %v3919 = vor.u32 %v3918, %v3914
        %v3920 = vrot.slane %v3919, 4
        %v3922 = vshll.u32 %v3621, 16
        %v3924 = vrot.slane %v3922, 5
        %v3925 = vsel %vm2641, %v3920, %v3924
        %v3926 = vshrl.u32 %v3621, 16
        %v3928 = vrot.slane %v3926, 4
        %v3929 = vor.u32 %v3928, %v3924
        %v3930 = vrot.slane %v3929, 4
        %v3932 = vshll.u32 %v3622, 16
        %v3934 = vrot.slane %v3932, 5
        %v3935 = vsel %vm2641, %v3930, %v3934
        %v3937 = vshrl.u32 %v3623, 16
        %v3939 = vrot.slane %v3937, 4
        %v3940 = vshll.u32 %v3623, 16
        %v3942 = vrot.slane %v3940, 5
        %v3943 = vor.u32 %v3939, %v3942
        %v3944 = vrot.slane %v3943, 4
        %v3946 = vshll.u32 %v3624, 16
        %v3948 = vrot.slane %v3946, 5
        %v3949 = vsel %vm2641, %v3944, %v3948
        %v3950 = vshrl.u32 %v3624, 16
        %v3952 = vrot.slane %v3950, 4
        %v3953 = vor.u32 %v3952, %v3948
        %v3954 = vrot.slane %v3953, 4
        %v3956 = vshll.u32 %v3625, 16
        %v3958 = vrot.slane %v3956, 5
        %v3959 = vsel %vm2641, %v3954, %v3958
        %v3960 = vshrl.u32 %v3625, 16
        %v3962 = vrot.slane %v3960, 4
        %v3963 = vor.u32 %v3962, %v3958
        %v3964 = vrot.slane %v3963, 4
        %v3966 = vshll.u32 %v3626, 16
        %v3968 = vrot.slane %v3966, 5
        %v3969 = vsel %vm2641, %v3964, %v3968
        %v3970 = vshrl.u32 %v3626, 16
        %v3972 = vrot.slane %v3970, 4
        %v3973 = vor.u32 %v3972, %v3968
        %v3974 = vrot.slane %v3973, 4
        %v3976 = vshll.u32 %v3627, 16
        %v3978 = vrot.slane %v3976, 5
        %v3979 = vsel %vm2641, %v3974, %v3978
        %v3980 = vunpack.c.l.b16 %v3641
        %v3981 = vunpack.c.l.b16 %v3651
        %v3982 = vunpack.c.l.b16 %v3661
        %v3983 = vunpack.c.l.b16 %v3671
        %v3984 = vunpack.c.l.b16 %v3685
        %v3985 = vunpack.c.l.b16 %v3695
        %v3986 = vunpack.c.l.b16 %v3705
        %v3987 = vunpack.c.l.b16 %v3715
        %v3988 = vunpack.c.l.b16 %v3729
        %v3989 = vunpack.c.l.b16 %v3739
        %v3990 = vunpack.c.l.b16 %v3749
        %v3991 = vunpack.c.l.b16 %v3759
        %v3992 = vunpack.c.l.b16 %v3773
        %v3993 = vunpack.c.l.b16 %v3783
        %v3994 = vunpack.c.l.b16 %v3793
        %v3995 = vunpack.c.l.b16 %v3803
        %v3996 = vunpack.c.l.b16 %v3817
        %v3997 = vunpack.c.l.b16 %v3827
        %v3998 = vunpack.c.l.b16 %v3837
        %v3999 = vunpack.c.l.b16 %v3847
        %v4000 = vunpack.c.l.b16 %v3861
        %v4001 = vunpack.c.l.b16 %v3871
        %v4002 = vunpack.c.l.b16 %v3881
        %v4003 = vunpack.c.l.b16 %v3891
        %v4004 = vunpack.c.l.b16 %v3905
        %v4005 = vunpack.c.l.b16 %v3915
        %v4006 = vunpack.c.l.b16 %v3925
        %v4007 = vunpack.c.l.b16 %v3935
        %v4008 = vunpack.c.l.b16 %v3949
        %v4009 = vunpack.c.l.b16 %v3959
        %v4010 = vunpack.c.l.b16 %v3969
        %v4011 = vunpack.c.l.b16 %v3979
        %v4012 = vpack.c.b16 %v3981, %v3980
        %v4013 = vpack.c.b16 %v3983, %v3982
        %v4014 = vpack.c.b16 %v3985, %v3984
        %v4015 = vpack.c.b16 %v3987, %v3986
        %v4016 = vpack.c.b16 %v3989, %v3988
        %v4017 = vpack.c.b16 %v3991, %v3990
        %v4018 = vpack.c.b16 %v3993, %v3992
        %v4019 = vpack.c.b16 %v3995, %v3994
        %v4020 = vpack.c.b16 %v3997, %v3996
        %v4021 = vpack.c.b16 %v3999, %v3998
        %v4022 = vpack.c.b16 %v4001, %v4000
        %v4023 = vpack.c.b16 %v4003, %v4002
        %v4024 = vpack.c.b16 %v4005, %v4004
        %v4025 = vpack.c.b16 %v4007, %v4006
        %v4026 = vpack.c.b16 %v4009, %v4008
        %v4027 = vpack.c.b16 %v4011, %v4010
        %4028 = vrot.lane.b32.xlu0 %v4012, 12
        %v4029 = vpop.permute.xlu0 %4028
        %4030 = vrot.lane.b32.xlu0 %v4013, 12
        %v4031 = vpop.permute.xlu0 %4030
        %4032 = vrot.lane.b32.xlu0 %v4014, 12
        %v4033 = vpop.permute.xlu0 %4032
        %4034 = vrot.lane.b32.xlu0 %v4015, 12
        %v4035 = vpop.permute.xlu0 %4034
        %4036 = vrot.lane.b32.xlu0 %v4016, 12
        %v4037 = vpop.permute.xlu0 %4036
        %4038 = vrot.lane.b32.xlu0 %v4017, 12
        %v4039 = vpop.permute.xlu0 %4038
        %4040 = vrot.lane.b32.xlu0 %v4018, 12
        %v4041 = vpop.permute.xlu0 %4040
        %4042 = vrot.lane.b32.xlu0 %v4019, 12
        %v4043 = vpop.permute.xlu0 %4042
        %4044 = vrot.lane.b32.xlu0 %v4020, 12
        %v4045 = vpop.permute.xlu0 %4044
        %4046 = vrot.lane.b32.xlu0 %v4021, 12
        %v4047 = vpop.permute.xlu0 %4046
        %4048 = vrot.lane.b32.xlu0 %v4022, 12
        %v4049 = vpop.permute.xlu0 %4048
        %4050 = vrot.lane.b32.xlu0 %v4023, 12
        %v4051 = vpop.permute.xlu0 %4050
        %4052 = vrot.lane.b32.xlu0 %v4024, 12
        %v4053 = vpop.permute.xlu0 %4052
        %4054 = vrot.lane.b32.xlu0 %v4025, 12
        %v4055 = vpop.permute.xlu0 %4054
        %4056 = vrot.lane.b32.xlu0 %v4026, 12
        %v4057 = vpop.permute.xlu0 %4056
        %4058 = vrot.lane.b32.xlu0 %v4027, 12
        %v4059 = vpop.permute.xlu0 %4058
        %vm4076 = vcmask 121952
        %4077 = vst.msk [vmem:[#allocation3] sm:$0xff] %vm4076, %v4029
        %4078 = vst.msk [vmem:[#allocation3 + $0x8] sm:$0xff] %vm4076, %v4031
        %4079 = vst.msk [vmem:[#allocation3 + $0x10] sm:$0xff] %vm4076, %v4033
        %4080 = vst.msk [vmem:[#allocation3 + $0x18] sm:$0xff] %vm4076, %v4035
        %4081 = vst.msk [vmem:[#allocation3 + $0x20] sm:$0xff] %vm4076, %v4037
        %4082 = vst.msk [vmem:[#allocation3 + $0x28] sm:$0xff] %vm4076, %v4039
        %4083 = vst.msk [vmem:[#allocation3 + $0x30] sm:$0xff] %vm4076, %v4041
        %4084 = vst.msk [vmem:[#allocation3 + $0x38] sm:$0xff] %vm4076, %v4043
        %4085 = vst.msk [vmem:[#allocation3 + $0x40] sm:$0xff] %vm4076, %v4045
        %4086 = vst.msk [vmem:[#allocation3 + $0x48] sm:$0xff] %vm4076, %v4047
        %4087 = vst.msk [vmem:[#allocation3 + $0x50] sm:$0xff] %vm4076, %v4049
        %4088 = vst.msk [vmem:[#allocation3 + $0x58] sm:$0xff] %vm4076, %v4051
        %4089 = vst.msk [vmem:[#allocation3 + $0x60] sm:$0xff] %vm4076, %v4053
        %4090 = vst.msk [vmem:[#allocation3 + $0x68] sm:$0xff] %vm4076, %v4055
        %4091 = vst.msk [vmem:[#allocation3 + $0x70] sm:$0xff] %vm4076, %v4057
        %4092 = vst.msk [vmem:[#allocation3 + $0x78] sm:$0xff] %vm4076, %v4059
        %v4093 = vld [vmem:[%s3410] sm:$0xe]
        %v4094 = vld [vmem:[%s3410 + $0x4] sm:$0xf]
        %v4095 = vld [vmem:[%s3410 + $0x8] sm:$0xf]
        %v4096 = vld [vmem:[%s3410 + $0xc] sm:$0xf]
        %v4097 = vld [vmem:[%s3410 + $0x10] sm:$0x1]
        %v4098 = vld [vmem:[%s3410 + $0x14] sm:$0xe]
        %v4099 = vld [vmem:[%s3410 + $0x18] sm:$0xf]
        %v4100 = vld [vmem:[%s3410 + $0x1c] sm:$0xf]
        %v4101 = vld [vmem:[%s3410 + $0x20] sm:$0xf]
        %v4102 = vld [vmem:[%s3410 + $0x24] sm:$0x1]
        %v4103 = vld [vmem:[%s3410 + $0x28] sm:$0xe]
        %v4104 = vld [vmem:[%s3410 + $0x2c] sm:$0xf]
        %v4105 = vld [vmem:[%s3410 + $0x30] sm:$0xf]
        %v4106 = vld [vmem:[%s3410 + $0x34] sm:$0xf]
        %v4107 = vld [vmem:[%s3410 + $0x38] sm:$0x1]
        %v4108 = vld [vmem:[%s3410 + $0x3c] sm:$0xe]
        %v4109 = vld [vmem:[%s3410 + $0x40] sm:$0xf]
        %v4110 = vld [vmem:[%s3410 + $0x44] sm:$0xf]
        %v4111 = vld [vmem:[%s3410 + $0x48] sm:$0xf]
        %v4112 = vld [vmem:[%s3410 + $0x4c] sm:$0x1]
        %v4113 = vld [vmem:[%s3410 + $0x50] sm:$0xe]
        %v4114 = vld [vmem:[%s3410 + $0x54] sm:$0xf]
        %v4115 = vld [vmem:[%s3410 + $0x58] sm:$0xf]
        %v4116 = vld [vmem:[%s3410 + $0x5c] sm:$0xf]
        %v4117 = vld [vmem:[%s3410 + $0x60] sm:$0x1]
        %v4118 = vld [vmem:[%s3410 + $0x64] sm:$0xe]
        %v4119 = vld [vmem:[%s3410 + $0x68] sm:$0xf]
        %v4120 = vld [vmem:[%s3410 + $0x6c] sm:$0xf]
        %v4121 = vld [vmem:[%s3410 + $0x70] sm:$0xf]
        %v4122 = vld [vmem:[%s3410 + $0x74] sm:$0x1]
        %v4123 = vld [vmem:[%s3410 + $0x78] sm:$0xe]
        %v4124 = vld [vmem:[%s3410 + $0x7c] sm:$0xf]
        %v4125 = vld [vmem:[%s3410 + $0x80] sm:$0xf]
        %v4126 = vld [vmem:[%s3410 + $0x84] sm:$0xf]
        %v4127 = vld [vmem:[%s3410 + $0x88] sm:$0x1]
        %v4128 = vld [vmem:[%s3410 + $0x8c] sm:$0xe]
        %v4129 = vld [vmem:[%s3410 + $0x90] sm:$0xf]
        %v4130 = vld [vmem:[%s3410 + $0x94] sm:$0xf]
        %v4131 = vld [vmem:[%s3410 + $0x98] sm:$0xf]
        %v4132 = vld [vmem:[%s3410 + $0x9c] sm:$0x1]
        %v4173 = vrot.slane %v4093, 5
        %v4174 = vrot.slane %v4173, 4
        %v4175 = vrot.slane %v4094, 5
        %v4176 = vsel %vm3189, %v4174, %v4175
        %v4177 = vrot.slane %v4175, 4
        %v4178 = vrot.slane %v4095, 5
        %v4179 = vsel %vm3189, %v4177, %v4178
        %v4180 = vrot.slane %v4178, 4
        %v4181 = vrot.slane %v4096, 5
        %v4182 = vsel %vm3189, %v4180, %v4181
        %v4183 = vrot.slane %v4181, 4
        %v4184 = vrot.slane %v4097, 5
        %v4185 = vsel %vm3189, %v4183, %v4184
        %v4186 = vrot.slane %v4098, 5
        %v4187 = vrot.slane %v4186, 4
        %v4188 = vrot.slane %v4099, 5
        %v4189 = vsel %vm3189, %v4187, %v4188
        %v4190 = vrot.slane %v4188, 4
        %v4191 = vrot.slane %v4100, 5
        %v4192 = vsel %vm3189, %v4190, %v4191
        %v4193 = vrot.slane %v4191, 4
        %v4194 = vrot.slane %v4101, 5
        %v4195 = vsel %vm3189, %v4193, %v4194
        %v4196 = vrot.slane %v4194, 4
        %v4197 = vrot.slane %v4102, 5
        %v4198 = vsel %vm3189, %v4196, %v4197
        %v4199 = vrot.slane %v4103, 5
        %v4200 = vrot.slane %v4199, 4
        %v4201 = vrot.slane %v4104, 5
        %v4202 = vsel %vm3189, %v4200, %v4201
        %v4203 = vrot.slane %v4201, 4
        %v4204 = vrot.slane %v4105, 5
        %v4205 = vsel %vm3189, %v4203, %v4204
        %v4206 = vrot.slane %v4204, 4
        %v4207 = vrot.slane %v4106, 5
        %v4208 = vsel %vm3189, %v4206, %v4207
        %v4209 = vrot.slane %v4207, 4
        %v4210 = vrot.slane %v4107, 5
        %v4211 = vsel %vm3189, %v4209, %v4210
        %v4212 = vrot.slane %v4108, 5
        %v4213 = vrot.slane %v4212, 4
        %v4214 = vrot.slane %v4109, 5
        %v4215 = vsel %vm3189, %v4213, %v4214
        %v4216 = vrot.slane %v4214, 4
        %v4217 = vrot.slane %v4110, 5
        %v4218 = vsel %vm3189, %v4216, %v4217
        %v4219 = vrot.slane %v4217, 4
        %v4220 = vrot.slane %v4111, 5
        %v4221 = vsel %vm3189, %v4219, %v4220
        %v4222 = vrot.slane %v4220, 4
        %v4223 = vrot.slane %v4112, 5
        %v4224 = vsel %vm3189, %v4222, %v4223
        %v4225 = vrot.slane %v4113, 5
        %v4226 = vrot.slane %v4225, 4
        %v4227 = vrot.slane %v4114, 5
        %v4228 = vsel %vm3189, %v4226, %v4227
        %v4229 = vrot.slane %v4227, 4
        %v4230 = vrot.slane %v4115, 5
        %v4231 = vsel %vm3189, %v4229, %v4230
        %v4232 = vrot.slane %v4230, 4
        %v4233 = vrot.slane %v4116, 5
        %v4234 = vsel %vm3189, %v4232, %v4233
        %v4235 = vrot.slane %v4233, 4
        %v4236 = vrot.slane %v4117, 5
        %v4237 = vsel %vm3189, %v4235, %v4236
        %v4238 = vrot.slane %v4118, 5
        %v4239 = vrot.slane %v4238, 4
        %v4240 = vrot.slane %v4119, 5
        %v4241 = vsel %vm3189, %v4239, %v4240
        %v4242 = vrot.slane %v4240, 4
        %v4243 = vrot.slane %v4120, 5
        %v4244 = vsel %vm3189, %v4242, %v4243
        %v4245 = vrot.slane %v4243, 4
        %v4246 = vrot.slane %v4121, 5
        %v4247 = vsel %vm3189, %v4245, %v4246
        %v4248 = vrot.slane %v4246, 4
        %v4249 = vrot.slane %v4122, 5
        %v4250 = vsel %vm3189, %v4248, %v4249
        %v4251 = vrot.slane %v4123, 5
        %v4252 = vrot.slane %v4251, 4
        %v4253 = vrot.slane %v4124, 5
        %v4254 = vsel %vm3189, %v4252, %v4253
        %v4255 = vrot.slane %v4253, 4
        %v4256 = vrot.slane %v4125, 5
        %v4257 = vsel %vm3189, %v4255, %v4256
        %v4258 = vrot.slane %v4256, 4
        %v4259 = vrot.slane %v4126, 5
        %v4260 = vsel %vm3189, %v4258, %v4259
        %v4261 = vrot.slane %v4259, 4
        %v4262 = vrot.slane %v4127, 5
        %v4263 = vsel %vm3189, %v4261, %v4262
        %v4264 = vrot.slane %v4128, 5
        %v4265 = vrot.slane %v4264, 4
        %v4266 = vrot.slane %v4129, 5
        %v4267 = vsel %vm3189, %v4265, %v4266
        %v4268 = vrot.slane %v4266, 4
        %v4269 = vrot.slane %v4130, 5
        %v4270 = vsel %vm3189, %v4268, %v4269
        %v4271 = vrot.slane %v4269, 4
        %v4272 = vrot.slane %v4131, 5
        %v4273 = vsel %vm3189, %v4271, %v4272
        %v4274 = vrot.slane %v4272, 4
        %v4275 = vrot.slane %v4132, 5
        %v4276 = vsel %vm3189, %v4274, %v4275
        %v4277 = vunpack.c.l.b16 %v4176
        %v4278 = vunpack.c.l.b16 %v4179
        %v4279 = vunpack.c.l.b16 %v4182
        %v4280 = vunpack.c.l.b16 %v4185
        %v4281 = vunpack.c.l.b16 %v4189
        %v4282 = vunpack.c.l.b16 %v4192
        %v4283 = vunpack.c.l.b16 %v4195
        %v4284 = vunpack.c.l.b16 %v4198
        %v4285 = vunpack.c.l.b16 %v4202
        %v4286 = vunpack.c.l.b16 %v4205
        %v4287 = vunpack.c.l.b16 %v4208
        %v4288 = vunpack.c.l.b16 %v4211
        %v4289 = vunpack.c.l.b16 %v4215
        %v4290 = vunpack.c.l.b16 %v4218
        %v4291 = vunpack.c.l.b16 %v4221
        %v4292 = vunpack.c.l.b16 %v4224
        %v4293 = vunpack.c.l.b16 %v4228
        %v4294 = vunpack.c.l.b16 %v4231
        %v4295 = vunpack.c.l.b16 %v4234
        %v4296 = vunpack.c.l.b16 %v4237
        %v4297 = vunpack.c.l.b16 %v4241
        %v4298 = vunpack.c.l.b16 %v4244
        %v4299 = vunpack.c.l.b16 %v4247
        %v4300 = vunpack.c.l.b16 %v4250
        %v4301 = vunpack.c.l.b16 %v4254
        %v4302 = vunpack.c.l.b16 %v4257
        %v4303 = vunpack.c.l.b16 %v4260
        %v4304 = vunpack.c.l.b16 %v4263
        %v4305 = vunpack.c.l.b16 %v4267
        %v4306 = vunpack.c.l.b16 %v4270
        %v4307 = vunpack.c.l.b16 %v4273
        %v4308 = vunpack.c.l.b16 %v4276
        %v4309 = vpack.c.b16 %v4278, %v4277
        %v4310 = vpack.c.b16 %v4280, %v4279
        %v4311 = vpack.c.b16 %v4282, %v4281
        %v4312 = vpack.c.b16 %v4284, %v4283
        %v4313 = vpack.c.b16 %v4286, %v4285
        %v4314 = vpack.c.b16 %v4288, %v4287
        %v4315 = vpack.c.b16 %v4290, %v4289
        %v4316 = vpack.c.b16 %v4292, %v4291
        %v4317 = vpack.c.b16 %v4294, %v4293
        %v4318 = vpack.c.b16 %v4296, %v4295
        %v4319 = vpack.c.b16 %v4298, %v4297
        %v4320 = vpack.c.b16 %v4300, %v4299
        %v4321 = vpack.c.b16 %v4302, %v4301
        %v4322 = vpack.c.b16 %v4304, %v4303
        %v4323 = vpack.c.b16 %v4306, %v4305
        %v4324 = vpack.c.b16 %v4308, %v4307
        %4325 = vrot.lane.b32.xlu0 %v4309, 15
        %v4326 = vpop.permute.xlu0 %4325
        %4327 = vrot.lane.b32.xlu0 %v4310, 15
        %v4328 = vpop.permute.xlu0 %4327
        %4329 = vrot.lane.b32.xlu0 %v4311, 15
        %v4330 = vpop.permute.xlu0 %4329
        %4331 = vrot.lane.b32.xlu0 %v4312, 15
        %v4332 = vpop.permute.xlu0 %4331
        %4333 = vrot.lane.b32.xlu0 %v4313, 15
        %v4334 = vpop.permute.xlu0 %4333
        %4335 = vrot.lane.b32.xlu0 %v4314, 15
        %v4336 = vpop.permute.xlu0 %4335
        %4337 = vrot.lane.b32.xlu0 %v4315, 15
        %v4338 = vpop.permute.xlu0 %4337
        %4339 = vrot.lane.b32.xlu0 %v4316, 15
        %v4340 = vpop.permute.xlu0 %4339
        %4341 = vrot.lane.b32.xlu0 %v4317, 15
        %v4342 = vpop.permute.xlu0 %4341
        %4343 = vrot.lane.b32.xlu0 %v4318, 15
        %v4344 = vpop.permute.xlu0 %4343
        %4345 = vrot.lane.b32.xlu0 %v4319, 15
        %v4346 = vpop.permute.xlu0 %4345
        %4347 = vrot.lane.b32.xlu0 %v4320, 15
        %v4348 = vpop.permute.xlu0 %4347
        %4349 = vrot.lane.b32.xlu0 %v4321, 15
        %v4350 = vpop.permute.xlu0 %4349
        %4351 = vrot.lane.b32.xlu0 %v4322, 15
        %v4352 = vpop.permute.xlu0 %4351
        %4353 = vrot.lane.b32.xlu0 %v4323, 15
        %v4354 = vpop.permute.xlu0 %4353
        %4355 = vrot.lane.b32.xlu0 %v4324, 15
        %v4356 = vpop.permute.xlu0 %4355
        %vm4373 = vcmask 146552
        %4374 = vst.msk [vmem:[#allocation3] sm:$0xff] %vm4373, %v4326
        %4375 = vst.msk [vmem:[#allocation3 + $0x8] sm:$0xff] %vm4373, %v4328
        %4376 = vst.msk [vmem:[#allocation3 + $0x10] sm:$0xff] %vm4373, %v4330
        %4377 = vst.msk [vmem:[#allocation3 + $0x18] sm:$0xff] %vm4373, %v4332
        %4378 = vst.msk [vmem:[#allocation3 + $0x20] sm:$0xff] %vm4373, %v4334
        %4379 = vst.msk [vmem:[#allocation3 + $0x28] sm:$0xff] %vm4373, %v4336
        %4380 = vst.msk [vmem:[#allocation3 + $0x30] sm:$0xff] %vm4373, %v4338
        %4381 = vst.msk [vmem:[#allocation3 + $0x38] sm:$0xff] %vm4373, %v4340
        %4382 = vst.msk [vmem:[#allocation3 + $0x40] sm:$0xff] %vm4373, %v4342
        %4383 = vst.msk [vmem:[#allocation3 + $0x48] sm:$0xff] %vm4373, %v4344
        %4384 = vst.msk [vmem:[#allocation3 + $0x50] sm:$0xff] %vm4373, %v4346
        %4385 = vst.msk [vmem:[#allocation3 + $0x58] sm:$0xff] %vm4373, %v4348
        %4386 = vst.msk [vmem:[#allocation3 + $0x60] sm:$0xff] %vm4373, %v4350
        %4387 = vst.msk [vmem:[#allocation3 + $0x68] sm:$0xff] %vm4373, %v4352
        %4388 = vst.msk [vmem:[#allocation3 + $0x70] sm:$0xff] %vm4373, %v4354
        %4389 = vst.msk [vmem:[#allocation3 + $0x78] sm:$0xff] %vm4373, %v4356
        %s4390 = sadd.s32 %s2450, 2
        %s4391 = smul.u32 %s4390, 5
        %s4392 = smul.addr %s4391, 4
        %s4393 = scalar_lea.vmem [#allocation2], %s4392
        %v4394 = vld [vmem:[%s4393] sm:$0xf]
        %v4395 = vld [vmem:[%s4393 + $0x4] sm:$0xf]
        %v4396 = vld [vmem:[%s4393 + $0x8] sm:$0xf]
        %v4397 = vld [vmem:[%s4393 + $0xc] sm:$0xf]
        %v4398 = vld [vmem:[%s4393 + $0x14] sm:$0xf]
        %v4399 = vld [vmem:[%s4393 + $0x18] sm:$0xf]
        %v4400 = vld [vmem:[%s4393 + $0x1c] sm:$0xf]
        %v4401 = vld [vmem:[%s4393 + $0x20] sm:$0xf]
        %v4402 = vld [vmem:[%s4393 + $0x28] sm:$0xf]
        %v4403 = vld [vmem:[%s4393 + $0x2c] sm:$0xf]
        %v4404 = vld [vmem:[%s4393 + $0x30] sm:$0xf]
        %v4405 = vld [vmem:[%s4393 + $0x34] sm:$0xf]
        %v4406 = vld [vmem:[%s4393 + $0x3c] sm:$0xf]
        %v4407 = vld [vmem:[%s4393 + $0x40] sm:$0xf]
        %v4408 = vld [vmem:[%s4393 + $0x44] sm:$0xf]
        %v4409 = vld [vmem:[%s4393 + $0x48] sm:$0xf]
        %v4410 = vld [vmem:[%s4393 + $0x50] sm:$0xf]
        %v4411 = vld [vmem:[%s4393 + $0x54] sm:$0xf]
        %v4412 = vld [vmem:[%s4393 + $0x58] sm:$0xf]
        %v4413 = vld [vmem:[%s4393 + $0x5c] sm:$0xf]
        %v4414 = vld [vmem:[%s4393 + $0x64] sm:$0xf]
        %v4415 = vld [vmem:[%s4393 + $0x68] sm:$0xf]
        %v4416 = vld [vmem:[%s4393 + $0x6c] sm:$0xf]
        %v4417 = vld [vmem:[%s4393 + $0x70] sm:$0xf]
        %v4418 = vld [vmem:[%s4393 + $0x78] sm:$0xf]
        %v4419 = vld [vmem:[%s4393 + $0x7c] sm:$0xf]
        %v4420 = vld [vmem:[%s4393 + $0x80] sm:$0xf]
        %v4421 = vld [vmem:[%s4393 + $0x84] sm:$0xf]
        %v4422 = vld [vmem:[%s4393 + $0x8c] sm:$0xf]
        %v4423 = vld [vmem:[%s4393 + $0x90] sm:$0xf]
        %v4424 = vld [vmem:[%s4393 + $0x94] sm:$0xf]
        %v4425 = vld [vmem:[%s4393 + $0x98] sm:$0xf]
        %v4458 = vunpack.c.l.b16 %v4394
        %v4459 = vunpack.c.l.b16 %v4395
        %v4460 = vunpack.c.l.b16 %v4396
        %v4461 = vunpack.c.l.b16 %v4397
        %v4462 = vunpack.c.l.b16 %v4398
        %v4463 = vunpack.c.l.b16 %v4399
        %v4464 = vunpack.c.l.b16 %v4400
        %v4465 = vunpack.c.l.b16 %v4401
        %v4466 = vunpack.c.l.b16 %v4402
        %v4467 = vunpack.c.l.b16 %v4403
        %v4468 = vunpack.c.l.b16 %v4404
        %v4469 = vunpack.c.l.b16 %v4405
        %v4470 = vunpack.c.l.b16 %v4406
        %v4471 = vunpack.c.l.b16 %v4407
        %v4472 = vunpack.c.l.b16 %v4408
        %v4473 = vunpack.c.l.b16 %v4409
        %v4474 = vunpack.c.l.b16 %v4410
        %v4475 = vunpack.c.l.b16 %v4411
        %v4476 = vunpack.c.l.b16 %v4412
        %v4477 = vunpack.c.l.b16 %v4413
        %v4478 = vunpack.c.l.b16 %v4414
        %v4479 = vunpack.c.l.b16 %v4415
        %v4480 = vunpack.c.l.b16 %v4416
        %v4481 = vunpack.c.l.b16 %v4417
        %v4482 = vunpack.c.l.b16 %v4418
        %v4483 = vunpack.c.l.b16 %v4419
        %v4484 = vunpack.c.l.b16 %v4420
        %v4485 = vunpack.c.l.b16 %v4421
        %v4486 = vunpack.c.l.b16 %v4422
        %v4487 = vunpack.c.l.b16 %v4423
        %v4488 = vunpack.c.l.b16 %v4424
        %v4489 = vunpack.c.l.b16 %v4425
        %v4490 = vpack.c.b16 %v4459, %v4458
        %v4491 = vpack.c.b16 %v4461, %v4460
        %v4492 = vpack.c.b16 %v4463, %v4462
        %v4493 = vpack.c.b16 %v4465, %v4464
        %v4494 = vpack.c.b16 %v4467, %v4466
        %v4495 = vpack.c.b16 %v4469, %v4468
        %v4496 = vpack.c.b16 %v4471, %v4470
        %v4497 = vpack.c.b16 %v4473, %v4472
        %v4498 = vpack.c.b16 %v4475, %v4474
        %v4499 = vpack.c.b16 %v4477, %v4476
        %v4500 = vpack.c.b16 %v4479, %v4478
        %v4501 = vpack.c.b16 %v4481, %v4480
        %v4502 = vpack.c.b16 %v4483, %v4482
        %v4503 = vpack.c.b16 %v4485, %v4484
        %v4504 = vpack.c.b16 %v4487, %v4486
        %v4505 = vpack.c.b16 %v4489, %v4488
        %4506 = vrot.lane.b32.xlu0 %v4490, 18
        %v4507 = vpop.permute.xlu0 %4506
        %4508 = vrot.lane.b32.xlu0 %v4491, 18
        %v4509 = vpop.permute.xlu0 %4508
        %4510 = vrot.lane.b32.xlu0 %v4492, 18
        %v4511 = vpop.permute.xlu0 %4510
        %4512 = vrot.lane.b32.xlu0 %v4493, 18
        %v4513 = vpop.permute.xlu0 %4512
        %4514 = vrot.lane.b32.xlu0 %v4494, 18
        %v4515 = vpop.permute.xlu0 %4514
        %4516 = vrot.lane.b32.xlu0 %v4495, 18
        %v4517 = vpop.permute.xlu0 %4516
        %4518 = vrot.lane.b32.xlu0 %v4496, 18
        %v4519 = vpop.permute.xlu0 %4518
        %4520 = vrot.lane.b32.xlu0 %v4497, 18
        %v4521 = vpop.permute.xlu0 %4520
        %4522 = vrot.lane.b32.xlu0 %v4498, 18
        %v4523 = vpop.permute.xlu0 %4522
        %4524 = vrot.lane.b32.xlu0 %v4499, 18
        %v4525 = vpop.permute.xlu0 %4524
        %4526 = vrot.lane.b32.xlu0 %v4500, 18
        %v4527 = vpop.permute.xlu0 %4526
        %4528 = vrot.lane.b32.xlu0 %v4501, 18
        %v4529 = vpop.permute.xlu0 %4528
        %4530 = vrot.lane.b32.xlu0 %v4502, 18
        %v4531 = vpop.permute.xlu0 %4530
        %4532 = vrot.lane.b32.xlu0 %v4503, 18
        %v4533 = vpop.permute.xlu0 %4532
        %4534 = vrot.lane.b32.xlu0 %v4504, 18
        %v4535 = vpop.permute.xlu0 %4534
        %4536 = vrot.lane.b32.xlu0 %v4505, 18
        %v4537 = vpop.permute.xlu0 %4536
        %vm4554 = vcmask 171152
        %4555 = vst.msk [vmem:[#allocation3] sm:$0xff] %vm4554, %v4507
        %4556 = vst.msk [vmem:[#allocation3 + $0x8] sm:$0xff] %vm4554, %v4509
        %4557 = vst.msk [vmem:[#allocation3 + $0x10] sm:$0xff] %vm4554, %v4511
        %4558 = vst.msk [vmem:[#allocation3 + $0x18] sm:$0xff] %vm4554, %v4513
        %4559 = vst.msk [vmem:[#allocation3 + $0x20] sm:$0xff] %vm4554, %v4515
        %4560 = vst.msk [vmem:[#allocation3 + $0x28] sm:$0xff] %vm4554, %v4517
        %4561 = vst.msk [vmem:[#allocation3 + $0x30] sm:$0xff] %vm4554, %v4519
        %4562 = vst.msk [vmem:[#allocation3 + $0x38] sm:$0xff] %vm4554, %v4521
        %4563 = vst.msk [vmem:[#allocation3 + $0x40] sm:$0xff] %vm4554, %v4523
        %4564 = vst.msk [vmem:[#allocation3 + $0x48] sm:$0xff] %vm4554, %v4525
        %4565 = vst.msk [vmem:[#allocation3 + $0x50] sm:$0xff] %vm4554, %v4527
        %4566 = vst.msk [vmem:[#allocation3 + $0x58] sm:$0xff] %vm4554, %v4529
        %4567 = vst.msk [vmem:[#allocation3 + $0x60] sm:$0xff] %vm4554, %v4531
        %4568 = vst.msk [vmem:[#allocation3 + $0x68] sm:$0xff] %vm4554, %v4533
        %4569 = vst.msk [vmem:[#allocation3 + $0x70] sm:$0xff] %vm4554, %v4535
        %4570 = vst.msk [vmem:[#allocation3 + $0x78] sm:$0xff] %vm4554, %v4537
        %v4571 = vld [vmem:[%s4393] sm:$0xf]
        %v4572 = vld [vmem:[%s4393 + $0x4] sm:$0xf]
        %v4573 = vld [vmem:[%s4393 + $0x8] sm:$0xf]
        %v4574 = vld [vmem:[%s4393 + $0xc] sm:$0xf]
        %v4575 = vld [vmem:[%s4393 + $0x10] sm:$0x1]
        %v4576 = vld [vmem:[%s4393 + $0x14] sm:$0xf]
        %v4577 = vld [vmem:[%s4393 + $0x18] sm:$0xf]
        %v4578 = vld [vmem:[%s4393 + $0x1c] sm:$0xf]
        %v4579 = vld [vmem:[%s4393 + $0x20] sm:$0xf]
        %v4580 = vld [vmem:[%s4393 + $0x24] sm:$0x1]
        %v4581 = vld [vmem:[%s4393 + $0x28] sm:$0xf]
        %v4582 = vld [vmem:[%s4393 + $0x2c] sm:$0xf]
        %v4583 = vld [vmem:[%s4393 + $0x30] sm:$0xf]
        %v4584 = vld [vmem:[%s4393 + $0x34] sm:$0xf]
        %v4585 = vld [vmem:[%s4393 + $0x38] sm:$0x1]
        %v4586 = vld [vmem:[%s4393 + $0x3c] sm:$0xf]
        %v4587 = vld [vmem:[%s4393 + $0x40] sm:$0xf]
        %v4588 = vld [vmem:[%s4393 + $0x44] sm:$0xf]
        %v4589 = vld [vmem:[%s4393 + $0x48] sm:$0xf]
        %v4590 = vld [vmem:[%s4393 + $0x4c] sm:$0x1]
        %v4591 = vld [vmem:[%s4393 + $0x50] sm:$0xf]
        %v4592 = vld [vmem:[%s4393 + $0x54] sm:$0xf]
        %v4593 = vld [vmem:[%s4393 + $0x58] sm:$0xf]
        %v4594 = vld [vmem:[%s4393 + $0x5c] sm:$0xf]
        %v4595 = vld [vmem:[%s4393 + $0x60] sm:$0x1]
        %v4596 = vld [vmem:[%s4393 + $0x64] sm:$0xf]
        %v4597 = vld [vmem:[%s4393 + $0x68] sm:$0xf]
        %v4598 = vld [vmem:[%s4393 + $0x6c] sm:$0xf]
        %v4599 = vld [vmem:[%s4393 + $0x70] sm:$0xf]
        %v4600 = vld [vmem:[%s4393 + $0x74] sm:$0x1]
        %v4601 = vld [vmem:[%s4393 + $0x78] sm:$0xf]
        %v4602 = vld [vmem:[%s4393 + $0x7c] sm:$0xf]
        %v4603 = vld [vmem:[%s4393 + $0x80] sm:$0xf]
        %v4604 = vld [vmem:[%s4393 + $0x84] sm:$0xf]
        %v4605 = vld [vmem:[%s4393 + $0x88] sm:$0x1]
        %v4606 = vld [vmem:[%s4393 + $0x8c] sm:$0xf]
        %v4607 = vld [vmem:[%s4393 + $0x90] sm:$0xf]
        %v4608 = vld [vmem:[%s4393 + $0x94] sm:$0xf]
        %v4609 = vld [vmem:[%s4393 + $0x98] sm:$0xf]
        %v4610 = vld [vmem:[%s4393 + $0x9c] sm:$0x1]
        %v4612 = vshrl.u32 %v4571, 16
        %v4614 = vrot.slane %v4612, 4
        %v4615 = vshll.u32 %v4571, 16
        %v4617 = vrot.slane %v4615, 5
        %v4618 = vor.u32 %v4614, %v4617
        %v4619 = vrot.slane %v4618, 4
        %v4621 = vshll.u32 %v4572, 16
        %v4623 = vrot.slane %v4621, 5
        %v4624 = vsel %vm2641, %v4619, %v4623
        %v4625 = vshrl.u32 %v4572, 16
        %v4627 = vrot.slane %v4625, 4
        %v4628 = vor.u32 %v4627, %v4623
        %v4629 = vrot.slane %v4628, 4
        %v4631 = vshll.u32 %v4573, 16
        %v4633 = vrot.slane %v4631, 5
        %v4634 = vsel %vm2641, %v4629, %v4633
        %v4635 = vshrl.u32 %v4573, 16
        %v4637 = vrot.slane %v4635, 4
        %v4638 = vor.u32 %v4637, %v4633
        %v4639 = vrot.slane %v4638, 4
        %v4641 = vshll.u32 %v4574, 16
        %v4643 = vrot.slane %v4641, 5
        %v4644 = vsel %vm2641, %v4639, %v4643
        %v4645 = vshrl.u32 %v4574, 16
        %v4647 = vrot.slane %v4645, 4
        %v4648 = vor.u32 %v4647, %v4643
        %v4649 = vrot.slane %v4648, 4
        %v4651 = vshll.u32 %v4575, 16
        %v4653 = vrot.slane %v4651, 5
        %v4654 = vsel %vm2641, %v4649, %v4653
        %v4656 = vshrl.u32 %v4576, 16
        %v4658 = vrot.slane %v4656, 4
        %v4659 = vshll.u32 %v4576, 16
        %v4661 = vrot.slane %v4659, 5
        %v4662 = vor.u32 %v4658, %v4661
        %v4663 = vrot.slane %v4662, 4
        %v4665 = vshll.u32 %v4577, 16
        %v4667 = vrot.slane %v4665, 5
        %v4668 = vsel %vm2641, %v4663, %v4667
        %v4669 = vshrl.u32 %v4577, 16
        %v4671 = vrot.slane %v4669, 4
        %v4672 = vor.u32 %v4671, %v4667
        %v4673 = vrot.slane %v4672, 4
        %v4675 = vshll.u32 %v4578, 16
        %v4677 = vrot.slane %v4675, 5
        %v4678 = vsel %vm2641, %v4673, %v4677
        %v4679 = vshrl.u32 %v4578, 16
        %v4681 = vrot.slane %v4679, 4
        %v4682 = vor.u32 %v4681, %v4677
        %v4683 = vrot.slane %v4682, 4
        %v4685 = vshll.u32 %v4579, 16
        %v4687 = vrot.slane %v4685, 5
        %v4688 = vsel %vm2641, %v4683, %v4687
        %v4689 = vshrl.u32 %v4579, 16
        %v4691 = vrot.slane %v4689, 4
        %v4692 = vor.u32 %v4691, %v4687
        %v4693 = vrot.slane %v4692, 4
        %v4695 = vshll.u32 %v4580, 16
        %v4697 = vrot.slane %v4695, 5
        %v4698 = vsel %vm2641, %v4693, %v4697
        %v4700 = vshrl.u32 %v4581, 16
        %v4702 = vrot.slane %v4700, 4
        %v4703 = vshll.u32 %v4581, 16
        %v4705 = vrot.slane %v4703, 5
        %v4706 = vor.u32 %v4702, %v4705
        %v4707 = vrot.slane %v4706, 4
        %v4709 = vshll.u32 %v4582, 16
        %v4711 = vrot.slane %v4709, 5
        %v4712 = vsel %vm2641, %v4707, %v4711
        %v4713 = vshrl.u32 %v4582, 16
        %v4715 = vrot.slane %v4713, 4
        %v4716 = vor.u32 %v4715, %v4711
        %v4717 = vrot.slane %v4716, 4
        %v4719 = vshll.u32 %v4583, 16
        %v4721 = vrot.slane %v4719, 5
        %v4722 = vsel %vm2641, %v4717, %v4721
        %v4723 = vshrl.u32 %v4583, 16
        %v4725 = vrot.slane %v4723, 4
        %v4726 = vor.u32 %v4725, %v4721
        %v4727 = vrot.slane %v4726, 4
        %v4729 = vshll.u32 %v4584, 16
        %v4731 = vrot.slane %v4729, 5
        %v4732 = vsel %vm2641, %v4727, %v4731
        %v4733 = vshrl.u32 %v4584, 16
        %v4735 = vrot.slane %v4733, 4
        %v4736 = vor.u32 %v4735, %v4731
        %v4737 = vrot.slane %v4736, 4
        %v4739 = vshll.u32 %v4585, 16
        %v4741 = vrot.slane %v4739, 5
        %v4742 = vsel %vm2641, %v4737, %v4741
        %v4744 = vshrl.u32 %v4586, 16
        %v4746 = vrot.slane %v4744, 4
        %v4747 = vshll.u32 %v4586, 16
        %v4749 = vrot.slane %v4747, 5
        %v4750 = vor.u32 %v4746, %v4749
        %v4751 = vrot.slane %v4750, 4
        %v4753 = vshll.u32 %v4587, 16
        %v4755 = vrot.slane %v4753, 5
        %v4756 = vsel %vm2641, %v4751, %v4755
        %v4757 = vshrl.u32 %v4587, 16
        %v4759 = vrot.slane %v4757, 4
        %v4760 = vor.u32 %v4759, %v4755
        %v4761 = vrot.slane %v4760, 4
        %v4763 = vshll.u32 %v4588, 16
        %v4765 = vrot.slane %v4763, 5
        %v4766 = vsel %vm2641, %v4761, %v4765
        %v4767 = vshrl.u32 %v4588, 16
        %v4769 = vrot.slane %v4767, 4
        %v4770 = vor.u32 %v4769, %v4765
        %v4771 = vrot.slane %v4770, 4
        %v4773 = vshll.u32 %v4589, 16
        %v4775 = vrot.slane %v4773, 5
        %v4776 = vsel %vm2641, %v4771, %v4775
        %v4777 = vshrl.u32 %v4589, 16
        %v4779 = vrot.slane %v4777, 4
        %v4780 = vor.u32 %v4779, %v4775
        %v4781 = vrot.slane %v4780, 4
        %v4783 = vshll.u32 %v4590, 16
        %v4785 = vrot.slane %v4783, 5
        %v4786 = vsel %vm2641, %v4781, %v4785
        %v4788 = vshrl.u32 %v4591, 16
        %v4790 = vrot.slane %v4788, 4
        %v4791 = vshll.u32 %v4591, 16
        %v4793 = vrot.slane %v4791, 5
        %v4794 = vor.u32 %v4790, %v4793
        %v4795 = vrot.slane %v4794, 4
        %v4797 = vshll.u32 %v4592, 16
        %v4799 = vrot.slane %v4797, 5
        %v4800 = vsel %vm2641, %v4795, %v4799
        %v4801 = vshrl.u32 %v4592, 16
        %v4803 = vrot.slane %v4801, 4
        %v4804 = vor.u32 %v4803, %v4799
        %v4805 = vrot.slane %v4804, 4
        %v4807 = vshll.u32 %v4593, 16
        %v4809 = vrot.slane %v4807, 5
        %v4810 = vsel %vm2641, %v4805, %v4809
        %v4811 = vshrl.u32 %v4593, 16
        %v4813 = vrot.slane %v4811, 4
        %v4814 = vor.u32 %v4813, %v4809
        %v4815 = vrot.slane %v4814, 4
        %v4817 = vshll.u32 %v4594, 16
        %v4819 = vrot.slane %v4817, 5
        %v4820 = vsel %vm2641, %v4815, %v4819
        %v4821 = vshrl.u32 %v4594, 16
        %v4823 = vrot.slane %v4821, 4
        %v4824 = vor.u32 %v4823, %v4819
        %v4825 = vrot.slane %v4824, 4
        %v4827 = vshll.u32 %v4595, 16
        %v4829 = vrot.slane %v4827, 5
        %v4830 = vsel %vm2641, %v4825, %v4829
        %v4832 = vshrl.u32 %v4596, 16
        %v4834 = vrot.slane %v4832, 4
        %v4835 = vshll.u32 %v4596, 16
        %v4837 = vrot.slane %v4835, 5
        %v4838 = vor.u32 %v4834, %v4837
        %v4839 = vrot.slane %v4838, 4
        %v4841 = vshll.u32 %v4597, 16
        %v4843 = vrot.slane %v4841, 5
        %v4844 = vsel %vm2641, %v4839, %v4843
        %v4845 = vshrl.u32 %v4597, 16
        %v4847 = vrot.slane %v4845, 4
        %v4848 = vor.u32 %v4847, %v4843
        %v4849 = vrot.slane %v4848, 4
        %v4851 = vshll.u32 %v4598, 16
        %v4853 = vrot.slane %v4851, 5
        %v4854 = vsel %vm2641, %v4849, %v4853
        %v4855 = vshrl.u32 %v4598, 16
        %v4857 = vrot.slane %v4855, 4
        %v4858 = vor.u32 %v4857, %v4853
        %v4859 = vrot.slane %v4858, 4
        %v4861 = vshll.u32 %v4599, 16
        %v4863 = vrot.slane %v4861, 5
        %v4864 = vsel %vm2641, %v4859, %v4863
        %v4865 = vshrl.u32 %v4599, 16
        %v4867 = vrot.slane %v4865, 4
        %v4868 = vor.u32 %v4867, %v4863
        %v4869 = vrot.slane %v4868, 4
        %v4871 = vshll.u32 %v4600, 16
        %v4873 = vrot.slane %v4871, 5
        %v4874 = vsel %vm2641, %v4869, %v4873
        %v4876 = vshrl.u32 %v4601, 16
        %v4878 = vrot.slane %v4876, 4
        %v4879 = vshll.u32 %v4601, 16
        %v4881 = vrot.slane %v4879, 5
        %v4882 = vor.u32 %v4878, %v4881
        %v4883 = vrot.slane %v4882, 4
        %v4885 = vshll.u32 %v4602, 16
        %v4887 = vrot.slane %v4885, 5
        %v4888 = vsel %vm2641, %v4883, %v4887
        %v4889 = vshrl.u32 %v4602, 16
        %v4891 = vrot.slane %v4889, 4
        %v4892 = vor.u32 %v4891, %v4887
        %v4893 = vrot.slane %v4892, 4
        %v4895 = vshll.u32 %v4603, 16
        %v4897 = vrot.slane %v4895, 5
        %v4898 = vsel %vm2641, %v4893, %v4897
        %v4899 = vshrl.u32 %v4603, 16
        %v4901 = vrot.slane %v4899, 4
        %v4902 = vor.u32 %v4901, %v4897
        %v4903 = vrot.slane %v4902, 4
        %v4905 = vshll.u32 %v4604, 16
        %v4907 = vrot.slane %v4905, 5
        %v4908 = vsel %vm2641, %v4903, %v4907
        %v4909 = vshrl.u32 %v4604, 16
        %v4911 = vrot.slane %v4909, 4
        %v4912 = vor.u32 %v4911, %v4907
        %v4913 = vrot.slane %v4912, 4
        %v4915 = vshll.u32 %v4605, 16
        %v4917 = vrot.slane %v4915, 5
        %v4918 = vsel %vm2641, %v4913, %v4917
        %v4920 = vshrl.u32 %v4606, 16
        %v4922 = vrot.slane %v4920, 4
        %v4923 = vshll.u32 %v4606, 16
        %v4925 = vrot.slane %v4923, 5
        %v4926 = vor.u32 %v4922, %v4925
        %v4927 = vrot.slane %v4926, 4
        %v4929 = vshll.u32 %v4607, 16
        %v4931 = vrot.slane %v4929, 5
        %v4932 = vsel %vm2641, %v4927, %v4931
        %v4933 = vshrl.u32 %v4607, 16
        %v4935 = vrot.slane %v4933, 4
        %v4936 = vor.u32 %v4935, %v4931
        %v4937 = vrot.slane %v4936, 4
        %v4939 = vshll.u32 %v4608, 16
        %v4941 = vrot.slane %v4939, 5
        %v4942 = vsel %vm2641, %v4937, %v4941
        %v4943 = vshrl.u32 %v4608, 16
        %v4945 = vrot.slane %v4943, 4
        %v4946 = vor.u32 %v4945, %v4941
        %v4947 = vrot.slane %v4946, 4
        %v4949 = vshll.u32 %v4609, 16
        %v4951 = vrot.slane %v4949, 5
        %v4952 = vsel %vm2641, %v4947, %v4951
        %v4953 = vshrl.u32 %v4609, 16
        %v4955 = vrot.slane %v4953, 4
        %v4956 = vor.u32 %v4955, %v4951
        %v4957 = vrot.slane %v4956, 4
        %v4959 = vshll.u32 %v4610, 16
        %v4961 = vrot.slane %v4959, 5
        %v4962 = vsel %vm2641, %v4957, %v4961
        %v4963 = vunpack.c.l.b16 %v4624
        %v4964 = vunpack.c.l.b16 %v4634
        %v4965 = vunpack.c.l.b16 %v4644
        %v4966 = vunpack.c.l.b16 %v4654
        %v4967 = vunpack.c.l.b16 %v4668
        %v4968 = vunpack.c.l.b16 %v4678
        %v4969 = vunpack.c.l.b16 %v4688
        %v4970 = vunpack.c.l.b16 %v4698
        %v4971 = vunpack.c.l.b16 %v4712
        %v4972 = vunpack.c.l.b16 %v4722
        %v4973 = vunpack.c.l.b16 %v4732
        %v4974 = vunpack.c.l.b16 %v4742
        %v4975 = vunpack.c.l.b16 %v4756
        %v4976 = vunpack.c.l.b16 %v4766
        %v4977 = vunpack.c.l.b16 %v4776
        %v4978 = vunpack.c.l.b16 %v4786
        %v4979 = vunpack.c.l.b16 %v4800
        %v4980 = vunpack.c.l.b16 %v4810
        %v4981 = vunpack.c.l.b16 %v4820
        %v4982 = vunpack.c.l.b16 %v4830
        %v4983 = vunpack.c.l.b16 %v4844
        %v4984 = vunpack.c.l.b16 %v4854
        %v4985 = vunpack.c.l.b16 %v4864
        %v4986 = vunpack.c.l.b16 %v4874
        %v4987 = vunpack.c.l.b16 %v4888
        %v4988 = vunpack.c.l.b16 %v4898
        %v4989 = vunpack.c.l.b16 %v4908
        %v4990 = vunpack.c.l.b16 %v4918
        %v4991 = vunpack.c.l.b16 %v4932
        %v4992 = vunpack.c.l.b16 %v4942
        %v4993 = vunpack.c.l.b16 %v4952
        %v4994 = vunpack.c.l.b16 %v4962
        %v4995 = vpack.c.b16 %v4964, %v4963
        %v4996 = vpack.c.b16 %v4966, %v4965
        %v4997 = vpack.c.b16 %v4968, %v4967
        %v4998 = vpack.c.b16 %v4970, %v4969
        %v4999 = vpack.c.b16 %v4972, %v4971
        %v5000 = vpack.c.b16 %v4974, %v4973
        %v5001 = vpack.c.b16 %v4976, %v4975
        %v5002 = vpack.c.b16 %v4978, %v4977
        %v5003 = vpack.c.b16 %v4980, %v4979
        %v5004 = vpack.c.b16 %v4982, %v4981
        %v5005 = vpack.c.b16 %v4984, %v4983
        %v5006 = vpack.c.b16 %v4986, %v4985
        %v5007 = vpack.c.b16 %v4988, %v4987
        %v5008 = vpack.c.b16 %v4990, %v4989
        %v5009 = vpack.c.b16 %v4992, %v4991
        %v5010 = vpack.c.b16 %v4994, %v4993
        %5011 = vrot.lane.b32.xlu0 %v4995, 21
        %v5012 = vpop.permute.xlu0 %5011
        %5013 = vrot.lane.b32.xlu0 %v4996, 21
        %v5014 = vpop.permute.xlu0 %5013
        %5015 = vrot.lane.b32.xlu0 %v4997, 21
        %v5016 = vpop.permute.xlu0 %5015
        %5017 = vrot.lane.b32.xlu0 %v4998, 21
        %v5018 = vpop.permute.xlu0 %5017
        %5019 = vrot.lane.b32.xlu0 %v4999, 21
        %v5020 = vpop.permute.xlu0 %5019
        %5021 = vrot.lane.b32.xlu0 %v5000, 21
        %v5022 = vpop.permute.xlu0 %5021
        %5023 = vrot.lane.b32.xlu0 %v5001, 21
        %v5024 = vpop.permute.xlu0 %5023
        %5025 = vrot.lane.b32.xlu0 %v5002, 21
        %v5026 = vpop.permute.xlu0 %5025
        %5027 = vrot.lane.b32.xlu0 %v5003, 21
        %v5028 = vpop.permute.xlu0 %5027
        %5029 = vrot.lane.b32.xlu0 %v5004, 21
        %v5030 = vpop.permute.xlu0 %5029
        %5031 = vrot.lane.b32.xlu0 %v5005, 21
        %v5032 = vpop.permute.xlu0 %5031
        %5033 = vrot.lane.b32.xlu0 %v5006, 21
        %v5034 = vpop.permute.xlu0 %5033
        %5035 = vrot.lane.b32.xlu0 %v5007, 21
        %v5036 = vpop.permute.xlu0 %5035
        %5037 = vrot.lane.b32.xlu0 %v5008, 21
        %v5038 = vpop.permute.xlu0 %5037
        %5039 = vrot.lane.b32.xlu0 %v5009, 21
        %v5040 = vpop.permute.xlu0 %5039
        %5041 = vrot.lane.b32.xlu0 %v5010, 21
        %v5042 = vpop.permute.xlu0 %5041
        %vm5059 = vcmask 195752
        %5060 = vst.msk [vmem:[#allocation3] sm:$0xff] %vm5059, %v5012
        %5061 = vst.msk [vmem:[#allocation3 + $0x8] sm:$0xff] %vm5059, %v5014
        %5062 = vst.msk [vmem:[#allocation3 + $0x10] sm:$0xff] %vm5059, %v5016
        %5063 = vst.msk [vmem:[#allocation3 + $0x18] sm:$0xff] %vm5059, %v5018
        %5064 = vst.msk [vmem:[#allocation3 + $0x20] sm:$0xff] %vm5059, %v5020
        %5065 = vst.msk [vmem:[#allocation3 + $0x28] sm:$0xff] %vm5059, %v5022
        %5066 = vst.msk [vmem:[#allocation3 + $0x30] sm:$0xff] %vm5059, %v5024
        %5067 = vst.msk [vmem:[#allocation3 + $0x38] sm:$0xff] %vm5059, %v5026
        %5068 = vst.msk [vmem:[#allocation3 + $0x40] sm:$0xff] %vm5059, %v5028
        %5069 = vst.msk [vmem:[#allocation3 + $0x48] sm:$0xff] %vm5059, %v5030
        %5070 = vst.msk [vmem:[#allocation3 + $0x50] sm:$0xff] %vm5059, %v5032
        %5071 = vst.msk [vmem:[#allocation3 + $0x58] sm:$0xff] %vm5059, %v5034
        %5072 = vst.msk [vmem:[#allocation3 + $0x60] sm:$0xff] %vm5059, %v5036
        %5073 = vst.msk [vmem:[#allocation3 + $0x68] sm:$0xff] %vm5059, %v5038
        %5074 = vst.msk [vmem:[#allocation3 + $0x70] sm:$0xff] %vm5059, %v5040
        %5075 = vst.msk [vmem:[#allocation3 + $0x78] sm:$0xff] %vm5059, %v5042
        %v5076 = vld [vmem:[%s4393] sm:$0xe]
        %v5077 = vld [vmem:[%s4393 + $0x4] sm:$0xf]
        %v5078 = vld [vmem:[%s4393 + $0x8] sm:$0xf]
        %v5079 = vld [vmem:[%s4393 + $0xc] sm:$0xf]
        %v5080 = vld [vmem:[%s4393 + $0x10] sm:$0x1]
        %v5081 = vld [vmem:[%s4393 + $0x14] sm:$0xe]
        %v5082 = vld [vmem:[%s4393 + $0x18] sm:$0xf]
        %v5083 = vld [vmem:[%s4393 + $0x1c] sm:$0xf]
        %v5084 = vld [vmem:[%s4393 + $0x20] sm:$0xf]
        %v5085 = vld [vmem:[%s4393 + $0x24] sm:$0x1]
        %v5086 = vld [vmem:[%s4393 + $0x28] sm:$0xe]
        %v5087 = vld [vmem:[%s4393 + $0x2c] sm:$0xf]
        %v5088 = vld [vmem:[%s4393 + $0x30] sm:$0xf]
        %v5089 = vld [vmem:[%s4393 + $0x34] sm:$0xf]
        %v5090 = vld [vmem:[%s4393 + $0x38] sm:$0x1]
        %v5091 = vld [vmem:[%s4393 + $0x3c] sm:$0xe]
        %v5092 = vld [vmem:[%s4393 + $0x40] sm:$0xf]
        %v5093 = vld [vmem:[%s4393 + $0x44] sm:$0xf]
        %v5094 = vld [vmem:[%s4393 + $0x48] sm:$0xf]
        %v5095 = vld [vmem:[%s4393 + $0x4c] sm:$0x1]
        %v5096 = vld [vmem:[%s4393 + $0x50] sm:$0xe]
        %v5097 = vld [vmem:[%s4393 + $0x54] sm:$0xf]
        %v5098 = vld [vmem:[%s4393 + $0x58] sm:$0xf]
        %v5099 = vld [vmem:[%s4393 + $0x5c] sm:$0xf]
        %v5100 = vld [vmem:[%s4393 + $0x60] sm:$0x1]
        %v5101 = vld [vmem:[%s4393 + $0x64] sm:$0xe]
        %v5102 = vld [vmem:[%s4393 + $0x68] sm:$0xf]
        %v5103 = vld [vmem:[%s4393 + $0x6c] sm:$0xf]
        %v5104 = vld [vmem:[%s4393 + $0x70] sm:$0xf]
        %v5105 = vld [vmem:[%s4393 + $0x74] sm:$0x1]
        %v5106 = vld [vmem:[%s4393 + $0x78] sm:$0xe]
        %v5107 = vld [vmem:[%s4393 + $0x7c] sm:$0xf]
        %v5108 = vld [vmem:[%s4393 + $0x80] sm:$0xf]
        %v5109 = vld [vmem:[%s4393 + $0x84] sm:$0xf]
        %v5110 = vld [vmem:[%s4393 + $0x88] sm:$0x1]
        %v5111 = vld [vmem:[%s4393 + $0x8c] sm:$0xe]
        %v5112 = vld [vmem:[%s4393 + $0x90] sm:$0xf]
        %v5113 = vld [vmem:[%s4393 + $0x94] sm:$0xf]
        %v5114 = vld [vmem:[%s4393 + $0x98] sm:$0xf]
        %v5115 = vld [vmem:[%s4393 + $0x9c] sm:$0x1]
        %v5156 = vrot.slane %v5076, 5
        %v5157 = vrot.slane %v5156, 4
        %v5158 = vrot.slane %v5077, 5
        %v5159 = vsel %vm3189, %v5157, %v5158
        %v5160 = vrot.slane %v5158, 4
        %v5161 = vrot.slane %v5078, 5
        %v5162 = vsel %vm3189, %v5160, %v5161
        %v5163 = vrot.slane %v5161, 4
        %v5164 = vrot.slane %v5079, 5
        %v5165 = vsel %vm3189, %v5163, %v5164
        %v5166 = vrot.slane %v5164, 4
        %v5167 = vrot.slane %v5080, 5
        %v5168 = vsel %vm3189, %v5166, %v5167
        %v5169 = vrot.slane %v5081, 5
        %v5170 = vrot.slane %v5169, 4
        %v5171 = vrot.slane %v5082, 5
        %v5172 = vsel %vm3189, %v5170, %v5171
        %v5173 = vrot.slane %v5171, 4
        %v5174 = vrot.slane %v5083, 5
        %v5175 = vsel %vm3189, %v5173, %v5174
        %v5176 = vrot.slane %v5174, 4
        %v5177 = vrot.slane %v5084, 5
        %v5178 = vsel %vm3189, %v5176, %v5177
        %v5179 = vrot.slane %v5177, 4
        %v5180 = vrot.slane %v5085, 5
        %v5181 = vsel %vm3189, %v5179, %v5180
        %v5182 = vrot.slane %v5086, 5
        %v5183 = vrot.slane %v5182, 4
        %v5184 = vrot.slane %v5087, 5
        %v5185 = vsel %vm3189, %v5183, %v5184
        %v5186 = vrot.slane %v5184, 4
        %v5187 = vrot.slane %v5088, 5
        %v5188 = vsel %vm3189, %v5186, %v5187
        %v5189 = vrot.slane %v5187, 4
        %v5190 = vrot.slane %v5089, 5
        %v5191 = vsel %vm3189, %v5189, %v5190
        %v5192 = vrot.slane %v5190, 4
        %v5193 = vrot.slane %v5090, 5
        %v5194 = vsel %vm3189, %v5192, %v5193
        %v5195 = vrot.slane %v5091, 5
        %v5196 = vrot.slane %v5195, 4
        %v5197 = vrot.slane %v5092, 5
        %v5198 = vsel %vm3189, %v5196, %v5197
        %v5199 = vrot.slane %v5197, 4
        %v5200 = vrot.slane %v5093, 5
        %v5201 = vsel %vm3189, %v5199, %v5200
        %v5202 = vrot.slane %v5200, 4
        %v5203 = vrot.slane %v5094, 5
        %v5204 = vsel %vm3189, %v5202, %v5203
        %v5205 = vrot.slane %v5203, 4
        %v5206 = vrot.slane %v5095, 5
        %v5207 = vsel %vm3189, %v5205, %v5206
        %v5208 = vrot.slane %v5096, 5
        %v5209 = vrot.slane %v5208, 4
        %v5210 = vrot.slane %v5097, 5
        %v5211 = vsel %vm3189, %v5209, %v5210
        %v5212 = vrot.slane %v5210, 4
        %v5213 = vrot.slane %v5098, 5
        %v5214 = vsel %vm3189, %v5212, %v5213
        %v5215 = vrot.slane %v5213, 4
        %v5216 = vrot.slane %v5099, 5
        %v5217 = vsel %vm3189, %v5215, %v5216
        %v5218 = vrot.slane %v5216, 4
        %v5219 = vrot.slane %v5100, 5
        %v5220 = vsel %vm3189, %v5218, %v5219
        %v5221 = vrot.slane %v5101, 5
        %v5222 = vrot.slane %v5221, 4
        %v5223 = vrot.slane %v5102, 5
        %v5224 = vsel %vm3189, %v5222, %v5223
        %v5225 = vrot.slane %v5223, 4
        %v5226 = vrot.slane %v5103, 5
        %v5227 = vsel %vm3189, %v5225, %v5226
        %v5228 = vrot.slane %v5226, 4
        %v5229 = vrot.slane %v5104, 5
        %v5230 = vsel %vm3189, %v5228, %v5229
        %v5231 = vrot.slane %v5229, 4
        %v5232 = vrot.slane %v5105, 5
        %v5233 = vsel %vm3189, %v5231, %v5232
        %v5234 = vrot.slane %v5106, 5
        %v5235 = vrot.slane %v5234, 4
        %v5236 = vrot.slane %v5107, 5
        %v5237 = vsel %vm3189, %v5235, %v5236
        %v5238 = vrot.slane %v5236, 4
        %v5239 = vrot.slane %v5108, 5
        %v5240 = vsel %vm3189, %v5238, %v5239
        %v5241 = vrot.slane %v5239, 4
        %v5242 = vrot.slane %v5109, 5
        %v5243 = vsel %vm3189, %v5241, %v5242
        %v5244 = vrot.slane %v5242, 4
        %v5245 = vrot.slane %v5110, 5
        %v5246 = vsel %vm3189, %v5244, %v5245
        %v5247 = vrot.slane %v5111, 5
        %v5248 = vrot.slane %v5247, 4
        %v5249 = vrot.slane %v5112, 5
        %v5250 = vsel %vm3189, %v5248, %v5249
        %v5251 = vrot.slane %v5249, 4
        %v5252 = vrot.slane %v5113, 5
        %v5253 = vsel %vm3189, %v5251, %v5252
        %v5254 = vrot.slane %v5252, 4
        %v5255 = vrot.slane %v5114, 5
        %v5256 = vsel %vm3189, %v5254, %v5255
        %v5257 = vrot.slane %v5255, 4
        %v5258 = vrot.slane %v5115, 5
        %v5259 = vsel %vm3189, %v5257, %v5258
        %v5260 = vunpack.c.l.b16 %v5159
        %v5261 = vunpack.c.l.b16 %v5162
        %v5262 = vunpack.c.l.b16 %v5165
        %v5263 = vunpack.c.l.b16 %v5168
        %v5264 = vunpack.c.l.b16 %v5172
        %v5265 = vunpack.c.l.b16 %v5175
        %v5266 = vunpack.c.l.b16 %v5178
        %v5267 = vunpack.c.l.b16 %v5181
        %v5268 = vunpack.c.l.b16 %v5185
        %v5269 = vunpack.c.l.b16 %v5188
        %v5270 = vunpack.c.l.b16 %v5191
        %v5271 = vunpack.c.l.b16 %v5194
        %v5272 = vunpack.c.l.b16 %v5198
        %v5273 = vunpack.c.l.b16 %v5201
        %v5274 = vunpack.c.l.b16 %v5204
        %v5275 = vunpack.c.l.b16 %v5207
        %v5276 = vunpack.c.l.b16 %v5211
        %v5277 = vunpack.c.l.b16 %v5214
        %v5278 = vunpack.c.l.b16 %v5217
        %v5279 = vunpack.c.l.b16 %v5220
        %v5280 = vunpack.c.l.b16 %v5224
        %v5281 = vunpack.c.l.b16 %v5227
        %v5282 = vunpack.c.l.b16 %v5230
        %v5283 = vunpack.c.l.b16 %v5233
        %v5284 = vunpack.c.l.b16 %v5237
        %v5285 = vunpack.c.l.b16 %v5240
        %v5286 = vunpack.c.l.b16 %v5243
        %v5287 = vunpack.c.l.b16 %v5246
        %v5288 = vunpack.c.l.b16 %v5250
        %v5289 = vunpack.c.l.b16 %v5253
        %v5290 = vunpack.c.l.b16 %v5256
        %v5291 = vunpack.c.l.b16 %v5259
        %v5292 = vpack.c.b16 %v5261, %v5260
        %v5293 = vpack.c.b16 %v5263, %v5262
        %v5294 = vpack.c.b16 %v5265, %v5264
        %v5295 = vpack.c.b16 %v5267, %v5266
        %v5296 = vpack.c.b16 %v5269, %v5268
        %v5297 = vpack.c.b16 %v5271, %v5270
        %v5298 = vpack.c.b16 %v5273, %v5272
        %v5299 = vpack.c.b16 %v5275, %v5274
        %v5300 = vpack.c.b16 %v5277, %v5276
        %v5301 = vpack.c.b16 %v5279, %v5278
        %v5302 = vpack.c.b16 %v5281, %v5280
        %v5303 = vpack.c.b16 %v5283, %v5282
        %v5304 = vpack.c.b16 %v5285, %v5284
        %v5305 = vpack.c.b16 %v5287, %v5286
        %v5306 = vpack.c.b16 %v5289, %v5288
        %v5307 = vpack.c.b16 %v5291, %v5290
        %5308 = vrot.lane.b32.xlu0 %v5292, 24
        %v5309 = vpop.permute.xlu0 %5308
        %5310 = vrot.lane.b32.xlu0 %v5293, 24
        %v5311 = vpop.permute.xlu0 %5310
        %5312 = vrot.lane.b32.xlu0 %v5294, 24
        %v5313 = vpop.permute.xlu0 %5312
        %5314 = vrot.lane.b32.xlu0 %v5295, 24
        %v5315 = vpop.permute.xlu0 %5314
        %5316 = vrot.lane.b32.xlu0 %v5296, 24
        %v5317 = vpop.permute.xlu0 %5316
        %5318 = vrot.lane.b32.xlu0 %v5297, 24
        %v5319 = vpop.permute.xlu0 %5318
        %5320 = vrot.lane.b32.xlu0 %v5298, 24
        %v5321 = vpop.permute.xlu0 %5320
        %5322 = vrot.lane.b32.xlu0 %v5299, 24
        %v5323 = vpop.permute.xlu0 %5322
        %5324 = vrot.lane.b32.xlu0 %v5300, 24
        %v5325 = vpop.permute.xlu0 %5324
        %5326 = vrot.lane.b32.xlu0 %v5301, 24
        %v5327 = vpop.permute.xlu0 %5326
        %5328 = vrot.lane.b32.xlu0 %v5302, 24
        %v5329 = vpop.permute.xlu0 %5328
        %5330 = vrot.lane.b32.xlu0 %v5303, 24
        %v5331 = vpop.permute.xlu0 %5330
        %5332 = vrot.lane.b32.xlu0 %v5304, 24
        %v5333 = vpop.permute.xlu0 %5332
        %5334 = vrot.lane.b32.xlu0 %v5305, 24
        %v5335 = vpop.permute.xlu0 %5334
        %5336 = vrot.lane.b32.xlu0 %v5306, 24
        %v5337 = vpop.permute.xlu0 %5336
        %5338 = vrot.lane.b32.xlu0 %v5307, 24
        %v5339 = vpop.permute.xlu0 %5338
        %vm5356 = vcmask 220352
        %5357 = vst.msk [vmem:[#allocation3] sm:$0xff] %vm5356, %v5309
        %5358 = vst.msk [vmem:[#allocation3 + $0x8] sm:$0xff] %vm5356, %v5311
        %5359 = vst.msk [vmem:[#allocation3 + $0x10] sm:$0xff] %vm5356, %v5313
        %5360 = vst.msk [vmem:[#allocation3 + $0x18] sm:$0xff] %vm5356, %v5315
        %5361 = vst.msk [vmem:[#allocation3 + $0x20] sm:$0xff] %vm5356, %v5317
        %5362 = vst.msk [vmem:[#allocation3 + $0x28] sm:$0xff] %vm5356, %v5319
        %5363 = vst.msk [vmem:[#allocation3 + $0x30] sm:$0xff] %vm5356, %v5321
        %5364 = vst.msk [vmem:[#allocation3 + $0x38] sm:$0xff] %vm5356, %v5323
        %5365 = vst.msk [vmem:[#allocation3 + $0x40] sm:$0xff] %vm5356, %v5325
        %5366 = vst.msk [vmem:[#allocation3 + $0x48] sm:$0xff] %vm5356, %v5327
        %5367 = vst.msk [vmem:[#allocation3 + $0x50] sm:$0xff] %vm5356, %v5329
        %5368 = vst.msk [vmem:[#allocation3 + $0x58] sm:$0xff] %vm5356, %v5331
        %5369 = vst.msk [vmem:[#allocation3 + $0x60] sm:$0xff] %vm5356, %v5333
        %5370 = vst.msk [vmem:[#allocation3 + $0x68] sm:$0xff] %vm5356, %v5335
        %5371 = vst.msk [vmem:[#allocation3 + $0x70] sm:$0xff] %vm5356, %v5337
        %5372 = vst.msk [vmem:[#allocation3 + $0x78] sm:$0xff] %vm5356, %v5339
        %v5373 = vld [vmem:[#allocation3] sm:$0xff]
        %v5374 = vld [vmem:[#allocation3 + $0x8] sm:$0xff]
        %v5375 = vld [vmem:[#allocation3 + $0x10] sm:$0xff]
        %v5376 = vld [vmem:[#allocation3 + $0x18] sm:$0xff]
        %v5377 = vld [vmem:[#allocation3 + $0x20] sm:$0xff]
        %v5378 = vld [vmem:[#allocation3 + $0x28] sm:$0xff]
        %v5379 = vld [vmem:[#allocation3 + $0x30] sm:$0xff]
        %v5380 = vld [vmem:[#allocation3 + $0x38] sm:$0xff]
        %v5381 = vld [vmem:[#allocation3 + $0x40] sm:$0xff]
        %v5382 = vld [vmem:[#allocation3 + $0x48] sm:$0xff]
        %v5383 = vld [vmem:[#allocation3 + $0x50] sm:$0xff]
        %v5384 = vld [vmem:[#allocation3 + $0x58] sm:$0xff]
        %v5385 = vld [vmem:[#allocation3 + $0x60] sm:$0xff]
        %v5386 = vld [vmem:[#allocation3 + $0x68] sm:$0xff]
        %v5387 = vld [vmem:[#allocation3 + $0x70] sm:$0xff]
        %v5388 = vld [vmem:[#allocation3 + $0x78] sm:$0xff]
        %v5389 = vld [vmem:[%s1] sm:$0xf]
        %v5390 = vld [vmem:[%s1 + $0x4] sm:$0xf]
        %v5391 = vld [vmem:[%s1 + $0x8] sm:$0xf]
        %v5392 = vld [vmem:[%s1 + $0xc] sm:$0x3]
        %v5393 = vld [vmem:[%s2] sm:$0x1]
        %v5395 = vlaneseq
        %v5396 = vshrl.u32 %v5395, 7
        %v5397 = vsub.s32 0, %v5396
        %v5398 = vrot.slane %v5393, %v5397
        %v5404 = vunpack.c.l.b16 %v5389
        %v5405 = vunpack.c.l.b16 %v5390
        %v5406 = vunpack.c.l.b16 %v5391
        %v5407 = vunpack.c.l.b16 %v5392
        %v5408 = vpack.c.b16 %v5405, %v5404
        %v5409 = vpack.c.b16 %v5407, %v5406
        %vm5411 = vcmask 220160
        %v5413 = vsel %vm5411, %v5373, 0
        %v5416 = vsel %vm5411, %v5374, 0
        %v5419 = vsel %vm5411, %v5375, 0
        %v5422 = vsel %vm5411, %v5376, 0
        %v5425 = vsel %vm5411, %v5377, 0
        %v5428 = vsel %vm5411, %v5378, 0
        %v5431 = vsel %vm5411, %v5379, 0
        %v5434 = vsel %vm5411, %v5380, 0
        %v5437 = vsel %vm5411, %v5381, 0
        %v5440 = vsel %vm5411, %v5382, 0
        %v5443 = vsel %vm5411, %v5383, 0
        %v5446 = vsel %vm5411, %v5384, 0
        %v5449 = vsel %vm5411, %v5385, 0
        %v5452 = vsel %vm5411, %v5386, 0
        %v5455 = vsel %vm5411, %v5387, 0
        %v5458 = vsel %vm5411, %v5388, 0
        %vm5460 = vcmask 1044480
        %vm5461 = vcmask 1045504
        %v5462 = vsel %vm5460, 4294967295, 65535
        %v5463 = vsel %vm5461, %v5462, 0
        %v5465 = vand.u32 %v5409, %v5463
        %5467 = vmatprep.subr.bf16.mxu0 0
        %5468 = vmatpush1.bf16.msra.mxu0 %v5408
        %5469 = vmatprep.subr.bf16.mxu0 0
        %5470 = vmatpush1.bf16.msra.mxu0 %v5465
        %5471 = vmatprep.subr.bf16.mxu0 0
        %5472 = vmatpush1.bf16.msra.mxu0 0
        %5473 = vmatprep.subr.bf16.mxu0 0
        %5474 = vmatpush1.bf16.msra.mxu0 0
        %5475 = vmatprep.subr.bf16.mxu0 0
        %5476 = vmatpush1.bf16.msra.mxu0 0
        %5477 = vmatprep.subr.bf16.mxu0 0
        %5478 = vmatpush1.bf16.msra.mxu0 0
        %5479 = vmatprep.subr.bf16.mxu0 0
        %5480 = vmatpush1.bf16.msra.mxu0 0
        %5481 = vmatprep.subr.bf16.mxu0 0
        %5482 = vmatpush1.bf16.msra.mxu0 0
        %5483 = vmatprep.subr.bf16.mxu0 0
        %5484 = vmatpush1.bf16.msra.mxu0 0
        %5485 = vmatprep.subr.bf16.mxu0 0
        %5486 = vmatpush1.bf16.msra.mxu0 0
        %5487 = vmatprep.subr.bf16.mxu0 0
        %5488 = vmatpush1.bf16.msra.mxu0 0
        %5489 = vmatprep.subr.bf16.mxu0 0
        %5490 = vmatpush1.bf16.msra.mxu0 0
        %5491 = vmatprep.subr.bf16.mxu0 0
        %5492 = vmatpush1.bf16.msra.mxu0 0
        %5493 = vmatprep.subr.bf16.mxu0 0
        %5494 = vmatpush1.bf16.msra.mxu0 0
        %5495 = vmatprep.subr.bf16.mxu0 0
        %5496 = vmatpush1.bf16.msra.mxu0 0
        %5497 = vmatprep.subr.bf16.mxu0 0
        %5498 = vmatpush1.bf16.msra.mxu0 0
        %5499 = vmatprep.mubr.bf16.mxu0 0
        %5500 = vmatmul.mubr.bf16.gmra.mrb[0].mxu0 %v5413
        %v5501 = vpop.f32.mrb[0].mxu0
        %v5502 = vadd.f32 %v5398, %v5501
        %v5503 = vpop.f32.mrb[0].mxu0
        %v5504 = vpop.f32.mrb[0].mxu0
        %v5505 = vadd.f32 %v5398, %v5504
        %v5506 = vpop.f32.mrb[0].mxu0
        %5507 = vmatprep.mubr.bf16.mxu0 0
        %5508 = vmatmul.mubr.bf16.gmra.mrb[0].mxu0 %v5416
        %v5509 = vpop.f32.mrb[0].mxu0
        %v5510 = vadd.f32 %v5398, %v5509
        %v5511 = vpop.f32.mrb[0].mxu0
        %v5512 = vpop.f32.mrb[0].mxu0
        %v5513 = vadd.f32 %v5398, %v5512
        %v5514 = vpop.f32.mrb[0].mxu0
        %5515 = vmatprep.mubr.bf16.mxu0 0
        %5516 = vmatmul.mubr.bf16.gmra.mrb[0].mxu0 %v5419
        %v5517 = vpop.f32.mrb[0].mxu0
        %v5518 = vadd.f32 %v5398, %v5517
        %v5519 = vpop.f32.mrb[0].mxu0
        %v5520 = vpop.f32.mrb[0].mxu0
        %v5521 = vadd.f32 %v5398, %v5520
        %v5522 = vpop.f32.mrb[0].mxu0
        %5523 = vmatprep.mubr.bf16.mxu0 0
        %5524 = vmatmul.mubr.bf16.gmra.mrb[0].mxu0 %v5422
        %v5525 = vpop.f32.mrb[0].mxu0
        %v5526 = vadd.f32 %v5398, %v5525
        %v5527 = vpop.f32.mrb[0].mxu0
        %v5528 = vpop.f32.mrb[0].mxu0
        %v5529 = vadd.f32 %v5398, %v5528
        %v5530 = vpop.f32.mrb[0].mxu0
        %5531 = vmatprep.mubr.bf16.mxu0 0
        %5532 = vmatmul.mubr.bf16.gmra.mrb[0].mxu0 %v5425
        %v5533 = vpop.f32.mrb[0].mxu0
        %v5534 = vadd.f32 %v5398, %v5533
        %v5535 = vpop.f32.mrb[0].mxu0
        %v5536 = vpop.f32.mrb[0].mxu0
        %v5537 = vadd.f32 %v5398, %v5536
        %v5538 = vpop.f32.mrb[0].mxu0
        %5539 = vmatprep.mubr.bf16.mxu0 0
        %5540 = vmatmul.mubr.bf16.gmra.mrb[0].mxu0 %v5428
        %v5541 = vpop.f32.mrb[0].mxu0
        %v5542 = vadd.f32 %v5398, %v5541
        %v5543 = vpop.f32.mrb[0].mxu0
        %v5544 = vpop.f32.mrb[0].mxu0
        %v5545 = vadd.f32 %v5398, %v5544
        %v5546 = vpop.f32.mrb[0].mxu0
        %5547 = vmatprep.mubr.bf16.mxu0 0
        %5548 = vmatmul.mubr.bf16.gmra.mrb[0].mxu0 %v5431
        %v5549 = vpop.f32.mrb[0].mxu0
        %v5550 = vadd.f32 %v5398, %v5549
        %v5551 = vpop.f32.mrb[0].mxu0
        %v5552 = vpop.f32.mrb[0].mxu0
        %v5553 = vadd.f32 %v5398, %v5552
        %v5554 = vpop.f32.mrb[0].mxu0
        %5555 = vmatprep.mubr.bf16.mxu0 0
        %5556 = vmatmul.mubr.bf16.gmra.mrb[0].mxu0 %v5434
        %v5557 = vpop.f32.mrb[0].mxu0
        %v5558 = vadd.f32 %v5398, %v5557
        %v5559 = vpop.f32.mrb[0].mxu0
        %v5560 = vpop.f32.mrb[0].mxu0
        %v5561 = vadd.f32 %v5398, %v5560
        %v5562 = vpop.f32.mrb[0].mxu0
        %5563 = vmatprep.mubr.bf16.mxu0 0
        %5564 = vmatmul.mubr.bf16.gmra.mrb[0].mxu0 %v5437
        %v5565 = vpop.f32.mrb[0].mxu0
        %v5566 = vadd.f32 %v5398, %v5565
        %v5567 = vpop.f32.mrb[0].mxu0
        %v5568 = vpop.f32.mrb[0].mxu0
        %v5569 = vadd.f32 %v5398, %v5568
        %v5570 = vpop.f32.mrb[0].mxu0
        %5571 = vmatprep.mubr.bf16.mxu0 0
        %5572 = vmatmul.mubr.bf16.gmra.mrb[0].mxu0 %v5440
        %v5573 = vpop.f32.mrb[0].mxu0
        %v5574 = vadd.f32 %v5398, %v5573
        %v5575 = vpop.f32.mrb[0].mxu0
        %v5576 = vpop.f32.mrb[0].mxu0
        %v5577 = vadd.f32 %v5398, %v5576
        %v5578 = vpop.f32.mrb[0].mxu0
        %5579 = vmatprep.mubr.bf16.mxu0 0
        %5580 = vmatmul.mubr.bf16.gmra.mrb[0].mxu0 %v5443
        %v5581 = vpop.f32.mrb[0].mxu0
        %v5582 = vadd.f32 %v5398, %v5581
        %v5583 = vpop.f32.mrb[0].mxu0
        %v5584 = vpop.f32.mrb[0].mxu0
        %v5585 = vadd.f32 %v5398, %v5584
        %v5586 = vpop.f32.mrb[0].mxu0
        %5587 = vmatprep.mubr.bf16.mxu0 0
        %5588 = vmatmul.mubr.bf16.gmra.mrb[0].mxu0 %v5446
        %v5589 = vpop.f32.mrb[0].mxu0
        %v5590 = vadd.f32 %v5398, %v5589
        %v5591 = vpop.f32.mrb[0].mxu0
        %v5592 = vpop.f32.mrb[0].mxu0
        %v5593 = vadd.f32 %v5398, %v5592
        %v5594 = vpop.f32.mrb[0].mxu0
        %5595 = vmatprep.mubr.bf16.mxu0 0
        %5596 = vmatmul.mubr.bf16.gmra.mrb[0].mxu0 %v5449
        %v5597 = vpop.f32.mrb[0].mxu0
        %v5598 = vadd.f32 %v5398, %v5597
        %v5599 = vpop.f32.mrb[0].mxu0
        %v5600 = vpop.f32.mrb[0].mxu0
        %v5601 = vadd.f32 %v5398, %v5600
        %v5602 = vpop.f32.mrb[0].mxu0
        %5603 = vmatprep.mubr.bf16.mxu0 0
        %5604 = vmatmul.mubr.bf16.gmra.mrb[0].mxu0 %v5452
        %v5605 = vpop.f32.mrb[0].mxu0
        %v5606 = vadd.f32 %v5398, %v5605
        %v5607 = vpop.f32.mrb[0].mxu0
        %v5608 = vpop.f32.mrb[0].mxu0
        %v5609 = vadd.f32 %v5398, %v5608
        %v5610 = vpop.f32.mrb[0].mxu0
        %5611 = vmatprep.mubr.bf16.mxu0 0
        %5612 = vmatmul.mubr.bf16.gmra.mrb[0].mxu0 %v5455
        %v5613 = vpop.f32.mrb[0].mxu0
        %v5614 = vadd.f32 %v5398, %v5613
        %v5615 = vpop.f32.mrb[0].mxu0
        %v5616 = vpop.f32.mrb[0].mxu0
        %v5617 = vadd.f32 %v5398, %v5616
        %v5618 = vpop.f32.mrb[0].mxu0
        %5619 = vmatprep.mubr.bf16.mxu0 0
        %5620 = vmatmul.mubr.bf16.gmra.mrb[0].mxu0 %v5458
        %v5621 = vpop.f32.mrb[0].mxu0
        %v5622 = vadd.f32 %v5398, %v5621
        %v5623 = vpop.f32.mrb[0].mxu0
        %v5624 = vpop.f32.mrb[0].mxu0
        %v5625 = vadd.f32 %v5398, %v5624
        %v5626 = vpop.f32.mrb[0].mxu0
        %5627 = vdwg.mxu0
        %v5628 = vmax.f32 %v5502, 0.0
        %v5629 = vmax.f32 %v5505, 0.0
        %v5630 = vmax.f32 %v5510, 0.0
        %v5631 = vmax.f32 %v5513, 0.0
        %v5632 = vmax.f32 %v5518, 0.0
        %v5633 = vmax.f32 %v5521, 0.0
        %v5634 = vmax.f32 %v5526, 0.0
        %v5635 = vmax.f32 %v5529, 0.0
        %v5636 = vmax.f32 %v5534, 0.0
        %v5637 = vmax.f32 %v5537, 0.0
        %v5638 = vmax.f32 %v5542, 0.0
        %v5639 = vmax.f32 %v5545, 0.0
        %v5640 = vmax.f32 %v5550, 0.0
        %v5641 = vmax.f32 %v5553, 0.0
        %v5642 = vmax.f32 %v5558, 0.0
        %v5643 = vmax.f32 %v5561, 0.0
        %v5644 = vmax.f32 %v5566, 0.0
        %v5645 = vmax.f32 %v5569, 0.0
        %v5646 = vmax.f32 %v5574, 0.0
        %v5647 = vmax.f32 %v5577, 0.0
        %v5648 = vmax.f32 %v5582, 0.0
        %v5649 = vmax.f32 %v5585, 0.0
        %v5650 = vmax.f32 %v5590, 0.0
        %v5651 = vmax.f32 %v5593, 0.0
        %v5652 = vmax.f32 %v5598, 0.0
        %v5653 = vmax.f32 %v5601, 0.0
        %v5654 = vmax.f32 %v5606, 0.0
        %v5655 = vmax.f32 %v5609, 0.0
        %v5656 = vmax.f32 %v5614, 0.0
        %v5657 = vmax.f32 %v5617, 0.0
        %v5658 = vmax.f32 %v5622, 0.0
        %v5659 = vmax.f32 %v5625, 0.0
        %vm5660 = vcmask 523264
        %5661 = vst.msk [vmem:[%s177] sm:$0xff] %vm5660, %v5628
        %5662 = vst.msk [vmem:[%s177 + $0x8] sm:$0xff] %vm5660, %v5629
        %5663 = vst.msk [vmem:[%s177 + $0x10] sm:$0xff] %vm5660, %v5630
        %5664 = vst.msk [vmem:[%s177 + $0x18] sm:$0xff] %vm5660, %v5631
        %5665 = vst.msk [vmem:[%s177 + $0x20] sm:$0xff] %vm5660, %v5632
        %5666 = vst.msk [vmem:[%s177 + $0x28] sm:$0xff] %vm5660, %v5633
        %5667 = vst.msk [vmem:[%s177 + $0x30] sm:$0xff] %vm5660, %v5634
        %5668 = vst.msk [vmem:[%s177 + $0x38] sm:$0xff] %vm5660, %v5635
        %5669 = vst.msk [vmem:[%s177 + $0x40] sm:$0xff] %vm5660, %v5636
        %5670 = vst.msk [vmem:[%s177 + $0x48] sm:$0xff] %vm5660, %v5637
        %5671 = vst.msk [vmem:[%s177 + $0x50] sm:$0xff] %vm5660, %v5638
        %5672 = vst.msk [vmem:[%s177 + $0x58] sm:$0xff] %vm5660, %v5639
        %5673 = vst.msk [vmem:[%s177 + $0x60] sm:$0xff] %vm5660, %v5640
        %5674 = vst.msk [vmem:[%s177 + $0x68] sm:$0xff] %vm5660, %v5641
        %5675 = vst.msk [vmem:[%s177 + $0x70] sm:$0xff] %vm5660, %v5642
        %5676 = vst.msk [vmem:[%s177 + $0x78] sm:$0xff] %vm5660, %v5643
        %5677 = vst.msk [vmem:[%s177 + $0x80] sm:$0xff] %vm5660, %v5644
        %5678 = vst.msk [vmem:[%s177 + $0x88] sm:$0xff] %vm5660, %v5645
        %5679 = vst.msk [vmem:[%s177 + $0x90] sm:$0xff] %vm5660, %v5646
        %5680 = vst.msk [vmem:[%s177 + $0x98] sm:$0xff] %vm5660, %v5647
        %5681 = vst.msk [vmem:[%s177 + $0xa0] sm:$0xff] %vm5660, %v5648
        %5682 = vst.msk [vmem:[%s177 + $0xa8] sm:$0xff] %vm5660, %v5649
        %5683 = vst.msk [vmem:[%s177 + $0xb0] sm:$0xff] %vm5660, %v5650
        %5684 = vst.msk [vmem:[%s177 + $0xb8] sm:$0xff] %vm5660, %v5651
        %5685 = vst.msk [vmem:[%s177 + $0xc0] sm:$0xff] %vm5660, %v5652
        %5686 = vst.msk [vmem:[%s177 + $0xc8] sm:$0xff] %vm5660, %v5653
        %5687 = vst.msk [vmem:[%s177 + $0xd0] sm:$0xff] %vm5660, %v5654
        %5688 = vst.msk [vmem:[%s177 + $0xd8] sm:$0xff] %vm5660, %v5655
        %5689 = vst.msk [vmem:[%s177 + $0xe0] sm:$0xff] %vm5660, %v5656
        %5690 = vst.msk [vmem:[%s177 + $0xe8] sm:$0xff] %vm5660, %v5657
        %5691 = vst.msk [vmem:[%s177 + $0xf0] sm:$0xff] %vm5660, %v5658
        %5692 = vst.msk [vmem:[%s177 + $0xf8] sm:$0xff] %vm5660, %v5659
        %s5693 = sand.u32 %s107, 1
        %s5694 = scalar_lea.sflag [#allocation5], %s5693
        %s5695 = sand.u32 %s107, 1
        %s5696 = smul.addr %s5695, 256
        %s5697 = scalar_lea.vmem [#allocation4], %s5696
        // Predicated region
        $region37: #{tpu_custom_call.1} parent=31 // pred_check
          %p5698 = pneg %p117
        $region38: #{tpu_custom_call.1} parent=31 // pred_check_branch
          %5700 = sbr.rel (%p5698) target = $region40
        $region39: #{tpu_custom_call.1} parent=31 // pred_region
          %s5701 = smul.u32 8, %s22
          %s5703 = ssub.s32 4096, 4096
          %5704 = vsyncadd %s5694, %s5703
          %s5705 = smul.addr %s5701, 4
          %s5706 = smul.addr %s21, 128
          %s5707 = sadd.s32 %s5705, %s5706
          %s5708 = smul.addr %s5707, 128
          %s5709 = scalar_lea.hbm %s3, %s5708
          %s5710 = sshll.u32 %s5697, 4
          %s5711 = int_to_ptr.vmem [resolvable:$true] %s5710
          %5716 = dma.vmem_to_hbm [thread:$0]  %s5711, 4096, %s5709, %s5694, 128, 128, 8
        $region40: #{tpu_custom_call.1} parent=31 // pred_fallthru
          _
      $region32: #{tpu_custom_call.1} parent=5 // pred_fallthru
        _
      %p5717 = scmp.le.s32.totalorder 2, %s12
      // Predicated region
      $region41: #{tpu_custom_call.1} parent=5 // pred_check
        %p5718 = pneg %p5717
      $region42: #{tpu_custom_call.1} parent=5 // pred_check_branch
        %5720 = sbr.rel (%p5718) target = $region44
      $region43: #{tpu_custom_call.1} parent=5 // pred_region
        %s5721 = ssub.s32 %s12, 2
        // Predicated region
        $region45: #{tpu_custom_call.1} parent=43 // pred_check
          %p5722 = pneg %p123
        $region46: #{tpu_custom_call.1} parent=43 // pred_check_branch
          %5724 = sbr.rel (%p5722) target = $region48
        $region47: #{tpu_custom_call.1} parent=43 // pred_region
          %s5725 = sand.u32 %s108, 1
          %s5726 = scalar_lea.sflag [#allocation5], %s5725
          %s5727 = sand.u32 %s108, 1
          %s5728 = smul.addr %s5727, 256
          %s5729 = scalar_lea.vmem [#allocation4], %s5728
          %5730 = dma.done %s5726, 4096
        $region48: #{tpu_custom_call.1} parent=43 // pred_fallthru
          _
      $region44: #{tpu_custom_call.1} parent=5 // pred_fallthru
        _
    $region6: #{tpu_custom_call.1} parent=1 // loop_footer
      %s16 = sadd.s32 1, %s12
    $region7: #{tpu_custom_call.1} parent=1 // loop_footer_branch
      %11 = sbr.rel target = $region3
    $region8: #{tpu_custom_call.1} parent=1 // loop_exit
      _
    %5731 = vsyncpa [#allocation5], 1
    %s5732 = scalar_lea.sflag [#allocation5], 1
    %5733 = vsyncpa %s5732, 1

</llo_original>
